<compile_context>
chip_gen: v5e
topology: v5e:2x2
jax: 0.10.0
libtpu: 0.0.40
codegen_flags: <defaults>
</compile_context>

<pallas_src>
import jax
import jax.numpy as jnp
from jax.experimental import pallas as pl
from jax.experimental.pallas import tpu as pltpu

BN_EPS = 1e-5


# ---------------------------------------------------------------------------
# Fused whole-chain kernel
# ---------------------------------------------------------------------------
def _make_chain_kernel(N, H, W, CIP, C_OUT, num_blocks, mxu_dtype):
    NH = N * H
    WCI = W * CIP            # lane width of the (channel-padded) block-0 input
    WCO = W * C_OUT          # lane width of every other activation
    inv_w = 1.0 / W

    def kernel(*refs):
        it = iter(refs)
        x_ref = next(it)
        blocks = [tuple(next(it) for _ in range(10)) for _ in range(num_blocks)]
        gd_ref, bd_ref = next(it), next(it)
        o_ref = next(it)
        pad_ref = next(it)   # (N, H+2, WCI) halo buffer in the MXU dtype

        # ---- helpers -------------------------------------------------------
        def fold_w(v):
            """(1, W*C) per-lane stats -> (1, C) per-channel stats (mean over W)."""
            s = v[:, 0:C_OUT]
            for xw in range(1, W):
                s = s + v[:, xw * C_OUT:(xw + 1) * C_OUT]
            return s * inv_w

        def tile_w(v):
            """(1, C) -> (1, W*C): broadcast per-channel values back to lanes."""
            return jnp.concatenate([v] * W, axis=-1)

        def bn(y, g_ref, b_ref, residual=None, relu=False):
            """Training-mode BatchNorm2d (per-batch stats, biased variance) +
            affine (+residual) (+ReLU), all in exact f32 on the VPU."""
            col_mean = jnp.mean(y, axis=0, keepdims=True)        # (1, W*C)
            mean = tile_w(fold_w(col_mean))
            cen = y - mean
            col_var = jnp.mean(cen * cen, axis=0, keepdims=True)
            var = tile_w(fold_w(col_var))
            out = cen * (g_ref[...] * jax.lax.rsqrt(var + BN_EPS)) + b_ref[...]
            if residual is not None:
                out = out + residual
            if relu:
                out = jnp.maximum(out, 0.0)
            return out

        def write_pad(act, wc):
            """Write the (NH, wc) activation into the halo buffer interior."""
            pad_ref[:, 1:H + 1, 0:wc] = act.reshape(N, H, wc).astype(pad_ref.dtype)

        def row_dot(dy, w_ref, wc):
            """One vertical tap: (NH, wc) @ (wc, n_cols) on the MXU, f32 acc."""
            lhs = pad_ref[:, dy:dy + H, 0:wc].reshape(NH, wc)
            return jnp.dot(lhs, w_ref[...], preferred_element_type=jnp.float32)

        # ---- zero only the 1-row halo (interiors are rewritten per conv) ----
        zrow = jnp.zeros((N, 1, WCI), dtype=pad_ref.dtype)
        pad_ref[:, 0:1, :] = zrow
        pad_ref[:, H + 1:H + 2, :] = zrow

        # ---- the chain -------------------------------------------------------
        act = x_ref[...].reshape(NH, WCI).astype(jnp.float32)
        wc_in = WCI
        for b in range(num_blocks):
            w1t, w1c, w1b, g1, b1, w2t, w2c, w2b, g2, b2 = blocks[b]

            # conv1 (3 vertical-tap matmuls; SAME padding is in the weights)
            write_pad(act, wc_in)
            ctr = row_dot(1, w1c, wc_in)          # block 0: [conv1-centre | downsample]
            y1 = row_dot(0, w1t, wc_in) + row_dot(2, w1b, wc_in)
            if b == 0:
                y1 = y1 + ctr[:, 0:WCO]
                residual = bn(ctr[:, WCO:2 * WCO], gd_ref, bd_ref)   # downsample branch
            else:
                y1 = y1 + ctr
                residual = act                                        # identity shortcut
            h = bn(y1, g1, b1, relu=True)

            # conv2 + BN + residual add + ReLU
            write_pad(h, WCO)
            y2 = row_dot(0, w2t, WCO) + row_dot(1, w2c, WCO) + row_dot(2, w2b, WCO)
            act = bn(y2, g2, b2, residual=residual, relu=True)
            wc_in = WCO

        o_ref[...] = act.astype(o_ref.dtype)      # lane-dense (NH, W*C_OUT) store

    return kernel


def chain_forward(x, block_params, ds_params, *, mxu_dtype=jnp.bfloat16):
    """x: (N, H, W, C_IN) f32 (NHWC).  Returns (N, H, W, C_OUT)."""
    N, H, W, C_IN = x.shape
    C_OUT = block_params[0]["w1"].shape[-1]
    num_blocks = len(block_params)
    CIP = max(C_IN, C_OUT)           # block-0 input channels after zero-padding
    WCI, WCO = W * CIP, W * C_OUT
    NH = N * H

    def tile_cw(v):
        """Per-channel (C,) param -> (1, W*C) matching the lane layout x*C + c."""
        return jnp.tile(v.reshape(1, C_OUT), (1, W)).astype(jnp.float32)

    def banded(w):
        """(3,3,cin,cout) conv weight -> 3 banded matrices (W*cin, W*cout),
        one per vertical tap; horizontal taps + SAME padding are folded in."""
        mats = []
        for dy in range(3):
            m = None
            for dx in range(3):
                blk = jnp.kron(jnp.eye(W, k=1 - dx, dtype=w.dtype), w[dy, dx])
                m = blk if m is None else m + blk
            mats.append(m.astype(mxu_dtype))
        return mats

    # Zero-pad block-0 input channels (and matching weight rows) so every
    # activation slab shares the same lane-dense W*C layout.
    if CIP > C_IN:
        x = jnp.pad(x, ((0, 0), (0, 0), (0, 0), (0, CIP - C_IN)))
    x_slab = x.reshape(N, H, WCI)

    args = [x_slab]
    for b, p in enumerate(block_params):
        w1 = p["w1"]
        if b == 0 and CIP > C_IN:
            w1 = jnp.pad(w1, ((0, 0), (0, 0), (0, CIP - C_IN), (0, 0)))
        w1t, w1c, w1b = banded(w1)
        if b == 0:
            # Fuse the downsample 1x1 conv into conv1's centre matmul as extra
            # output columns: one MXU pass yields both results.
            wd = ds_params["w"][0, 0]
            if CIP > C_IN:
                wd = jnp.pad(wd, ((0, CIP - C_IN), (0, 0)))
            dmat = jnp.kron(jnp.eye(W, dtype=wd.dtype), wd).astype(mxu_dtype)
            w1c = jnp.concatenate([w1c, dmat], axis=1)          # (WCI, 2*WCO)
        w2t, w2c, w2b = banded(p["w2"])
        args += [w1t, w1c, w1b, tile_cw(p["g1"]), tile_cw(p["b1"]),
                 w2t, w2c, w2b, tile_cw(p["g2"]), tile_cw(p["b2"])]
    args += [tile_cw(ds_params["g"]), tile_cw(ds_params["b"])]

    kernel = _make_chain_kernel(N, H, W, CIP, C_OUT, num_blocks, mxu_dtype)
    vmem = pl.BlockSpec(memory_space=pltpu.MemorySpace.VMEM)
    out = pl.pallas_call(
        kernel,
        out_shape=jax.ShapeDtypeStruct((NH, WCO), x.dtype),
        in_specs=[vmem] * len(args),
        out_specs=vmem,
        scratch_shapes=[
            # Single lane-dense halo buffer in the MXU dtype, reused by every conv.
            pltpu.VMEM((N, H + 2, WCI), mxu_dtype),
        ],
    )(*args)
    return out.reshape(N, H, W, C_OUT)


# ---------------------------------------------------------------------------
# Pure-JAX reference (for numerical verification of the fused kernel)
# ---------------------------------------------------------------------------
def _conv_ref(x, w):
    return jax.lax.conv_general_dilated(
        x, w, (1, 1), "SAME", dimension_numbers=("NHWC", "HWIO", "NHWC"))


def _bn_ref(x, g, b, eps=BN_EPS):
    m = jnp.mean(x, axis=(0, 1, 2))
    v = jnp.var(x, axis=(0, 1, 2))
    return (x - m) / jnp.sqrt(v + eps) * g + b


def _block_ref(x, p, ds=None):
    h = jax.nn.relu(_bn_ref(_conv_ref(x, p["w1"]), p["g1"], p["b1"]))
    y = _bn_ref(_conv_ref(h, p["w2"]), p["g2"], p["b2"])
    r = _bn_ref(_conv_ref(x, ds["w"]), ds["g"], ds["b"]) if ds is not None else x
    return jax.nn.relu(y + r)


def _chain_ref(x, block_params, ds_params):
    out = _block_ref(x, block_params[0], ds_params)
    for p in block_params[1:]:
        out = _block_ref(out, p, None)
    return out


# ---------------------------------------------------------------------------
# Deterministic parameter init (shapes follow ChainOfBasicBlocks.__init__)
# NOTE: kernel_height / kernel_width / dilation ctor args are unused by the
# PyTorch module's forward (convs are hard-wired 3x3, pad=1, dilation=1).
# ---------------------------------------------------------------------------
def init_params(key, c_in, c_out, num_blocks):
    def nrm(k, shape, s=0.1):
        return s * jax.random.normal(k, shape, jnp.float32)

    keys = jax.random.split(key, 4 * num_blocks + 3)
    ki = iter(keys)

    block_params = []
    for b in range(num_blocks):
        cin_b = c_in if b == 0 else c_out
        block_params.append({
            "w1": nrm(next(ki), (3, 3, cin_b, c_out)),
            "g1": 1.0 + nrm(next(ki), (c_out,)),
            "b1": nrm(next(ki), (c_out,)),
            "w2": nrm(next(ki), (3, 3, c_out, c_out)),
            "g2": 1.0 + 0.1 * jnp.arange(c_out, dtype=jnp.float32) / c_out,
            "b2": 0.05 * jnp.arange(c_out, dtype=jnp.float32) / c_out,
        })
    ds_params = {
        "w": nrm(next(ki), (1, 1, c_in, c_out)),
        "g": 1.0 + nrm(next(ki), (c_out,)),
        "b": nrm(next(ki), (c_out,)),
    }
    return block_params, ds_params


if __name__ == "__main__":
    # ChainOfBasicBlocks(input_channel=4, ouput_channel=8, kernel_height=3,
    #                    kernel_width=3, dilation=1, num_blocks=2, groups=1)
    N, H, W, C_IN, C_OUT, NUM_BLOCKS = 2, 16, 16, 4, 8, 2

    key = jax.random.PRNGKey(0)
    k_x, k_p = jax.random.split(key)
    x = jax.random.normal(k_x, (N, H, W, C_IN), jnp.float32)  # NHWC

    block_params, ds_params = init_params(k_p, C_IN, C_OUT, NUM_BLOCKS)

    fwd = jax.jit(chain_forward, static_argnames=("mxu_dtype",))
    ref = _chain_ref(x, block_params, ds_params)

    # 1) f32-operand path.  NOTE: at default matmul precision the MXU may still
    #    use multi-pass bf16 internally, so this is a ~1e-3-level check rather
    #    than an exact-f32 check (BN stats themselves are exact f32 on the VPU).
    out_f32 = jax.block_until_ready(
        fwd(x, block_params, ds_params, mxu_dtype=jnp.float32))
    assert out_f32.shape == (N, H, W, C_OUT), out_f32.shape
    err_f32 = float(jnp.max(jnp.abs(out_f32 - ref)))
    assert err_f32 < 2e-3, f"f32 path mismatch vs reference: {err_f32}"

    # 2) fast path: bf16 MXU operands (f32 accumulation) — looser tolerance
    #    since activation/weight rounding compounds across the 2 blocks.
    out_bf16 = jax.block_until_ready(
        fwd(x, block_params, ds_params, mxu_dtype=jnp.bfloat16))
    assert out_bf16.shape == (N, H, W, C_OUT), out_bf16.shape
    err_bf16 = float(jnp.max(jnp.abs(out_bf16 - ref)))
    assert err_bf16 < 2e-1, f"bf16 path mismatch vs reference: {err_bf16}"

    print("KERNEL_OK")
</pallas_src>

<mosaic_0001>
module attributes {stable_mosaic.version = 11 : i64} {
  func.func @kernel(%arg0: memref<2x16x128xf32, #tpu.memory_space<vmem>>, %arg1: memref<128x128xf32, #tpu.memory_space<vmem>>, %arg2: memref<128x256xf32, #tpu.memory_space<vmem>>, %arg3: memref<128x128xf32, #tpu.memory_space<vmem>>, %arg4: memref<1x128xf32, #tpu.memory_space<vmem>>, %arg5: memref<1x128xf32, #tpu.memory_space<vmem>>, %arg6: memref<128x128xf32, #tpu.memory_space<vmem>>, %arg7: memref<128x128xf32, #tpu.memory_space<vmem>>, %arg8: memref<128x128xf32, #tpu.memory_space<vmem>>, %arg9: memref<1x128xf32, #tpu.memory_space<vmem>>, %arg10: memref<1x128xf32, #tpu.memory_space<vmem>>, %arg11: memref<128x128xf32, #tpu.memory_space<vmem>>, %arg12: memref<128x128xf32, #tpu.memory_space<vmem>>, %arg13: memref<128x128xf32, #tpu.memory_space<vmem>>, %arg14: memref<1x128xf32, #tpu.memory_space<vmem>>, %arg15: memref<1x128xf32, #tpu.memory_space<vmem>>, %arg16: memref<128x128xf32, #tpu.memory_space<vmem>>, %arg17: memref<128x128xf32, #tpu.memory_space<vmem>>, %arg18: memref<128x128xf32, #tpu.memory_space<vmem>>, %arg19: memref<1x128xf32, #tpu.memory_space<vmem>>, %arg20: memref<1x128xf32, #tpu.memory_space<vmem>>, %arg21: memref<1x128xf32, #tpu.memory_space<vmem>>, %arg22: memref<1x128xf32, #tpu.memory_space<vmem>>, %arg23: memref<32x128xf32, #tpu.memory_space<vmem>>, %arg24: memref<2x18x128xf32, #tpu.memory_space<vmem>>) attributes {dimension_semantics = [], scalar_prefetch = 0 : i64, scratch_operands = 1 : i64, tpu.core_type = #tpu.core_type<tc>} {
    %cst = arith.constant 0.000000e+00 : f32
    %0 = vector.broadcast %cst : f32 to vector<2x1x128xf32>
    %c0 = arith.constant 0 : index
    %c0_0 = arith.constant 0 : index
    %c0_1 = arith.constant 0 : index
    %1 = vector.load %arg24[%c0, %c0_0, %c0_1] : memref<2x18x128xf32, #tpu.memory_space<vmem>>, vector<2x1x128xf32>
    tpu.vector_store %arg24[%c0, %c0_0, %c0_1], %0 {strides = array<i32>} : memref<2x18x128xf32, #tpu.memory_space<vmem>>, vector<2x1x128xf32>,
    %c0_2 = arith.constant 0 : index
    %c17 = arith.constant 17 : index
    %c0_3 = arith.constant 0 : index
    %2 = vector.load %arg24[%c0_2, %c17, %c0_3] : memref<2x18x128xf32, #tpu.memory_space<vmem>>, vector<2x1x128xf32>
    tpu.vector_store %arg24[%c0_2, %c17, %c0_3], %0 {strides = array<i32>} : memref<2x18x128xf32, #tpu.memory_space<vmem>>, vector<2x1x128xf32>,
    %c0_4 = arith.constant 0 : index
    %c0_5 = arith.constant 0 : index
    %c0_6 = arith.constant 0 : index
    %3 = vector.load %arg0[%c0_4, %c0_5, %c0_6] : memref<2x16x128xf32, #tpu.memory_space<vmem>>, vector<2x16x128xf32>
    %4 = vector.shape_cast %3 : vector<2x16x128xf32> to vector<32x128xf32>
    %5 = vector.shape_cast %4 : vector<32x128xf32> to vector<2x16x128xf32>
    %c0_7 = arith.constant 0 : index
    %c1 = arith.constant 1 : index
    %c0_8 = arith.constant 0 : index
    %6 = vector.load %arg24[%c0_7, %c1, %c0_8] : memref<2x18x128xf32, #tpu.memory_space<vmem>>, vector<2x16x128xf32>
    tpu.vector_store %arg24[%c0_7, %c1, %c0_8], %5 {strides = array<i32>} : memref<2x18x128xf32, #tpu.memory_space<vmem>>, vector<2x16x128xf32>,
    %c0_9 = arith.constant 0 : index
    %c1_10 = arith.constant 1 : index
    %c0_11 = arith.constant 0 : index
    %7 = vector.load %arg24[%c0_9, %c1_10, %c0_11] : memref<2x18x128xf32, #tpu.memory_space<vmem>>, vector<2x16x128xf32>
    %8 = vector.shape_cast %7 : vector<2x16x128xf32> to vector<32x128xf32>
    %c0_12 = arith.constant 0 : index
    %c0_13 = arith.constant 0 : index
    %9 = vector.load %arg2[%c0_12, %c0_13] : memref<128x256xf32, #tpu.memory_space<vmem>>, vector<128x256xf32>
    %cst_14 = arith.constant dense<0.000000e+00> : vector<32x256xf32>
    %10 = tpu.matmul %8, %9, %cst_14 {dimension_numbers = #tpu.dot_dimension_numbers<[1], [0], [0], [1], [0, 0, 1, 1], [], []>} : vector<32x128xf32>, vector<128x256xf32>, vector<32x256xf32> -> vector<32x256xf32>
    %c0_15 = arith.constant 0 : index
    %c0_16 = arith.constant 0 : index
    %c0_17 = arith.constant 0 : index
    %11 = vector.load %arg24[%c0_15, %c0_16, %c0_17] : memref<2x18x128xf32, #tpu.memory_space<vmem>>, vector<2x16x128xf32>
    %12 = vector.shape_cast %11 : vector<2x16x128xf32> to vector<32x128xf32>
    %c0_18 = arith.constant 0 : index
    %c0_19 = arith.constant 0 : index
    %13 = vector.load %arg1[%c0_18, %c0_19] : memref<128x128xf32, #tpu.memory_space<vmem>>, vector<128x128xf32>
    %cst_20 = arith.constant dense<0.000000e+00> : vector<32x128xf32>
    %14 = tpu.matmul %12, %13, %cst_20 {dimension_numbers = #tpu.dot_dimension_numbers<[1], [0], [0], [1], [0, 0, 1, 1], [], []>} : vector<32x128xf32>, vector<128x128xf32>, vector<32x128xf32> -> vector<32x128xf32>
    %c0_21 = arith.constant 0 : index
    %c2 = arith.constant 2 : index
    %c0_22 = arith.constant 0 : index
    %15 = vector.load %arg24[%c0_21, %c2, %c0_22] : memref<2x18x128xf32, #tpu.memory_space<vmem>>, vector<2x16x128xf32>
    %16 = vector.shape_cast %15 : vector<2x16x128xf32> to vector<32x128xf32>
    %c0_23 = arith.constant 0 : index
    %c0_24 = arith.constant 0 : index
    %17 = vector.load %arg3[%c0_23, %c0_24] : memref<128x128xf32, #tpu.memory_space<vmem>>, vector<128x128xf32>
    %cst_25 = arith.constant dense<0.000000e+00> : vector<32x128xf32>
    %18 = tpu.matmul %16, %17, %cst_25 {dimension_numbers = #tpu.dot_dimension_numbers<[1], [0], [0], [1], [0, 0, 1, 1], [], []>} : vector<32x128xf32>, vector<128x128xf32>, vector<32x128xf32> -> vector<32x128xf32>
    %19 = arith.addf %14, %18 : vector<32x128xf32>
    %20 = vector.extract_strided_slice %10 {offsets = [0, 0], sizes = [32, 128], strides = [1, 1]} : vector<32x256xf32> to vector<32x128xf32>
    %21 = arith.addf %19, %20 : vector<32x128xf32>
    %22 = vector.extract_strided_slice %10 {offsets = [0, 128], sizes = [32, 128], strides = [1, 1]} : vector<32x256xf32> to vector<32x128xf32>
    %cst_26 = arith.constant dense<0.000000e+00> : vector<128xf32>
    %23 = vector.multi_reduction <add>, %22, %cst_26 [0] : vector<32x128xf32> to vector<128xf32>
    %24 = vector.shape_cast %23 : vector<128xf32> to vector<1x128xf32>
    %cst_27 = arith.constant 3.200000e+01 : f32
    %25 = vector.broadcast %cst_27 : f32 to vector<1x128xf32>
    %26 = arith.divf %24, %25 : vector<1x128xf32>
    %27 = vector.extract_strided_slice %26 {offsets = [0, 0], sizes = [1, 8], strides = [1, 1]} : vector<1x128xf32> to vector<1x8xf32>
    %28 = vector.extract_strided_slice %26 {offsets = [0, 8], sizes = [1, 8], strides = [1, 1]} : vector<1x128xf32> to vector<1x8xf32>
    %29 = arith.addf %27, %28 : vector<1x8xf32>
    %30 = vector.extract_strided_slice %26 {offsets = [0, 16], sizes = [1, 8], strides = [1, 1]} : vector<1x128xf32> to vector<1x8xf32>
    %31 = arith.addf %29, %30 : vector<1x8xf32>
    %32 = vector.extract_strided_slice %26 {offsets = [0, 24], sizes = [1, 8], strides = [1, 1]} : vector<1x128xf32> to vector<1x8xf32>
    %33 = arith.addf %31, %32 : vector<1x8xf32>
    %34 = vector.extract_strided_slice %26 {offsets = [0, 32], sizes = [1, 8], strides = [1, 1]} : vector<1x128xf32> to vector<1x8xf32>
    %35 = arith.addf %33, %34 : vector<1x8xf32>
    %36 = vector.extract_strided_slice %26 {offsets = [0, 40], sizes = [1, 8], strides = [1, 1]} : vector<1x128xf32> to vector<1x8xf32>
    %37 = arith.addf %35, %36 : vector<1x8xf32>
    %38 = vector.extract_strided_slice %26 {offsets = [0, 48], sizes = [1, 8], strides = [1, 1]} : vector<1x128xf32> to vector<1x8xf32>
    %39 = arith.addf %37, %38 : vector<1x8xf32>
    %40 = vector.extract_strided_slice %26 {offsets = [0, 56], sizes = [1, 8], strides = [1, 1]} : vector<1x128xf32> to vector<1x8xf32>
    %41 = arith.addf %39, %40 : vector<1x8xf32>
    %42 = vector.extract_strided_slice %26 {offsets = [0, 64], sizes = [1, 8], strides = [1, 1]} : vector<1x128xf32> to vector<1x8xf32>
    %43 = arith.addf %41, %42 : vector<1x8xf32>
    %44 = vector.extract_strided_slice %26 {offsets = [0, 72], sizes = [1, 8], strides = [1, 1]} : vector<1x128xf32> to vector<1x8xf32>
    %45 = arith.addf %43, %44 : vector<1x8xf32>
    %46 = vector.extract_strided_slice %26 {offsets = [0, 80], sizes = [1, 8], strides = [1, 1]} : vector<1x128xf32> to vector<1x8xf32>
    %47 = arith.addf %45, %46 : vector<1x8xf32>
    %48 = vector.extract_strided_slice %26 {offsets = [0, 88], sizes = [1, 8], strides = [1, 1]} : vector<1x128xf32> to vector<1x8xf32>
    %49 = arith.addf %47, %48 : vector<1x8xf32>
    %50 = vector.extract_strided_slice %26 {offsets = [0, 96], sizes = [1, 8], strides = [1, 1]} : vector<1x128xf32> to vector<1x8xf32>
    %51 = arith.addf %49, %50 : vector<1x8xf32>
    %52 = vector.extract_strided_slice %26 {offsets = [0, 104], sizes = [1, 8], strides = [1, 1]} : vector<1x128xf32> to vector<1x8xf32>
    %53 = arith.addf %51, %52 : vector<1x8xf32>
    %54 = vector.extract_strided_slice %26 {offsets = [0, 112], sizes = [1, 8], strides = [1, 1]} : vector<1x128xf32> to vector<1x8xf32>
    %55 = arith.addf %53, %54 : vector<1x8xf32>
    %56 = vector.extract_strided_slice %26 {offsets = [0, 120], sizes = [1, 8], strides = [1, 1]} : vector<1x128xf32> to vector<1x8xf32>
    %57 = arith.addf %55, %56 : vector<1x8xf32>
    %cst_28 = arith.constant 6.250000e-02 : f32
    %58 = vector.broadcast %cst_28 : f32 to vector<1x8xf32>
    %59 = arith.mulf %57, %58 : vector<1x8xf32>
    %60 = tpu.concatenate %59, %59, %59, %59, %59, %59, %59, %59, %59, %59, %59, %59, %59, %59, %59, %59 in 1 : vector<1x8xf32>, vector<1x8xf32>, vector<1x8xf32>, vector<1x8xf32>, vector<1x8xf32>, vector<1x8xf32>, vector<1x8xf32>, vector<1x8xf32>, vector<1x8xf32>, vector<1x8xf32>, vector<1x8xf32>, vector<1x8xf32>, vector<1x8xf32>, vector<1x8xf32>, vector<1x8xf32>, vector<1x8xf32> -> vector<1x128xf32>
    %61 = vector.broadcast %60 : vector<1x128xf32> to vector<32x128xf32>
    %62 = arith.subf %22, %61 : vector<32x128xf32>
    %63 = arith.mulf %62, %62 : vector<32x128xf32>
    %cst_29 = arith.constant dense<0.000000e+00> : vector<128xf32>
    %64 = vector.multi_reduction <add>, %63, %cst_29 [0] : vector<32x128xf32> to vector<128xf32>
    %65 = vector.shape_cast %64 : vector<128xf32> to vector<1x128xf32>
    %cst_30 = arith.constant 3.200000e+01 : f32
    %66 = vector.broadcast %cst_30 : f32 to vector<1x128xf32>
    %67 = arith.divf %65, %66 : vector<1x128xf32>
    %68 = vector.extract_strided_slice %67 {offsets = [0, 0], sizes = [1, 8], strides = [1, 1]} : vector<1x128xf32> to vector<1x8xf32>
    %69 = vector.extract_strided_slice %67 {offsets = [0, 8], sizes = [1, 8], strides = [1, 1]} : vector<1x128xf32> to vector<1x8xf32>
    %70 = arith.addf %68, %69 : vector<1x8xf32>
    %71 = vector.extract_strided_slice %67 {offsets = [0, 16], sizes = [1, 8], strides = [1, 1]} : vector<1x128xf32> to vector<1x8xf32>
    %72 = arith.addf %70, %71 : vector<1x8xf32>
    %73 = vector.extract_strided_slice %67 {offsets = [0, 24], sizes = [1, 8], strides = [1, 1]} : vector<1x128xf32> to vector<1x8xf32>
    %74 = arith.addf %72, %73 : vector<1x8xf32>
    %75 = vector.extract_strided_slice %67 {offsets = [0, 32], sizes = [1, 8], strides = [1, 1]} : vector<1x128xf32> to vector<1x8xf32>
    %76 = arith.addf %74, %75 : vector<1x8xf32>
    %77 = vector.extract_strided_slice %67 {offsets = [0, 40], sizes = [1, 8], strides = [1, 1]} : vector<1x128xf32> to vector<1x8xf32>
    %78 = arith.addf %76, %77 : vector<1x8xf32>
    %79 = vector.extract_strided_slice %67 {offsets = [0, 48], sizes = [1, 8], strides = [1, 1]} : vector<1x128xf32> to vector<1x8xf32>
    %80 = arith.addf %78, %79 : vector<1x8xf32>
    %81 = vector.extract_strided_slice %67 {offsets = [0, 56], sizes = [1, 8], strides = [1, 1]} : vector<1x128xf32> to vector<1x8xf32>
    %82 = arith.addf %80, %81 : vector<1x8xf32>
    %83 = vector.extract_strided_slice %67 {offsets = [0, 64], sizes = [1, 8], strides = [1, 1]} : vector<1x128xf32> to vector<1x8xf32>
    %84 = arith.addf %82, %83 : vector<1x8xf32>
    %85 = vector.extract_strided_slice %67 {offsets = [0, 72], sizes = [1, 8], strides = [1, 1]} : vector<1x128xf32> to vector<1x8xf32>
    %86 = arith.addf %84, %85 : vector<1x8xf32>
    %87 = vector.extract_strided_slice %67 {offsets = [0, 80], sizes = [1, 8], strides = [1, 1]} : vector<1x128xf32> to vector<1x8xf32>
    %88 = arith.addf %86, %87 : vector<1x8xf32>
    %89 = vector.extract_strided_slice %67 {offsets = [0, 88], sizes = [1, 8], strides = [1, 1]} : vector<1x128xf32> to vector<1x8xf32>
    %90 = arith.addf %88, %89 : vector<1x8xf32>
    %91 = vector.extract_strided_slice %67 {offsets = [0, 96], sizes = [1, 8], strides = [1, 1]} : vector<1x128xf32> to vector<1x8xf32>
    %92 = arith.addf %90, %91 : vector<1x8xf32>
    %93 = vector.extract_strided_slice %67 {offsets = [0, 104], sizes = [1, 8], strides = [1, 1]} : vector<1x128xf32> to vector<1x8xf32>
    %94 = arith.addf %92, %93 : vector<1x8xf32>
    %95 = vector.extract_strided_slice %67 {offsets = [0, 112], sizes = [1, 8], strides = [1, 1]} : vector<1x128xf32> to vector<1x8xf32>
    %96 = arith.addf %94, %95 : vector<1x8xf32>
    %97 = vector.extract_strided_slice %67 {offsets = [0, 120], sizes = [1, 8], strides = [1, 1]} : vector<1x128xf32> to vector<1x8xf32>
    %98 = arith.addf %96, %97 : vector<1x8xf32>
    %cst_31 = arith.constant 6.250000e-02 : f32
    %99 = vector.broadcast %cst_31 : f32 to vector<1x8xf32>
    %100 = arith.mulf %98, %99 : vector<1x8xf32>
    %101 = tpu.concatenate %100, %100, %100, %100, %100, %100, %100, %100, %100, %100, %100, %100, %100, %100, %100, %100 in 1 : vector<1x8xf32>, vector<1x8xf32>, vector<1x8xf32>, vector<1x8xf32>, vector<1x8xf32>, vector<1x8xf32>, vector<1x8xf32>, vector<1x8xf32>, vector<1x8xf32>, vector<1x8xf32>, vector<1x8xf32>, vector<1x8xf32>, vector<1x8xf32>, vector<1x8xf32>, vector<1x8xf32>, vector<1x8xf32> -> vector<1x128xf32>
    %c0_32 = arith.constant 0 : index
    %c0_33 = arith.constant 0 : index
    %102 = vector.load %arg21[%c0_32, %c0_33] : memref<1x128xf32, #tpu.memory_space<vmem>>, vector<1x128xf32>
    %cst_34 = arith.constant 9.99999974E-6 : f32
    %103 = vector.broadcast %cst_34 : f32 to vector<1x128xf32>
    %104 = arith.addf %101, %103 : vector<1x128xf32>
    %105 = math.rsqrt %104 : vector<1x128xf32>
    %106 = arith.mulf %102, %105 : vector<1x128xf32>
    %107 = vector.broadcast %106 : vector<1x128xf32> to vector<32x128xf32>
    %108 = arith.mulf %62, %107 : vector<32x128xf32>
    %c0_35 = arith.constant 0 : index
    %c0_36 = arith.constant 0 : index
    %109 = vector.load %arg22[%c0_35, %c0_36] : memref<1x128xf32, #tpu.memory_space<vmem>>, vector<1x128xf32>
    %110 = vector.broadcast %109 : vector<1x128xf32> to vector<32x128xf32>
    %111 = arith.addf %108, %110 : vector<32x128xf32>
    %cst_37 = arith.constant dense<0.000000e+00> : vector<128xf32>
    %112 = vector.multi_reduction <add>, %21, %cst_37 [0] : vector<32x128xf32> to vector<128xf32>
    %113 = vector.shape_cast %112 : vector<128xf32> to vector<1x128xf32>
    %cst_38 = arith.constant 3.200000e+01 : f32
    %114 = vector.broadcast %cst_38 : f32 to vector<1x128xf32>
    %115 = arith.divf %113, %114 : vector<1x128xf32>
    %116 = vector.extract_strided_slice %115 {offsets = [0, 0], sizes = [1, 8], strides = [1, 1]} : vector<1x128xf32> to vector<1x8xf32>
    %117 = vector.extract_strided_slice %115 {offsets = [0, 8], sizes = [1, 8], strides = [1, 1]} : vector<1x128xf32> to vector<1x8xf32>
    %118 = arith.addf %116, %117 : vector<1x8xf32>
    %119 = vector.extract_strided_slice %115 {offsets = [0, 16], sizes = [1, 8], strides = [1, 1]} : vector<1x128xf32> to vector<1x8xf32>
    %120 = arith.addf %118, %119 : vector<1x8xf32>
    %121 = vector.extract_strided_slice %115 {offsets = [0, 24], sizes = [1, 8], strides = [1, 1]} : vector<1x128xf32> to vector<1x8xf32>
    %122 = arith.addf %120, %121 : vector<1x8xf32>
    %123 = vector.extract_strided_slice %115 {offsets = [0, 32], sizes = [1, 8], strides = [1, 1]} : vector<1x128xf32> to vector<1x8xf32>
    %124 = arith.addf %122, %123 : vector<1x8xf32>
    %125 = vector.extract_strided_slice %115 {offsets = [0, 40], sizes = [1, 8], strides = [1, 1]} : vector<1x128xf32> to vector<1x8xf32>
    %126 = arith.addf %124, %125 : vector<1x8xf32>
    %127 = vector.extract_strided_slice %115 {offsets = [0, 48], sizes = [1, 8], strides = [1, 1]} : vector<1x128xf32> to vector<1x8xf32>
    %128 = arith.addf %126, %127 : vector<1x8xf32>
    %129 = vector.extract_strided_slice %115 {offsets = [0, 56], sizes = [1, 8], strides = [1, 1]} : vector<1x128xf32> to vector<1x8xf32>
    %130 = arith.addf %128, %129 : vector<1x8xf32>
    %131 = vector.extract_strided_slice %115 {offsets = [0, 64], sizes = [1, 8], strides = [1, 1]} : vector<1x128xf32> to vector<1x8xf32>
    %132 = arith.addf %130, %131 : vector<1x8xf32>
    %133 = vector.extract_strided_slice %115 {offsets = [0, 72], sizes = [1, 8], strides = [1, 1]} : vector<1x128xf32> to vector<1x8xf32>
    %134 = arith.addf %132, %133 : vector<1x8xf32>
    %135 = vector.extract_strided_slice %115 {offsets = [0, 80], sizes = [1, 8], strides = [1, 1]} : vector<1x128xf32> to vector<1x8xf32>
    %136 = arith.addf %134, %135 : vector<1x8xf32>
    %137 = vector.extract_strided_slice %115 {offsets = [0, 88], sizes = [1, 8], strides = [1, 1]} : vector<1x128xf32> to vector<1x8xf32>
    %138 = arith.addf %136, %137 : vector<1x8xf32>
    %139 = vector.extract_strided_slice %115 {offsets = [0, 96], sizes = [1, 8], strides = [1, 1]} : vector<1x128xf32> to vector<1x8xf32>
    %140 = arith.addf %138, %139 : vector<1x8xf32>
    %141 = vector.extract_strided_slice %115 {offsets = [0, 104], sizes = [1, 8], strides = [1, 1]} : vector<1x128xf32> to vector<1x8xf32>
    %142 = arith.addf %140, %141 : vector<1x8xf32>
    %143 = vector.extract_strided_slice %115 {offsets = [0, 112], sizes = [1, 8], strides = [1, 1]} : vector<1x128xf32> to vector<1x8xf32>
    %144 = arith.addf %142, %143 : vector<1x8xf32>
    %145 = vector.extract_strided_slice %115 {offsets = [0, 120], sizes = [1, 8], strides = [1, 1]} : vector<1x128xf32> to vector<1x8xf32>
    %146 = arith.addf %144, %145 : vector<1x8xf32>
    %cst_39 = arith.constant 6.250000e-02 : f32
    %147 = vector.broadcast %cst_39 : f32 to vector<1x8xf32>
    %148 = arith.mulf %146, %147 : vector<1x8xf32>
    %149 = tpu.concatenate %148, %148, %148, %148, %148, %148, %148, %148, %148, %148, %148, %148, %148, %148, %148, %148 in 1 : vector<1x8xf32>, vector<1x8xf32>, vector<1x8xf32>, vector<1x8xf32>, vector<1x8xf32>, vector<1x8xf32>, vector<1x8xf32>, vector<1x8xf32>, vector<1x8xf32>, vector<1x8xf32>, vector<1x8xf32>, vector<1x8xf32>, vector<1x8xf32>, vector<1x8xf32>, vector<1x8xf32>, vector<1x8xf32> -> vector<1x128xf32>
    %150 = vector.broadcast %149 : vector<1x128xf32> to vector<32x128xf32>
    %151 = arith.subf %21, %150 : vector<32x128xf32>
    %152 = arith.mulf %151, %151 : vector<32x128xf32>
    %cst_40 = arith.constant dense<0.000000e+00> : vector<128xf32>
    %153 = vector.multi_reduction <add>, %152, %cst_40 [0] : vector<32x128xf32> to vector<128xf32>
    %154 = vector.shape_cast %153 : vector<128xf32> to vector<1x128xf32>
    %cst_41 = arith.constant 3.200000e+01 : f32
    %155 = vector.broadcast %cst_41 : f32 to vector<1x128xf32>
    %156 = arith.divf %154, %155 : vector<1x128xf32>
    %157 = vector.extract_strided_slice %156 {offsets = [0, 0], sizes = [1, 8], strides = [1, 1]} : vector<1x128xf32> to vector<1x8xf32>
    %158 = vector.extract_strided_slice %156 {offsets = [0, 8], sizes = [1, 8], strides = [1, 1]} : vector<1x128xf32> to vector<1x8xf32>
    %159 = arith.addf %157, %158 : vector<1x8xf32>
    %160 = vector.extract_strided_slice %156 {offsets = [0, 16], sizes = [1, 8], strides = [1, 1]} : vector<1x128xf32> to vector<1x8xf32>
    %161 = arith.addf %159, %160 : vector<1x8xf32>
    %162 = vector.extract_strided_slice %156 {offsets = [0, 24], sizes = [1, 8], strides = [1, 1]} : vector<1x128xf32> to vector<1x8xf32>
    %163 = arith.addf %161, %162 : vector<1x8xf32>
    %164 = vector.extract_strided_slice %156 {offsets = [0, 32], sizes = [1, 8], strides = [1, 1]} : vector<1x128xf32> to vector<1x8xf32>
    %165 = arith.addf %163, %164 : vector<1x8xf32>
    %166 = vector.extract_strided_slice %156 {offsets = [0, 40], sizes = [1, 8], strides = [1, 1]} : vector<1x128xf32> to vector<1x8xf32>
    %167 = arith.addf %165, %166 : vector<1x8xf32>
    %168 = vector.extract_strided_slice %156 {offsets = [0, 48], sizes = [1, 8], strides = [1, 1]} : vector<1x128xf32> to vector<1x8xf32>
    %169 = arith.addf %167, %168 : vector<1x8xf32>
    %170 = vector.extract_strided_slice %156 {offsets = [0, 56], sizes = [1, 8], strides = [1, 1]} : vector<1x128xf32> to vector<1x8xf32>
    %171 = arith.addf %169, %170 : vector<1x8xf32>
    %172 = vector.extract_strided_slice %156 {offsets = [0, 64], sizes = [1, 8], strides = [1, 1]} : vector<1x128xf32> to vector<1x8xf32>
    %173 = arith.addf %171, %172 : vector<1x8xf32>
    %174 = vector.extract_strided_slice %156 {offsets = [0, 72], sizes = [1, 8], strides = [1, 1]} : vector<1x128xf32> to vector<1x8xf32>
    %175 = arith.addf %173, %174 : vector<1x8xf32>
    %176 = vector.extract_strided_slice %156 {offsets = [0, 80], sizes = [1, 8], strides = [1, 1]} : vector<1x128xf32> to vector<1x8xf32>
    %177 = arith.addf %175, %176 : vector<1x8xf32>
    %178 = vector.extract_strided_slice %156 {offsets = [0, 88], sizes = [1, 8], strides = [1, 1]} : vector<1x128xf32> to vector<1x8xf32>
    %179 = arith.addf %177, %178 : vector<1x8xf32>
    %180 = vector.extract_strided_slice %156 {offsets = [0, 96], sizes = [1, 8], strides = [1, 1]} : vector<1x128xf32> to vector<1x8xf32>
    %181 = arith.addf %179, %180 : vector<1x8xf32>
    %182 = vector.extract_strided_slice %156 {offsets = [0, 104], sizes = [1, 8], strides = [1, 1]} : vector<1x128xf32> to vector<1x8xf32>
    %183 = arith.addf %181, %182 : vector<1x8xf32>
    %184 = vector.extract_strided_slice %156 {offsets = [0, 112], sizes = [1, 8], strides = [1, 1]} : vector<1x128xf32> to vector<1x8xf32>
    %185 = arith.addf %183, %184 : vector<1x8xf32>
    %186 = vector.extract_strided_slice %156 {offsets = [0, 120], sizes = [1, 8], strides = [1, 1]} : vector<1x128xf32> to vector<1x8xf32>
    %187 = arith.addf %185, %186 : vector<1x8xf32>
    %cst_42 = arith.constant 6.250000e-02 : f32
    %188 = vector.broadcast %cst_42 : f32 to vector<1x8xf32>
    %189 = arith.mulf %187, %188 : vector<1x8xf32>
    %190 = tpu.concatenate %189, %189, %189, %189, %189, %189, %189, %189, %189, %189, %189, %189, %189, %189, %189, %189 in 1 : vector<1x8xf32>, vector<1x8xf32>, vector<1x8xf32>, vector<1x8xf32>, vector<1x8xf32>, vector<1x8xf32>, vector<1x8xf32>, vector<1x8xf32>, vector<1x8xf32>, vector<1x8xf32>, vector<1x8xf32>, vector<1x8xf32>, vector<1x8xf32>, vector<1x8xf32>, vector<1x8xf32>, vector<1x8xf32> -> vector<1x128xf32>
    %c0_43 = arith.constant 0 : index
    %c0_44 = arith.constant 0 : index
    %191 = vector.load %arg4[%c0_43, %c0_44] : memref<1x128xf32, #tpu.memory_space<vmem>>, vector<1x128xf32>
    %cst_45 = arith.constant 9.99999974E-6 : f32
    %192 = vector.broadcast %cst_45 : f32 to vector<1x128xf32>
    %193 = arith.addf %190, %192 : vector<1x128xf32>
    %194 = math.rsqrt %193 : vector<1x128xf32>
    %195 = arith.mulf %191, %194 : vector<1x128xf32>
    %196 = vector.broadcast %195 : vector<1x128xf32> to vector<32x128xf32>
    %197 = arith.mulf %151, %196 : vector<32x128xf32>
    %c0_46 = arith.constant 0 : index
    %c0_47 = arith.constant 0 : index
    %198 = vector.load %arg5[%c0_46, %c0_47] : memref<1x128xf32, #tpu.memory_space<vmem>>, vector<1x128xf32>
    %199 = vector.broadcast %198 : vector<1x128xf32> to vector<32x128xf32>
    %200 = arith.addf %197, %199 : vector<32x128xf32>
    %cst_48 = arith.constant 0.000000e+00 : f32
    %201 = vector.broadcast %cst_48 : f32 to vector<32x128xf32>
    %202 = arith.maximumf %200, %201 : vector<32x128xf32>
    %203 = vector.shape_cast %202 : vector<32x128xf32> to vector<2x16x128xf32>
    %c0_49 = arith.constant 0 : index
    %c1_50 = arith.constant 1 : index
    %c0_51 = arith.constant 0 : index
    %204 = vector.load %arg24[%c0_49, %c1_50, %c0_51] : memref<2x18x128xf32, #tpu.memory_space<vmem>>, vector<2x16x128xf32>
    tpu.vector_store %arg24[%c0_49, %c1_50, %c0_51], %203 {strides = array<i32>} : memref<2x18x128xf32, #tpu.memory_space<vmem>>, vector<2x16x128xf32>,
    %c0_52 = arith.constant 0 : index
    %c0_53 = arith.constant 0 : index
    %c0_54 = arith.constant 0 : index
    %205 = vector.load %arg24[%c0_52, %c0_53, %c0_54] : memref<2x18x128xf32, #tpu.memory_space<vmem>>, vector<2x16x128xf32>
    %206 = vector.shape_cast %205 : vector<2x16x128xf32> to vector<32x128xf32>
    %c0_55 = arith.constant 0 : index
    %c0_56 = arith.constant 0 : index
    %207 = vector.load %arg6[%c0_55, %c0_56] : memref<128x128xf32, #tpu.memory_space<vmem>>, vector<128x128xf32>
    %cst_57 = arith.constant dense<0.000000e+00> : vector<32x128xf32>
    %208 = tpu.matmul %206, %207, %cst_57 {dimension_numbers = #tpu.dot_dimension_numbers<[1], [0], [0], [1], [0, 0, 1, 1], [], []>} : vector<32x128xf32>, vector<128x128xf32>, vector<32x128xf32> -> vector<32x128xf32>
    %c0_58 = arith.constant 0 : index
    %c1_59 = arith.constant 1 : index
    %c0_60 = arith.constant 0 : index
    %209 = vector.load %arg24[%c0_58, %c1_59, %c0_60] : memref<2x18x128xf32, #tpu.memory_space<vmem>>, vector<2x16x128xf32>
    %210 = vector.shape_cast %209 : vector<2x16x128xf32> to vector<32x128xf32>
    %c0_61 = arith.constant 0 : index
    %c0_62 = arith.constant 0 : index
    %211 = vector.load %arg7[%c0_61, %c0_62] : memref<128x128xf32, #tpu.memory_space<vmem>>, vector<128x128xf32>
    %cst_63 = arith.constant dense<0.000000e+00> : vector<32x128xf32>
    %212 = tpu.matmul %210, %211, %cst_63 {dimension_numbers = #tpu.dot_dimension_numbers<[1], [0], [0], [1], [0, 0, 1, 1], [], []>} : vector<32x128xf32>, vector<128x128xf32>, vector<32x128xf32> -> vector<32x128xf32>
    %213 = arith.addf %208, %212 : vector<32x128xf32>
    %c0_64 = arith.constant 0 : index
    %c2_65 = arith.constant 2 : index
    %c0_66 = arith.constant 0 : index
    %214 = vector.load %arg24[%c0_64, %c2_65, %c0_66] : memref<2x18x128xf32, #tpu.memory_space<vmem>>, vector<2x16x128xf32>
    %215 = vector.shape_cast %214 : vector<2x16x128xf32> to vector<32x128xf32>
    %c0_67 = arith.constant 0 : index
    %c0_68 = arith.constant 0 : index
    %216 = vector.load %arg8[%c0_67, %c0_68] : memref<128x128xf32, #tpu.memory_space<vmem>>, vector<128x128xf32>
    %cst_69 = arith.constant dense<0.000000e+00> : vector<32x128xf32>
    %217 = tpu.matmul %215, %216, %cst_69 {dimension_numbers = #tpu.dot_dimension_numbers<[1], [0], [0], [1], [0, 0, 1, 1], [], []>} : vector<32x128xf32>, vector<128x128xf32>, vector<32x128xf32> -> vector<32x128xf32>
    %218 = arith.addf %213, %217 : vector<32x128xf32>
    %cst_70 = arith.constant dense<0.000000e+00> : vector<128xf32>
    %219 = vector.multi_reduction <add>, %218, %cst_70 [0] : vector<32x128xf32> to vector<128xf32>
    %220 = vector.shape_cast %219 : vector<128xf32> to vector<1x128xf32>
    %cst_71 = arith.constant 3.200000e+01 : f32
    %221 = vector.broadcast %cst_71 : f32 to vector<1x128xf32>
    %222 = arith.divf %220, %221 : vector<1x128xf32>
    %223 = vector.extract_strided_slice %222 {offsets = [0, 0], sizes = [1, 8], strides = [1, 1]} : vector<1x128xf32> to vector<1x8xf32>
    %224 = vector.extract_strided_slice %222 {offsets = [0, 8], sizes = [1, 8], strides = [1, 1]} : vector<1x128xf32> to vector<1x8xf32>
    %225 = arith.addf %223, %224 : vector<1x8xf32>
    %226 = vector.extract_strided_slice %222 {offsets = [0, 16], sizes = [1, 8], strides = [1, 1]} : vector<1x128xf32> to vector<1x8xf32>
    %227 = arith.addf %225, %226 : vector<1x8xf32>
    %228 = vector.extract_strided_slice %222 {offsets = [0, 24], sizes = [1, 8], strides = [1, 1]} : vector<1x128xf32> to vector<1x8xf32>
    %229 = arith.addf %227, %228 : vector<1x8xf32>
    %230 = vector.extract_strided_slice %222 {offsets = [0, 32], sizes = [1, 8], strides = [1, 1]} : vector<1x128xf32> to vector<1x8xf32>
    %231 = arith.addf %229, %230 : vector<1x8xf32>
    %232 = vector.extract_strided_slice %222 {offsets = [0, 40], sizes = [1, 8], strides = [1, 1]} : vector<1x128xf32> to vector<1x8xf32>
    %233 = arith.addf %231, %232 : vector<1x8xf32>
    %234 = vector.extract_strided_slice %222 {offsets = [0, 48], sizes = [1, 8], strides = [1, 1]} : vector<1x128xf32> to vector<1x8xf32>
    %235 = arith.addf %233, %234 : vector<1x8xf32>
    %236 = vector.extract_strided_slice %222 {offsets = [0, 56], sizes = [1, 8], strides = [1, 1]} : vector<1x128xf32> to vector<1x8xf32>
    %237 = arith.addf %235, %236 : vector<1x8xf32>
    %238 = vector.extract_strided_slice %222 {offsets = [0, 64], sizes = [1, 8], strides = [1, 1]} : vector<1x128xf32> to vector<1x8xf32>
    %239 = arith.addf %237, %238 : vector<1x8xf32>
    %240 = vector.extract_strided_slice %222 {offsets = [0, 72], sizes = [1, 8], strides = [1, 1]} : vector<1x128xf32> to vector<1x8xf32>
    %241 = arith.addf %239, %240 : vector<1x8xf32>
    %242 = vector.extract_strided_slice %222 {offsets = [0, 80], sizes = [1, 8], strides = [1, 1]} : vector<1x128xf32> to vector<1x8xf32>
    %243 = arith.addf %241, %242 : vector<1x8xf32>
    %244 = vector.extract_strided_slice %222 {offsets = [0, 88], sizes = [1, 8], strides = [1, 1]} : vector<1x128xf32> to vector<1x8xf32>
    %245 = arith.addf %243, %244 : vector<1x8xf32>
    %246 = vector.extract_strided_slice %222 {offsets = [0, 96], sizes = [1, 8], strides = [1, 1]} : vector<1x128xf32> to vector<1x8xf32>
    %247 = arith.addf %245, %246 : vector<1x8xf32>
    %248 = vector.extract_strided_slice %222 {offsets = [0, 104], sizes = [1, 8], strides = [1, 1]} : vector<1x128xf32> to vector<1x8xf32>
    %249 = arith.addf %247, %248 : vector<1x8xf32>
    %250 = vector.extract_strided_slice %222 {offsets = [0, 112], sizes = [1, 8], strides = [1, 1]} : vector<1x128xf32> to vector<1x8xf32>
    %251 = arith.addf %249, %250 : vector<1x8xf32>
    %252 = vector.extract_strided_slice %222 {offsets = [0, 120], sizes = [1, 8], strides = [1, 1]} : vector<1x128xf32> to vector<1x8xf32>
    %253 = arith.addf %251, %252 : vector<1x8xf32>
    %cst_72 = arith.constant 6.250000e-02 : f32
    %254 = vector.broadcast %cst_72 : f32 to vector<1x8xf32>
    %255 = arith.mulf %253, %254 : vector<1x8xf32>
    %256 = tpu.concatenate %255, %255, %255, %255, %255, %255, %255, %255, %255, %255, %255, %255, %255, %255, %255, %255 in 1 : vector<1x8xf32>, vector<1x8xf32>, vector<1x8xf32>, vector<1x8xf32>, vector<1x8xf32>, vector<1x8xf32>, vector<1x8xf32>, vector<1x8xf32>, vector<1x8xf32>, vector<1x8xf32>, vector<1x8xf32>, vector<1x8xf32>, vector<1x8xf32>, vector<1x8xf32>, vector<1x8xf32>, vector<1x8xf32> -> vector<1x128xf32>
    %257 = vector.broadcast %256 : vector<1x128xf32> to vector<32x128xf32>
    %258 = arith.subf %218, %257 : vector<32x128xf32>
    %259 = arith.mulf %258, %258 : vector<32x128xf32>
    %cst_73 = arith.constant dense<0.000000e+00> : vector<128xf32>
    %260 = vector.multi_reduction <add>, %259, %cst_73 [0] : vector<32x128xf32> to vector<128xf32>
    %261 = vector.shape_cast %260 : vector<128xf32> to vector<1x128xf32>
    %cst_74 = arith.constant 3.200000e+01 : f32
    %262 = vector.broadcast %cst_74 : f32 to vector<1x128xf32>
    %263 = arith.divf %261, %262 : vector<1x128xf32>
    %264 = vector.extract_strided_slice %263 {offsets = [0, 0], sizes = [1, 8], strides = [1, 1]} : vector<1x128xf32> to vector<1x8xf32>
    %265 = vector.extract_strided_slice %263 {offsets = [0, 8], sizes = [1, 8], strides = [1, 1]} : vector<1x128xf32> to vector<1x8xf32>
    %266 = arith.addf %264, %265 : vector<1x8xf32>
    %267 = vector.extract_strided_slice %263 {offsets = [0, 16], sizes = [1, 8], strides = [1, 1]} : vector<1x128xf32> to vector<1x8xf32>
    %268 = arith.addf %266, %267 : vector<1x8xf32>
    %269 = vector.extract_strided_slice %263 {offsets = [0, 24], sizes = [1, 8], strides = [1, 1]} : vector<1x128xf32> to vector<1x8xf32>
    %270 = arith.addf %268, %269 : vector<1x8xf32>
    %271 = vector.extract_strided_slice %263 {offsets = [0, 32], sizes = [1, 8], strides = [1, 1]} : vector<1x128xf32> to vector<1x8xf32>
    %272 = arith.addf %270, %271 : vector<1x8xf32>
    %273 = vector.extract_strided_slice %263 {offsets = [0, 40], sizes = [1, 8], strides = [1, 1]} : vector<1x128xf32> to vector<1x8xf32>
    %274 = arith.addf %272, %273 : vector<1x8xf32>
    %275 = vector.extract_strided_slice %263 {offsets = [0, 48], sizes = [1, 8], strides = [1, 1]} : vector<1x128xf32> to vector<1x8xf32>
    %276 = arith.addf %274, %275 : vector<1x8xf32>
    %277 = vector.extract_strided_slice %263 {offsets = [0, 56], sizes = [1, 8], strides = [1, 1]} : vector<1x128xf32> to vector<1x8xf32>
    %278 = arith.addf %276, %277 : vector<1x8xf32>
    %279 = vector.extract_strided_slice %263 {offsets = [0, 64], sizes = [1, 8], strides = [1, 1]} : vector<1x128xf32> to vector<1x8xf32>
    %280 = arith.addf %278, %279 : vector<1x8xf32>
    %281 = vector.extract_strided_slice %263 {offsets = [0, 72], sizes = [1, 8], strides = [1, 1]} : vector<1x128xf32> to vector<1x8xf32>
    %282 = arith.addf %280, %281 : vector<1x8xf32>
    %283 = vector.extract_strided_slice %263 {offsets = [0, 80], sizes = [1, 8], strides = [1, 1]} : vector<1x128xf32> to vector<1x8xf32>
    %284 = arith.addf %282, %283 : vector<1x8xf32>
    %285 = vector.extract_strided_slice %263 {offsets = [0, 88], sizes = [1, 8], strides = [1, 1]} : vector<1x128xf32> to vector<1x8xf32>
    %286 = arith.addf %284, %285 : vector<1x8xf32>
    %287 = vector.extract_strided_slice %263 {offsets = [0, 96], sizes = [1, 8], strides = [1, 1]} : vector<1x128xf32> to vector<1x8xf32>
    %288 = arith.addf %286, %287 : vector<1x8xf32>
    %289 = vector.extract_strided_slice %263 {offsets = [0, 104], sizes = [1, 8], strides = [1, 1]} : vector<1x128xf32> to vector<1x8xf32>
    %290 = arith.addf %288, %289 : vector<1x8xf32>
    %291 = vector.extract_strided_slice %263 {offsets = [0, 112], sizes = [1, 8], strides = [1, 1]} : vector<1x128xf32> to vector<1x8xf32>
    %292 = arith.addf %290, %291 : vector<1x8xf32>
    %293 = vector.extract_strided_slice %263 {offsets = [0, 120], sizes = [1, 8], strides = [1, 1]} : vector<1x128xf32> to vector<1x8xf32>
    %294 = arith.addf %292, %293 : vector<1x8xf32>
    %cst_75 = arith.constant 6.250000e-02 : f32
    %295 = vector.broadcast %cst_75 : f32 to vector<1x8xf32>
    %296 = arith.mulf %294, %295 : vector<1x8xf32>
    %297 = tpu.concatenate %296, %296, %296, %296, %296, %296, %296, %296, %296, %296, %296, %296, %296, %296, %296, %296 in 1 : vector<1x8xf32>, vector<1x8xf32>, vector<1x8xf32>, vector<1x8xf32>, vector<1x8xf32>, vector<1x8xf32>, vector<1x8xf32>, vector<1x8xf32>, vector<1x8xf32>, vector<1x8xf32>, vector<1x8xf32>, vector<1x8xf32>, vector<1x8xf32>, vector<1x8xf32>, vector<1x8xf32>, vector<1x8xf32> -> vector<1x128xf32>
    %c0_76 = arith.constant 0 : index
    %c0_77 = arith.constant 0 : index
    %298 = vector.load %arg9[%c0_76, %c0_77] : memref<1x128xf32, #tpu.memory_space<vmem>>, vector<1x128xf32>
    %cst_78 = arith.constant 9.99999974E-6 : f32
    %299 = vector.broadcast %cst_78 : f32 to vector<1x128xf32>
    %300 = arith.addf %297, %299 : vector<1x128xf32>
    %301 = math.rsqrt %300 : vector<1x128xf32>
    %302 = arith.mulf %298, %301 : vector<1x128xf32>
    %303 = vector.broadcast %302 : vector<1x128xf32> to vector<32x128xf32>
    %304 = arith.mulf %258, %303 : vector<32x128xf32>
    %c0_79 = arith.constant 0 : index
    %c0_80 = arith.constant 0 : index
    %305 = vector.load %arg10[%c0_79, %c0_80] : memref<1x128xf32, #tpu.memory_space<vmem>>, vector<1x128xf32>
    %306 = vector.broadcast %305 : vector<1x128xf32> to vector<32x128xf32>
    %307 = arith.addf %304, %306 : vector<32x128xf32>
    %308 = arith.addf %307, %111 : vector<32x128xf32>
    %cst_81 = arith.constant 0.000000e+00 : f32
    %309 = vector.broadcast %cst_81 : f32 to vector<32x128xf32>
    %310 = arith.maximumf %308, %309 : vector<32x128xf32>
    %311 = vector.shape_cast %310 : vector<32x128xf32> to vector<2x16x128xf32>
    %c0_82 = arith.constant 0 : index
    %c1_83 = arith.constant 1 : index
    %c0_84 = arith.constant 0 : index
    %312 = vector.load %arg24[%c0_82, %c1_83, %c0_84] : memref<2x18x128xf32, #tpu.memory_space<vmem>>, vector<2x16x128xf32>
    tpu.vector_store %arg24[%c0_82, %c1_83, %c0_84], %311 {strides = array<i32>} : memref<2x18x128xf32, #tpu.memory_space<vmem>>, vector<2x16x128xf32>,
    %c0_85 = arith.constant 0 : index
    %c1_86 = arith.constant 1 : index
    %c0_87 = arith.constant 0 : index
    %313 = vector.load %arg24[%c0_85, %c1_86, %c0_87] : memref<2x18x128xf32, #tpu.memory_space<vmem>>, vector<2x16x128xf32>
    %314 = vector.shape_cast %313 : vector<2x16x128xf32> to vector<32x128xf32>
    %c0_88 = arith.constant 0 : index
    %c0_89 = arith.constant 0 : index
    %315 = vector.load %arg12[%c0_88, %c0_89] : memref<128x128xf32, #tpu.memory_space<vmem>>, vector<128x128xf32>
    %cst_90 = arith.constant dense<0.000000e+00> : vector<32x128xf32>
    %316 = tpu.matmul %314, %315, %cst_90 {dimension_numbers = #tpu.dot_dimension_numbers<[1], [0], [0], [1], [0, 0, 1, 1], [], []>} : vector<32x128xf32>, vector<128x128xf32>, vector<32x128xf32> -> vector<32x128xf32>
    %c0_91 = arith.constant 0 : index
    %c0_92 = arith.constant 0 : index
    %c0_93 = arith.constant 0 : index
    %317 = vector.load %arg24[%c0_91, %c0_92, %c0_93] : memref<2x18x128xf32, #tpu.memory_space<vmem>>, vector<2x16x128xf32>
    %318 = vector.shape_cast %317 : vector<2x16x128xf32> to vector<32x128xf32>
    %c0_94 = arith.constant 0 : index
    %c0_95 = arith.constant 0 : index
    %319 = vector.load %arg11[%c0_94, %c0_95] : memref<128x128xf32, #tpu.memory_space<vmem>>, vector<128x128xf32>
    %cst_96 = arith.constant dense<0.000000e+00> : vector<32x128xf32>
    %320 = tpu.matmul %318, %319, %cst_96 {dimension_numbers = #tpu.dot_dimension_numbers<[1], [0], [0], [1], [0, 0, 1, 1], [], []>} : vector<32x128xf32>, vector<128x128xf32>, vector<32x128xf32> -> vector<32x128xf32>
    %c0_97 = arith.constant 0 : index
    %c2_98 = arith.constant 2 : index
    %c0_99 = arith.constant 0 : index
    %321 = vector.load %arg24[%c0_97, %c2_98, %c0_99] : memref<2x18x128xf32, #tpu.memory_space<vmem>>, vector<2x16x128xf32>
    %322 = vector.shape_cast %321 : vector<2x16x128xf32> to vector<32x128xf32>
    %c0_100 = arith.constant 0 : index
    %c0_101 = arith.constant 0 : index
    %323 = vector.load %arg13[%c0_100, %c0_101] : memref<128x128xf32, #tpu.memory_space<vmem>>, vector<128x128xf32>
    %cst_102 = arith.constant dense<0.000000e+00> : vector<32x128xf32>
    %324 = tpu.matmul %322, %323, %cst_102 {dimension_numbers = #tpu.dot_dimension_numbers<[1], [0], [0], [1], [0, 0, 1, 1], [], []>} : vector<32x128xf32>, vector<128x128xf32>, vector<32x128xf32> -> vector<32x128xf32>
    %325 = arith.addf %320, %324 : vector<32x128xf32>
    %326 = arith.addf %325, %316 : vector<32x128xf32>
    %cst_103 = arith.constant dense<0.000000e+00> : vector<128xf32>
    %327 = vector.multi_reduction <add>, %326, %cst_103 [0] : vector<32x128xf32> to vector<128xf32>
    %328 = vector.shape_cast %327 : vector<128xf32> to vector<1x128xf32>
    %cst_104 = arith.constant 3.200000e+01 : f32
    %329 = vector.broadcast %cst_104 : f32 to vector<1x128xf32>
    %330 = arith.divf %328, %329 : vector<1x128xf32>
    %331 = vector.extract_strided_slice %330 {offsets = [0, 0], sizes = [1, 8], strides = [1, 1]} : vector<1x128xf32> to vector<1x8xf32>
    %332 = vector.extract_strided_slice %330 {offsets = [0, 8], sizes = [1, 8], strides = [1, 1]} : vector<1x128xf32> to vector<1x8xf32>
    %333 = arith.addf %331, %332 : vector<1x8xf32>
    %334 = vector.extract_strided_slice %330 {offsets = [0, 16], sizes = [1, 8], strides = [1, 1]} : vector<1x128xf32> to vector<1x8xf32>
    %335 = arith.addf %333, %334 : vector<1x8xf32>
    %336 = vector.extract_strided_slice %330 {offsets = [0, 24], sizes = [1, 8], strides = [1, 1]} : vector<1x128xf32> to vector<1x8xf32>
    %337 = arith.addf %335, %336 : vector<1x8xf32>
    %338 = vector.extract_strided_slice %330 {offsets = [0, 32], sizes = [1, 8], strides = [1, 1]} : vector<1x128xf32> to vector<1x8xf32>
    %339 = arith.addf %337, %338 : vector<1x8xf32>
    %340 = vector.extract_strided_slice %330 {offsets = [0, 40], sizes = [1, 8], strides = [1, 1]} : vector<1x128xf32> to vector<1x8xf32>
    %341 = arith.addf %339, %340 : vector<1x8xf32>
    %342 = vector.extract_strided_slice %330 {offsets = [0, 48], sizes = [1, 8], strides = [1, 1]} : vector<1x128xf32> to vector<1x8xf32>
    %343 = arith.addf %341, %342 : vector<1x8xf32>
    %344 = vector.extract_strided_slice %330 {offsets = [0, 56], sizes = [1, 8], strides = [1, 1]} : vector<1x128xf32> to vector<1x8xf32>
    %345 = arith.addf %343, %344 : vector<1x8xf32>
    %346 = vector.extract_strided_slice %330 {offsets = [0, 64], sizes = [1, 8], strides = [1, 1]} : vector<1x128xf32> to vector<1x8xf32>
    %347 = arith.addf %345, %346 : vector<1x8xf32>
    %348 = vector.extract_strided_slice %330 {offsets = [0, 72], sizes = [1, 8], strides = [1, 1]} : vector<1x128xf32> to vector<1x8xf32>
    %349 = arith.addf %347, %348 : vector<1x8xf32>
    %350 = vector.extract_strided_slice %330 {offsets = [0, 80], sizes = [1, 8], strides = [1, 1]} : vector<1x128xf32> to vector<1x8xf32>
    %351 = arith.addf %349, %350 : vector<1x8xf32>
    %352 = vector.extract_strided_slice %330 {offsets = [0, 88], sizes = [1, 8], strides = [1, 1]} : vector<1x128xf32> to vector<1x8xf32>
    %353 = arith.addf %351, %352 : vector<1x8xf32>
    %354 = vector.extract_strided_slice %330 {offsets = [0, 96], sizes = [1, 8], strides = [1, 1]} : vector<1x128xf32> to vector<1x8xf32>
    %355 = arith.addf %353, %354 : vector<1x8xf32>
    %356 = vector.extract_strided_slice %330 {offsets = [0, 104], sizes = [1, 8], strides = [1, 1]} : vector<1x128xf32> to vector<1x8xf32>
    %357 = arith.addf %355, %356 : vector<1x8xf32>
    %358 = vector.extract_strided_slice %330 {offsets = [0, 112], sizes = [1, 8], strides = [1, 1]} : vector<1x128xf32> to vector<1x8xf32>
    %359 = arith.addf %357, %358 : vector<1x8xf32>
    %360 = vector.extract_strided_slice %330 {offsets = [0, 120], sizes = [1, 8], strides = [1, 1]} : vector<1x128xf32> to vector<1x8xf32>
    %361 = arith.addf %359, %360 : vector<1x8xf32>
    %cst_105 = arith.constant 6.250000e-02 : f32
    %362 = vector.broadcast %cst_105 : f32 to vector<1x8xf32>
    %363 = arith.mulf %361, %362 : vector<1x8xf32>
    %364 = tpu.concatenate %363, %363, %363, %363, %363, %363, %363, %363, %363, %363, %363, %363, %363, %363, %363, %363 in 1 : vector<1x8xf32>, vector<1x8xf32>, vector<1x8xf32>, vector<1x8xf32>, vector<1x8xf32>, vector<1x8xf32>, vector<1x8xf32>, vector<1x8xf32>, vector<1x8xf32>, vector<1x8xf32>, vector<1x8xf32>, vector<1x8xf32>, vector<1x8xf32>, vector<1x8xf32>, vector<1x8xf32>, vector<1x8xf32> -> vector<1x128xf32>
    %365 = vector.broadcast %364 : vector<1x128xf32> to vector<32x128xf32>
    %366 = arith.subf %326, %365 : vector<32x128xf32>
    %367 = arith.mulf %366, %366 : vector<32x128xf32>
    %cst_106 = arith.constant dense<0.000000e+00> : vector<128xf32>
    %368 = vector.multi_reduction <add>, %367, %cst_106 [0] : vector<32x128xf32> to vector<128xf32>
    %369 = vector.shape_cast %368 : vector<128xf32> to vector<1x128xf32>
    %cst_107 = arith.constant 3.200000e+01 : f32
    %370 = vector.broadcast %cst_107 : f32 to vector<1x128xf32>
    %371 = arith.divf %369, %370 : vector<1x128xf32>
    %372 = vector.extract_strided_slice %371 {offsets = [0, 0], sizes = [1, 8], strides = [1, 1]} : vector<1x128xf32> to vector<1x8xf32>
    %373 = vector.extract_strided_slice %371 {offsets = [0, 8], sizes = [1, 8], strides = [1, 1]} : vector<1x128xf32> to vector<1x8xf32>
    %374 = arith.addf %372, %373 : vector<1x8xf32>
    %375 = vector.extract_strided_slice %371 {offsets = [0, 16], sizes = [1, 8], strides = [1, 1]} : vector<1x128xf32> to vector<1x8xf32>
    %376 = arith.addf %374, %375 : vector<1x8xf32>
    %377 = vector.extract_strided_slice %371 {offsets = [0, 24], sizes = [1, 8], strides = [1, 1]} : vector<1x128xf32> to vector<1x8xf32>
    %378 = arith.addf %376, %377 : vector<1x8xf32>
    %379 = vector.extract_strided_slice %371 {offsets = [0, 32], sizes = [1, 8], strides = [1, 1]} : vector<1x128xf32> to vector<1x8xf32>
    %380 = arith.addf %378, %379 : vector<1x8xf32>
    %381 = vector.extract_strided_slice %371 {offsets = [0, 40], sizes = [1, 8], strides = [1, 1]} : vector<1x128xf32> to vector<1x8xf32>
    %382 = arith.addf %380, %381 : vector<1x8xf32>
    %383 = vector.extract_strided_slice %371 {offsets = [0, 48], sizes = [1, 8], strides = [1, 1]} : vector<1x128xf32> to vector<1x8xf32>
    %384 = arith.addf %382, %383 : vector<1x8xf32>
    %385 = vector.extract_strided_slice %371 {offsets = [0, 56], sizes = [1, 8], strides = [1, 1]} : vector<1x128xf32> to vector<1x8xf32>
    %386 = arith.addf %384, %385 : vector<1x8xf32>
    %387 = vector.extract_strided_slice %371 {offsets = [0, 64], sizes = [1, 8], strides = [1, 1]} : vector<1x128xf32> to vector<1x8xf32>
    %388 = arith.addf %386, %387 : vector<1x8xf32>
    %389 = vector.extract_strided_slice %371 {offsets = [0, 72], sizes = [1, 8], strides = [1, 1]} : vector<1x128xf32> to vector<1x8xf32>
    %390 = arith.addf %388, %389 : vector<1x8xf32>
    %391 = vector.extract_strided_slice %371 {offsets = [0, 80], sizes = [1, 8], strides = [1, 1]} : vector<1x128xf32> to vector<1x8xf32>
    %392 = arith.addf %390, %391 : vector<1x8xf32>
    %393 = vector.extract_strided_slice %371 {offsets = [0, 88], sizes = [1, 8], strides = [1, 1]} : vector<1x128xf32> to vector<1x8xf32>
    %394 = arith.addf %392, %393 : vector<1x8xf32>
    %395 = vector.extract_strided_slice %371 {offsets = [0, 96], sizes = [1, 8], strides = [1, 1]} : vector<1x128xf32> to vector<1x8xf32>
    %396 = arith.addf %394, %395 : vector<1x8xf32>
    %397 = vector.extract_strided_slice %371 {offsets = [0, 104], sizes = [1, 8], strides = [1, 1]} : vector<1x128xf32> to vector<1x8xf32>
    %398 = arith.addf %396, %397 : vector<1x8xf32>
    %399 = vector.extract_strided_slice %371 {offsets = [0, 112], sizes = [1, 8], strides = [1, 1]} : vector<1x128xf32> to vector<1x8xf32>
    %400 = arith.addf %398, %399 : vector<1x8xf32>
    %401 = vector.extract_strided_slice %371 {offsets = [0, 120], sizes = [1, 8], strides = [1, 1]} : vector<1x128xf32> to vector<1x8xf32>
    %402 = arith.addf %400, %401 : vector<1x8xf32>
    %cst_108 = arith.constant 6.250000e-02 : f32
    %403 = vector.broadcast %cst_108 : f32 to vector<1x8xf32>
    %404 = arith.mulf %402, %403 : vector<1x8xf32>
    %405 = tpu.concatenate %404, %404, %404, %404, %404, %404, %404, %404, %404, %404, %404, %404, %404, %404, %404, %404 in 1 : vector<1x8xf32>, vector<1x8xf32>, vector<1x8xf32>, vector<1x8xf32>, vector<1x8xf32>, vector<1x8xf32>, vector<1x8xf32>, vector<1x8xf32>, vector<1x8xf32>, vector<1x8xf32>, vector<1x8xf32>, vector<1x8xf32>, vector<1x8xf32>, vector<1x8xf32>, vector<1x8xf32>, vector<1x8xf32> -> vector<1x128xf32>
    %c0_109 = arith.constant 0 : index
    %c0_110 = arith.constant 0 : index
    %406 = vector.load %arg14[%c0_109, %c0_110] : memref<1x128xf32, #tpu.memory_space<vmem>>, vector<1x128xf32>
    %cst_111 = arith.constant 9.99999974E-6 : f32
    %407 = vector.broadcast %cst_111 : f32 to vector<1x128xf32>
    %408 = arith.addf %405, %407 : vector<1x128xf32>
    %409 = math.rsqrt %408 : vector<1x128xf32>
    %410 = arith.mulf %406, %409 : vector<1x128xf32>
    %411 = vector.broadcast %410 : vector<1x128xf32> to vector<32x128xf32>
    %412 = arith.mulf %366, %411 : vector<32x128xf32>
    %c0_112 = arith.constant 0 : index
    %c0_113 = arith.constant 0 : index
    %413 = vector.load %arg15[%c0_112, %c0_113] : memref<1x128xf32, #tpu.memory_space<vmem>>, vector<1x128xf32>
    %414 = vector.broadcast %413 : vector<1x128xf32> to vector<32x128xf32>
    %415 = arith.addf %412, %414 : vector<32x128xf32>
    %cst_114 = arith.constant 0.000000e+00 : f32
    %416 = vector.broadcast %cst_114 : f32 to vector<32x128xf32>
    %417 = arith.maximumf %415, %416 : vector<32x128xf32>
    %418 = vector.shape_cast %417 : vector<32x128xf32> to vector<2x16x128xf32>
    %c0_115 = arith.constant 0 : index
    %c1_116 = arith.constant 1 : index
    %c0_117 = arith.constant 0 : index
    %419 = vector.load %arg24[%c0_115, %c1_116, %c0_117] : memref<2x18x128xf32, #tpu.memory_space<vmem>>, vector<2x16x128xf32>
    tpu.vector_store %arg24[%c0_115, %c1_116, %c0_117], %418 {strides = array<i32>} : memref<2x18x128xf32, #tpu.memory_space<vmem>>, vector<2x16x128xf32>,
    %c0_118 = arith.constant 0 : index
    %c0_119 = arith.constant 0 : index
    %c0_120 = arith.constant 0 : index
    %420 = vector.load %arg24[%c0_118, %c0_119, %c0_120] : memref<2x18x128xf32, #tpu.memory_space<vmem>>, vector<2x16x128xf32>
    %421 = vector.shape_cast %420 : vector<2x16x128xf32> to vector<32x128xf32>
    %c0_121 = arith.constant 0 : index
    %c0_122 = arith.constant 0 : index
    %422 = vector.load %arg16[%c0_121, %c0_122] : memref<128x128xf32, #tpu.memory_space<vmem>>, vector<128x128xf32>
    %cst_123 = arith.constant dense<0.000000e+00> : vector<32x128xf32>
    %423 = tpu.matmul %421, %422, %cst_123 {dimension_numbers = #tpu.dot_dimension_numbers<[1], [0], [0], [1], [0, 0, 1, 1], [], []>} : vector<32x128xf32>, vector<128x128xf32>, vector<32x128xf32> -> vector<32x128xf32>
    %c0_124 = arith.constant 0 : index
    %c1_125 = arith.constant 1 : index
    %c0_126 = arith.constant 0 : index
    %424 = vector.load %arg24[%c0_124, %c1_125, %c0_126] : memref<2x18x128xf32, #tpu.memory_space<vmem>>, vector<2x16x128xf32>
    %425 = vector.shape_cast %424 : vector<2x16x128xf32> to vector<32x128xf32>
    %c0_127 = arith.constant 0 : index
    %c0_128 = arith.constant 0 : index
    %426 = vector.load %arg17[%c0_127, %c0_128] : memref<128x128xf32, #tpu.memory_space<vmem>>, vector<128x128xf32>
    %cst_129 = arith.constant dense<0.000000e+00> : vector<32x128xf32>
    %427 = tpu.matmul %425, %426, %cst_129 {dimension_numbers = #tpu.dot_dimension_numbers<[1], [0], [0], [1], [0, 0, 1, 1], [], []>} : vector<32x128xf32>, vector<128x128xf32>, vector<32x128xf32> -> vector<32x128xf32>
    %428 = arith.addf %423, %427 : vector<32x128xf32>
    %c0_130 = arith.constant 0 : index
    %c2_131 = arith.constant 2 : index
    %c0_132 = arith.constant 0 : index
    %429 = vector.load %arg24[%c0_130, %c2_131, %c0_132] : memref<2x18x128xf32, #tpu.memory_space<vmem>>, vector<2x16x128xf32>
    %430 = vector.shape_cast %429 : vector<2x16x128xf32> to vector<32x128xf32>
    %c0_133 = arith.constant 0 : index
    %c0_134 = arith.constant 0 : index
    %431 = vector.load %arg18[%c0_133, %c0_134] : memref<128x128xf32, #tpu.memory_space<vmem>>, vector<128x128xf32>
    %cst_135 = arith.constant dense<0.000000e+00> : vector<32x128xf32>
    %432 = tpu.matmul %430, %431, %cst_135 {dimension_numbers = #tpu.dot_dimension_numbers<[1], [0], [0], [1], [0, 0, 1, 1], [], []>} : vector<32x128xf32>, vector<128x128xf32>, vector<32x128xf32> -> vector<32x128xf32>
    %433 = arith.addf %428, %432 : vector<32x128xf32>
    %cst_136 = arith.constant dense<0.000000e+00> : vector<128xf32>
    %434 = vector.multi_reduction <add>, %433, %cst_136 [0] : vector<32x128xf32> to vector<128xf32>
    %435 = vector.shape_cast %434 : vector<128xf32> to vector<1x128xf32>
    %cst_137 = arith.constant 3.200000e+01 : f32
    %436 = vector.broadcast %cst_137 : f32 to vector<1x128xf32>
    %437 = arith.divf %435, %436 : vector<1x128xf32>
    %438 = vector.extract_strided_slice %437 {offsets = [0, 0], sizes = [1, 8], strides = [1, 1]} : vector<1x128xf32> to vector<1x8xf32>
    %439 = vector.extract_strided_slice %437 {offsets = [0, 8], sizes = [1, 8], strides = [1, 1]} : vector<1x128xf32> to vector<1x8xf32>
    %440 = arith.addf %438, %439 : vector<1x8xf32>
    %441 = vector.extract_strided_slice %437 {offsets = [0, 16], sizes = [1, 8], strides = [1, 1]} : vector<1x128xf32> to vector<1x8xf32>
    %442 = arith.addf %440, %441 : vector<1x8xf32>
    %443 = vector.extract_strided_slice %437 {offsets = [0, 24], sizes = [1, 8], strides = [1, 1]} : vector<1x128xf32> to vector<1x8xf32>
    %444 = arith.addf %442, %443 : vector<1x8xf32>
    %445 = vector.extract_strided_slice %437 {offsets = [0, 32], sizes = [1, 8], strides = [1, 1]} : vector<1x128xf32> to vector<1x8xf32>
    %446 = arith.addf %444, %445 : vector<1x8xf32>
    %447 = vector.extract_strided_slice %437 {offsets = [0, 40], sizes = [1, 8], strides = [1, 1]} : vector<1x128xf32> to vector<1x8xf32>
    %448 = arith.addf %446, %447 : vector<1x8xf32>
    %449 = vector.extract_strided_slice %437 {offsets = [0, 48], sizes = [1, 8], strides = [1, 1]} : vector<1x128xf32> to vector<1x8xf32>
    %450 = arith.addf %448, %449 : vector<1x8xf32>
    %451 = vector.extract_strided_slice %437 {offsets = [0, 56], sizes = [1, 8], strides = [1, 1]} : vector<1x128xf32> to vector<1x8xf32>
    %452 = arith.addf %450, %451 : vector<1x8xf32>
    %453 = vector.extract_strided_slice %437 {offsets = [0, 64], sizes = [1, 8], strides = [1, 1]} : vector<1x128xf32> to vector<1x8xf32>
    %454 = arith.addf %452, %453 : vector<1x8xf32>
    %455 = vector.extract_strided_slice %437 {offsets = [0, 72], sizes = [1, 8], strides = [1, 1]} : vector<1x128xf32> to vector<1x8xf32>
    %456 = arith.addf %454, %455 : vector<1x8xf32>
    %457 = vector.extract_strided_slice %437 {offsets = [0, 80], sizes = [1, 8], strides = [1, 1]} : vector<1x128xf32> to vector<1x8xf32>
    %458 = arith.addf %456, %457 : vector<1x8xf32>
    %459 = vector.extract_strided_slice %437 {offsets = [0, 88], sizes = [1, 8], strides = [1, 1]} : vector<1x128xf32> to vector<1x8xf32>
    %460 = arith.addf %458, %459 : vector<1x8xf32>
    %461 = vector.extract_strided_slice %437 {offsets = [0, 96], sizes = [1, 8], strides = [1, 1]} : vector<1x128xf32> to vector<1x8xf32>
    %462 = arith.addf %460, %461 : vector<1x8xf32>
    %463 = vector.extract_strided_slice %437 {offsets = [0, 104], sizes = [1, 8], strides = [1, 1]} : vector<1x128xf32> to vector<1x8xf32>
    %464 = arith.addf %462, %463 : vector<1x8xf32>
    %465 = vector.extract_strided_slice %437 {offsets = [0, 112], sizes = [1, 8], strides = [1, 1]} : vector<1x128xf32> to vector<1x8xf32>
    %466 = arith.addf %464, %465 : vector<1x8xf32>
    %467 = vector.extract_strided_slice %437 {offsets = [0, 120], sizes = [1, 8], strides = [1, 1]} : vector<1x128xf32> to vector<1x8xf32>
    %468 = arith.addf %466, %467 : vector<1x8xf32>
    %cst_138 = arith.constant 6.250000e-02 : f32
    %469 = vector.broadcast %cst_138 : f32 to vector<1x8xf32>
    %470 = arith.mulf %468, %469 : vector<1x8xf32>
    %471 = tpu.concatenate %470, %470, %470, %470, %470, %470, %470, %470, %470, %470, %470, %470, %470, %470, %470, %470 in 1 : vector<1x8xf32>, vector<1x8xf32>, vector<1x8xf32>, vector<1x8xf32>, vector<1x8xf32>, vector<1x8xf32>, vector<1x8xf32>, vector<1x8xf32>, vector<1x8xf32>, vector<1x8xf32>, vector<1x8xf32>, vector<1x8xf32>, vector<1x8xf32>, vector<1x8xf32>, vector<1x8xf32>, vector<1x8xf32> -> vector<1x128xf32>
    %472 = vector.broadcast %471 : vector<1x128xf32> to vector<32x128xf32>
    %473 = arith.subf %433, %472 : vector<32x128xf32>
    %474 = arith.mulf %473, %473 : vector<32x128xf32>
    %cst_139 = arith.constant dense<0.000000e+00> : vector<128xf32>
    %475 = vector.multi_reduction <add>, %474, %cst_139 [0] : vector<32x128xf32> to vector<128xf32>
    %476 = vector.shape_cast %475 : vector<128xf32> to vector<1x128xf32>
    %cst_140 = arith.constant 3.200000e+01 : f32
    %477 = vector.broadcast %cst_140 : f32 to vector<1x128xf32>
    %478 = arith.divf %476, %477 : vector<1x128xf32>
    %479 = vector.extract_strided_slice %478 {offsets = [0, 0], sizes = [1, 8], strides = [1, 1]} : vector<1x128xf32> to vector<1x8xf32>
    %480 = vector.extract_strided_slice %478 {offsets = [0, 8], sizes = [1, 8], strides = [1, 1]} : vector<1x128xf32> to vector<1x8xf32>
    %481 = arith.addf %479, %480 : vector<1x8xf32>
    %482 = vector.extract_strided_slice %478 {offsets = [0, 16], sizes = [1, 8], strides = [1, 1]} : vector<1x128xf32> to vector<1x8xf32>
    %483 = arith.addf %481, %482 : vector<1x8xf32>
    %484 = vector.extract_strided_slice %478 {offsets = [0, 24], sizes = [1, 8], strides = [1, 1]} : vector<1x128xf32> to vector<1x8xf32>
    %485 = arith.addf %483, %484 : vector<1x8xf32>
    %486 = vector.extract_strided_slice %478 {offsets = [0, 32], sizes = [1, 8], strides = [1, 1]} : vector<1x128xf32> to vector<1x8xf32>
    %487 = arith.addf %485, %486 : vector<1x8xf32>
    %488 = vector.extract_strided_slice %478 {offsets = [0, 40], sizes = [1, 8], strides = [1, 1]} : vector<1x128xf32> to vector<1x8xf32>
    %489 = arith.addf %487, %488 : vector<1x8xf32>
    %490 = vector.extract_strided_slice %478 {offsets = [0, 48], sizes = [1, 8], strides = [1, 1]} : vector<1x128xf32> to vector<1x8xf32>
    %491 = arith.addf %489, %490 : vector<1x8xf32>
    %492 = vector.extract_strided_slice %478 {offsets = [0, 56], sizes = [1, 8], strides = [1, 1]} : vector<1x128xf32> to vector<1x8xf32>
    %493 = arith.addf %491, %492 : vector<1x8xf32>
    %494 = vector.extract_strided_slice %478 {offsets = [0, 64], sizes = [1, 8], strides = [1, 1]} : vector<1x128xf32> to vector<1x8xf32>
    %495 = arith.addf %493, %494 : vector<1x8xf32>
    %496 = vector.extract_strided_slice %478 {offsets = [0, 72], sizes = [1, 8], strides = [1, 1]} : vector<1x128xf32> to vector<1x8xf32>
    %497 = arith.addf %495, %496 : vector<1x8xf32>
    %498 = vector.extract_strided_slice %478 {offsets = [0, 80], sizes = [1, 8], strides = [1, 1]} : vector<1x128xf32> to vector<1x8xf32>
    %499 = arith.addf %497, %498 : vector<1x8xf32>
    %500 = vector.extract_strided_slice %478 {offsets = [0, 88], sizes = [1, 8], strides = [1, 1]} : vector<1x128xf32> to vector<1x8xf32>
    %501 = arith.addf %499, %500 : vector<1x8xf32>
    %502 = vector.extract_strided_slice %478 {offsets = [0, 96], sizes = [1, 8], strides = [1, 1]} : vector<1x128xf32> to vector<1x8xf32>
    %503 = arith.addf %501, %502 : vector<1x8xf32>
    %504 = vector.extract_strided_slice %478 {offsets = [0, 104], sizes = [1, 8], strides = [1, 1]} : vector<1x128xf32> to vector<1x8xf32>
    %505 = arith.addf %503, %504 : vector<1x8xf32>
    %506 = vector.extract_strided_slice %478 {offsets = [0, 112], sizes = [1, 8], strides = [1, 1]} : vector<1x128xf32> to vector<1x8xf32>
    %507 = arith.addf %505, %506 : vector<1x8xf32>
    %508 = vector.extract_strided_slice %478 {offsets = [0, 120], sizes = [1, 8], strides = [1, 1]} : vector<1x128xf32> to vector<1x8xf32>
    %509 = arith.addf %507, %508 : vector<1x8xf32>
    %cst_141 = arith.constant 6.250000e-02 : f32
    %510 = vector.broadcast %cst_141 : f32 to vector<1x8xf32>
    %511 = arith.mulf %509, %510 : vector<1x8xf32>
    %512 = tpu.concatenate %511, %511, %511, %511, %511, %511, %511, %511, %511, %511, %511, %511, %511, %511, %511, %511 in 1 : vector<1x8xf32>, vector<1x8xf32>, vector<1x8xf32>, vector<1x8xf32>, vector<1x8xf32>, vector<1x8xf32>, vector<1x8xf32>, vector<1x8xf32>, vector<1x8xf32>, vector<1x8xf32>, vector<1x8xf32>, vector<1x8xf32>, vector<1x8xf32>, vector<1x8xf32>, vector<1x8xf32>, vector<1x8xf32> -> vector<1x128xf32>
    %c0_142 = arith.constant 0 : index
    %c0_143 = arith.constant 0 : index
    %513 = vector.load %arg19[%c0_142, %c0_143] : memref<1x128xf32, #tpu.memory_space<vmem>>, vector<1x128xf32>
    %cst_144 = arith.constant 9.99999974E-6 : f32
    %514 = vector.broadcast %cst_144 : f32 to vector<1x128xf32>
    %515 = arith.addf %512, %514 : vector<1x128xf32>
    %516 = math.rsqrt %515 : vector<1x128xf32>
    %517 = arith.mulf %513, %516 : vector<1x128xf32>
    %518 = vector.broadcast %517 : vector<1x128xf32> to vector<32x128xf32>
    %519 = arith.mulf %473, %518 : vector<32x128xf32>
    %c0_145 = arith.constant 0 : index
    %c0_146 = arith.constant 0 : index
    %520 = vector.load %arg20[%c0_145, %c0_146] : memref<1x128xf32, #tpu.memory_space<vmem>>, vector<1x128xf32>
    %521 = vector.broadcast %520 : vector<1x128xf32> to vector<32x128xf32>
    %522 = arith.addf %519, %521 : vector<32x128xf32>
    %523 = arith.addf %522, %310 : vector<32x128xf32>
    %cst_147 = arith.constant 0.000000e+00 : f32
    %524 = vector.broadcast %cst_147 : f32 to vector<32x128xf32>
    %525 = arith.maximumf %523, %524 : vector<32x128xf32>
    %c0_148 = arith.constant 0 : index
    %c0_149 = arith.constant 0 : index
    %526 = vector.load %arg23[%c0_148, %c0_149] : memref<32x128xf32, #tpu.memory_space<vmem>>, vector<32x128xf32>
    tpu.vector_store %arg23[%c0_148, %c0_149], %525 {strides = array<i32>} : memref<32x128xf32, #tpu.memory_space<vmem>>, vector<32x128xf32>,
    return
  }
}

</mosaic_0001>

<llo_original>
// kernel: chain_forward.1
$region0: #{chain_forward.1}
  #allocation0 [shape = 'u32[]', space=smem, size = 0x4, offset = 0x4, fixed_abs, tag = 'smem constant byte address 0x4 - core index']
  #allocation1 [shape = 'u32[72,128]{1,0:T(1,128)}', space=vmem, size = 0x9000, scoped, tag = 'internal scratch']
  #allocation2 [shape = 'f32[2,18,128]{2,1,0:T(8,128)}', space=vmem, size = 0x6000, scoped, tag = 'scratch operand']
  %s0 = inlined_call_operand.vmem [shape: f32[2,16,128], index: 0, kind: input, shape index: {}]
  %s1 = inlined_call_operand.vmem [shape: f32[128,128], index: 1, kind: input, shape index: {}]
  %s2 = inlined_call_operand.vmem [shape: f32[128,256], index: 2, kind: input, shape index: {}]
  %s3 = inlined_call_operand.vmem [shape: f32[128,128], index: 3, kind: input, shape index: {}]
  %s4 = inlined_call_operand.vmem [shape: f32[1,128], index: 4, kind: input, shape index: {}]
  %s5 = inlined_call_operand.vmem [shape: f32[1,128], index: 5, kind: input, shape index: {}]
  %s6 = inlined_call_operand.vmem [shape: f32[128,128], index: 6, kind: input, shape index: {}]
  %s7 = inlined_call_operand.vmem [shape: f32[128,128], index: 7, kind: input, shape index: {}]
  %s8 = inlined_call_operand.vmem [shape: f32[128,128], index: 8, kind: input, shape index: {}]
  %s9 = inlined_call_operand.vmem [shape: f32[1,128], index: 9, kind: input, shape index: {}]
  %s10 = inlined_call_operand.vmem [shape: f32[1,128], index: 10, kind: input, shape index: {}]
  %s11 = inlined_call_operand.vmem [shape: f32[128,128], index: 11, kind: input, shape index: {}]
  %s12 = inlined_call_operand.vmem [shape: f32[128,128], index: 12, kind: input, shape index: {}]
  %s13 = inlined_call_operand.vmem [shape: f32[128,128], index: 13, kind: input, shape index: {}]
  %s14 = inlined_call_operand.vmem [shape: f32[1,128], index: 14, kind: input, shape index: {}]
  %s15 = inlined_call_operand.vmem [shape: f32[1,128], index: 15, kind: input, shape index: {}]
  %s16 = inlined_call_operand.vmem [shape: f32[128,128], index: 16, kind: input, shape index: {}]
  %s17 = inlined_call_operand.vmem [shape: f32[128,128], index: 17, kind: input, shape index: {}]
  %s18 = inlined_call_operand.vmem [shape: f32[128,128], index: 18, kind: input, shape index: {}]
  %s19 = inlined_call_operand.vmem [shape: f32[1,128], index: 19, kind: input, shape index: {}]
  %s20 = inlined_call_operand.vmem [shape: f32[1,128], index: 20, kind: input, shape index: {}]
  %s21 = inlined_call_operand.vmem [shape: f32[1,128], index: 21, kind: input, shape index: {}]
  %s22 = inlined_call_operand.vmem [shape: f32[1,128], index: 22, kind: input, shape index: {}]
  %s23 = inlined_call_operand.vmem [shape: f32[32,128], index: 23, kind: output, shape index: {}]
  %s24 = sld [smem:[#allocation0]]
  $region102: #{chain_forward.1} parent=0
    _
  %s26 = ssub.s32 1, %s24
  %s27 = scalar_select 0, %s26, %s24
  // Predicated region
  $region2: #{chain_forward.1} parent=0 // pred_check
    _
  $region3: #{chain_forward.1} parent=0 // pred_check_branch
    %29 = sbr.rel (0) target = $region5
  $region4: #{chain_forward.1} parent=0 // pred_region
    _
  $region5: #{chain_forward.1} parent=0 // pred_fallthru
    _
  // Predicated region
  $region6: #{chain_forward.1} parent=0 // pred_check
    _
  $region7: #{chain_forward.1} parent=0 // pred_check_branch
    %31 = sbr.rel (0) target = $region9
  $region8: #{chain_forward.1} parent=0 // pred_region
    _
  $region9: #{chain_forward.1} parent=0 // pred_fallthru
    _
  // Predicated region
  $region10: #{chain_forward.1} parent=0 // pred_check
    _
  $region11: #{chain_forward.1} parent=0 // pred_check_branch
    %33 = sbr.rel (0) target = $region13
  $region12: #{chain_forward.1} parent=0 // pred_region
    _
  $region13: #{chain_forward.1} parent=0 // pred_fallthru
    _
  // Predicated region
  $region14: #{chain_forward.1} parent=0 // pred_check
    _
  $region15: #{chain_forward.1} parent=0 // pred_check_branch
    %35 = sbr.rel (0) target = $region17
  $region16: #{chain_forward.1} parent=0 // pred_region
    _
  $region17: #{chain_forward.1} parent=0 // pred_fallthru
    _
  // Predicated region
  $region18: #{chain_forward.1} parent=0 // pred_check
    _
  $region19: #{chain_forward.1} parent=0 // pred_check_branch
    %37 = sbr.rel (0) target = $region21
  $region20: #{chain_forward.1} parent=0 // pred_region
    _
  $region21: #{chain_forward.1} parent=0 // pred_fallthru
    _
  // Predicated region
  $region22: #{chain_forward.1} parent=0 // pred_check
    _
  $region23: #{chain_forward.1} parent=0 // pred_check_branch
    %39 = sbr.rel (0) target = $region25
  $region24: #{chain_forward.1} parent=0 // pred_region
    _
  $region25: #{chain_forward.1} parent=0 // pred_fallthru
    _
  // Predicated region
  $region26: #{chain_forward.1} parent=0 // pred_check
    _
  $region27: #{chain_forward.1} parent=0 // pred_check_branch
    %41 = sbr.rel (0) target = $region29
  $region28: #{chain_forward.1} parent=0 // pred_region
    _
  $region29: #{chain_forward.1} parent=0 // pred_fallthru
    _
  // Predicated region
  $region30: #{chain_forward.1} parent=0 // pred_check
    _
  $region31: #{chain_forward.1} parent=0 // pred_check_branch
    %43 = sbr.rel (0) target = $region33
  $region32: #{chain_forward.1} parent=0 // pred_region
    _
  $region33: #{chain_forward.1} parent=0 // pred_fallthru
    _
  // Predicated region
  $region34: #{chain_forward.1} parent=0 // pred_check
    _
  $region35: #{chain_forward.1} parent=0 // pred_check_branch
    %45 = sbr.rel (0) target = $region37
  $region36: #{chain_forward.1} parent=0 // pred_region
    _
  $region37: #{chain_forward.1} parent=0 // pred_fallthru
    _
  // Predicated region
  $region38: #{chain_forward.1} parent=0 // pred_check
    _
  $region39: #{chain_forward.1} parent=0 // pred_check_branch
    %47 = sbr.rel (0) target = $region41
  $region40: #{chain_forward.1} parent=0 // pred_region
    _
  $region41: #{chain_forward.1} parent=0 // pred_fallthru
    _
  // Predicated region
  $region42: #{chain_forward.1} parent=0 // pred_check
    _
  $region43: #{chain_forward.1} parent=0 // pred_check_branch
    %49 = sbr.rel (0) target = $region45
  $region44: #{chain_forward.1} parent=0 // pred_region
    _
  $region45: #{chain_forward.1} parent=0 // pred_fallthru
    _
  // Predicated region
  $region46: #{chain_forward.1} parent=0 // pred_check
    _
  $region47: #{chain_forward.1} parent=0 // pred_check_branch
    %51 = sbr.rel (0) target = $region49
  $region48: #{chain_forward.1} parent=0 // pred_region
    _
  $region49: #{chain_forward.1} parent=0 // pred_fallthru
    _
  // Predicated region
  $region50: #{chain_forward.1} parent=0 // pred_check
    _
  $region51: #{chain_forward.1} parent=0 // pred_check_branch
    %53 = sbr.rel (0) target = $region53
  $region52: #{chain_forward.1} parent=0 // pred_region
    _
  $region53: #{chain_forward.1} parent=0 // pred_fallthru
    _
  // Predicated region
  $region54: #{chain_forward.1} parent=0 // pred_check
    _
  $region55: #{chain_forward.1} parent=0 // pred_check_branch
    %55 = sbr.rel (0) target = $region57
  $region56: #{chain_forward.1} parent=0 // pred_region
    _
  $region57: #{chain_forward.1} parent=0 // pred_fallthru
    _
  // Predicated region
  $region58: #{chain_forward.1} parent=0 // pred_check
    _
  $region59: #{chain_forward.1} parent=0 // pred_check_branch
    %57 = sbr.rel (0) target = $region61
  $region60: #{chain_forward.1} parent=0 // pred_region
    _
  $region61: #{chain_forward.1} parent=0 // pred_fallthru
    _
  // Predicated region
  $region62: #{chain_forward.1} parent=0 // pred_check
    _
  $region63: #{chain_forward.1} parent=0 // pred_check_branch
    %59 = sbr.rel (0) target = $region65
  $region64: #{chain_forward.1} parent=0 // pred_region
    _
  $region65: #{chain_forward.1} parent=0 // pred_fallthru
    _
  // Predicated region
  $region66: #{chain_forward.1} parent=0 // pred_check
    _
  $region67: #{chain_forward.1} parent=0 // pred_check_branch
    %61 = sbr.rel (0) target = $region69
  $region68: #{chain_forward.1} parent=0 // pred_region
    _
  $region69: #{chain_forward.1} parent=0 // pred_fallthru
    _
  // Predicated region
  $region70: #{chain_forward.1} parent=0 // pred_check
    _
  $region71: #{chain_forward.1} parent=0 // pred_check_branch
    %63 = sbr.rel (0) target = $region73
  $region72: #{chain_forward.1} parent=0 // pred_region
    _
  $region73: #{chain_forward.1} parent=0 // pred_fallthru
    _
  // Predicated region
  $region74: #{chain_forward.1} parent=0 // pred_check
    _
  $region75: #{chain_forward.1} parent=0 // pred_check_branch
    %65 = sbr.rel (0) target = $region77
  $region76: #{chain_forward.1} parent=0 // pred_region
    _
  $region77: #{chain_forward.1} parent=0 // pred_fallthru
    _
  // Predicated region
  $region78: #{chain_forward.1} parent=0 // pred_check
    _
  $region79: #{chain_forward.1} parent=0 // pred_check_branch
    %67 = sbr.rel (0) target = $region81
  $region80: #{chain_forward.1} parent=0 // pred_region
    _
  $region81: #{chain_forward.1} parent=0 // pred_fallthru
    _
  // Predicated region
  $region82: #{chain_forward.1} parent=0 // pred_check
    _
  $region83: #{chain_forward.1} parent=0 // pred_check_branch
    %69 = sbr.rel (0) target = $region85
  $region84: #{chain_forward.1} parent=0 // pred_region
    _
  $region85: #{chain_forward.1} parent=0 // pred_fallthru
    _
  // Predicated region
  $region86: #{chain_forward.1} parent=0 // pred_check
    _
  $region87: #{chain_forward.1} parent=0 // pred_check_branch
    %71 = sbr.rel (0) target = $region89
  $region88: #{chain_forward.1} parent=0 // pred_region
    _
  $region89: #{chain_forward.1} parent=0 // pred_fallthru
    _
  // Predicated region
  $region90: #{chain_forward.1} parent=0 // pred_check
    _
  $region91: #{chain_forward.1} parent=0 // pred_check_branch
    %73 = sbr.rel (0) target = $region93
  $region92: #{chain_forward.1} parent=0 // pred_region
    _
  $region93: #{chain_forward.1} parent=0 // pred_fallthru
    _
  %74 = vst [vmem:[#allocation2] sm:$0x1] 0.0
  %75 = vst [vmem:[#allocation2 + $0x18] sm:$0x1] 0.0
  %76 = vst [vmem:[#allocation2 + $0x11] sm:$0x1] 0.0
  %77 = vst [vmem:[#allocation2 + $0x29] sm:$0x1] 0.0
  %v78 = vld [vmem:[%s0] sm:$0xff]
  %v79 = vld [vmem:[%s0 + $0x8] sm:$0xff]
  %v80 = vld [vmem:[%s0 + $0x10] sm:$0xff]
  %v81 = vld [vmem:[%s0 + $0x18] sm:$0xff]
  %82 = vst [vmem:[#allocation2 + $0x1] sm:$0xff] %v78
  %83 = vst [vmem:[#allocation2 + $0x9] sm:$0xff] %v79
  %84 = vst [vmem:[#allocation2 + $0x19] sm:$0xff] %v80
  %85 = vst [vmem:[#allocation2 + $0x21] sm:$0xff] %v81
  %v86 = vld [vmem:[#allocation2 + $0x1] sm:$0xff]
  %v87 = vld [vmem:[#allocation2 + $0x9] sm:$0xff]
  %v88 = vld [vmem:[#allocation2 + $0x19] sm:$0xff]
  %v89 = vld [vmem:[#allocation2 + $0x21] sm:$0xff]
  %v90 = vld [vmem:[%s2] sm:$0xff]
  %v91 = vld [vmem:[%s2 + $0x8] sm:$0xff]
  %v92 = vld [vmem:[%s2 + $0x10] sm:$0xff]
  %v93 = vld [vmem:[%s2 + $0x18] sm:$0xff]
  %v94 = vld [vmem:[%s2 + $0x20] sm:$0xff]
  %v95 = vld [vmem:[%s2 + $0x28] sm:$0xff]
  %v96 = vld [vmem:[%s2 + $0x30] sm:$0xff]
  %v97 = vld [vmem:[%s2 + $0x38] sm:$0xff]
  %v98 = vld [vmem:[%s2 + $0x40] sm:$0xff]
  %v99 = vld [vmem:[%s2 + $0x48] sm:$0xff]
  %v100 = vld [vmem:[%s2 + $0x50] sm:$0xff]
  %v101 = vld [vmem:[%s2 + $0x58] sm:$0xff]
  %v102 = vld [vmem:[%s2 + $0x60] sm:$0xff]
  %v103 = vld [vmem:[%s2 + $0x68] sm:$0xff]
  %v104 = vld [vmem:[%s2 + $0x70] sm:$0xff]
  %v105 = vld [vmem:[%s2 + $0x78] sm:$0xff]
  %v106 = vld [vmem:[%s2 + $0x80] sm:$0xff]
  %v107 = vld [vmem:[%s2 + $0x88] sm:$0xff]
  %v108 = vld [vmem:[%s2 + $0x90] sm:$0xff]
  %v109 = vld [vmem:[%s2 + $0x98] sm:$0xff]
  %v110 = vld [vmem:[%s2 + $0xa0] sm:$0xff]
  %v111 = vld [vmem:[%s2 + $0xa8] sm:$0xff]
  %v112 = vld [vmem:[%s2 + $0xb0] sm:$0xff]
  %v113 = vld [vmem:[%s2 + $0xb8] sm:$0xff]
  %v114 = vld [vmem:[%s2 + $0xc0] sm:$0xff]
  %v115 = vld [vmem:[%s2 + $0xc8] sm:$0xff]
  %v116 = vld [vmem:[%s2 + $0xd0] sm:$0xff]
  %v117 = vld [vmem:[%s2 + $0xd8] sm:$0xff]
  %v118 = vld [vmem:[%s2 + $0xe0] sm:$0xff]
  %v119 = vld [vmem:[%s2 + $0xe8] sm:$0xff]
  %v120 = vld [vmem:[%s2 + $0xf0] sm:$0xff]
  %v121 = vld [vmem:[%s2 + $0xf8] sm:$0xff]
  %122 = vmatpush.msra.mxu0 %v120
  %123 = vmatpush.msra.mxu0 %v118
  %124 = vmatpush.msra.mxu0 %v116
  %125 = vmatpush.msra.mxu0 %v114
  %126 = vmatpush.msra.mxu0 %v112
  %127 = vmatpush.msra.mxu0 %v110
  %128 = vmatpush.msra.mxu0 %v108
  %129 = vmatpush.msra.mxu0 %v106
  %130 = vmatpush.msra.mxu0 %v104
  %131 = vmatpush.msra.mxu0 %v102
  %132 = vmatpush.msra.mxu0 %v100
  %133 = vmatpush.msra.mxu0 %v98
  %134 = vmatpush.msra.mxu0 %v96
  %135 = vmatpush.msra.mxu0 %v94
  %136 = vmatpush.msra.mxu0 %v92
  %137 = vmatpush.msra.mxu0 %v90
  %138 = vmatmul.f32.gmra.mxu0 %v86
  %v139 = vpop.f32.mrf.mxu0
  %v140 = vadd.f32 0.0, %v139
  %141 = vmatmul.f32.gmra.mxu0 %v87
  %v142 = vpop.f32.mrf.mxu0
  %v143 = vadd.f32 0.0, %v142
  %144 = vmatmul.f32.gmra.mxu0 %v88
  %v145 = vpop.f32.mrf.mxu0
  %v146 = vadd.f32 0.0, %v145
  %147 = vmatmul.f32.gmra.mxu0 %v89
  %v148 = vpop.f32.mrf.mxu0
  %v149 = vadd.f32 0.0, %v148
  %150 = vdwg.mxu0
  %151 = vmatpush.msra.mxu0 %v121
  %152 = vmatpush.msra.mxu0 %v119
  %153 = vmatpush.msra.mxu0 %v117
  %154 = vmatpush.msra.mxu0 %v115
  %155 = vmatpush.msra.mxu0 %v113
  %156 = vmatpush.msra.mxu0 %v111
  %157 = vmatpush.msra.mxu0 %v109
  %158 = vmatpush.msra.mxu0 %v107
  %159 = vmatpush.msra.mxu0 %v105
  %160 = vmatpush.msra.mxu0 %v103
  %161 = vmatpush.msra.mxu0 %v101
  %162 = vmatpush.msra.mxu0 %v99
  %163 = vmatpush.msra.mxu0 %v97
  %164 = vmatpush.msra.mxu0 %v95
  %165 = vmatpush.msra.mxu0 %v93
  %166 = vmatpush.msra.mxu0 %v91
  %167 = vmatmul.f32.gmra.mxu0 %v86
  %v168 = vpop.f32.mrf.mxu0
  %v169 = vadd.f32 0.0, %v168
  %170 = vmatmul.f32.gmra.mxu0 %v87
  %v171 = vpop.f32.mrf.mxu0
  %v172 = vadd.f32 0.0, %v171
  %173 = vmatmul.f32.gmra.mxu0 %v88
  %v174 = vpop.f32.mrf.mxu0
  %v175 = vadd.f32 0.0, %v174
  %176 = vmatmul.f32.gmra.mxu0 %v89
  %v177 = vpop.f32.mrf.mxu0
  %v178 = vadd.f32 0.0, %v177
  %179 = vdwg.mxu0
  %v180 = vld [vmem:[#allocation2] sm:$0xff]
  %v181 = vld [vmem:[#allocation2 + $0x8] sm:$0xff]
  %v182 = vld [vmem:[#allocation2 + $0x18] sm:$0xff]
  %v183 = vld [vmem:[#allocation2 + $0x20] sm:$0xff]
  %v184 = vld [vmem:[%s1] sm:$0xff]
  %v185 = vld [vmem:[%s1 + $0x8] sm:$0xff]
  %v186 = vld [vmem:[%s1 + $0x10] sm:$0xff]
  %v187 = vld [vmem:[%s1 + $0x18] sm:$0xff]
  %v188 = vld [vmem:[%s1 + $0x20] sm:$0xff]
  %v189 = vld [vmem:[%s1 + $0x28] sm:$0xff]
  %v190 = vld [vmem:[%s1 + $0x30] sm:$0xff]
  %v191 = vld [vmem:[%s1 + $0x38] sm:$0xff]
  %v192 = vld [vmem:[%s1 + $0x40] sm:$0xff]
  %v193 = vld [vmem:[%s1 + $0x48] sm:$0xff]
  %v194 = vld [vmem:[%s1 + $0x50] sm:$0xff]
  %v195 = vld [vmem:[%s1 + $0x58] sm:$0xff]
  %v196 = vld [vmem:[%s1 + $0x60] sm:$0xff]
  %v197 = vld [vmem:[%s1 + $0x68] sm:$0xff]
  %v198 = vld [vmem:[%s1 + $0x70] sm:$0xff]
  %v199 = vld [vmem:[%s1 + $0x78] sm:$0xff]
  %v200 = vld [vmem:[#allocation2 + $0x2] sm:$0xff]
  %v201 = vld [vmem:[#allocation2 + $0xa] sm:$0xff]
  %v202 = vld [vmem:[#allocation2 + $0x1a] sm:$0xff]
  %v203 = vld [vmem:[#allocation2 + $0x22] sm:$0xff]
  %v204 = vld [vmem:[%s3] sm:$0xff]
  %v205 = vld [vmem:[%s3 + $0x8] sm:$0xff]
  %v206 = vld [vmem:[%s3 + $0x10] sm:$0xff]
  %v207 = vld [vmem:[%s3 + $0x18] sm:$0xff]
  %v208 = vld [vmem:[%s3 + $0x20] sm:$0xff]
  %v209 = vld [vmem:[%s3 + $0x28] sm:$0xff]
  %v210 = vld [vmem:[%s3 + $0x30] sm:$0xff]
  %v211 = vld [vmem:[%s3 + $0x38] sm:$0xff]
  %v212 = vld [vmem:[%s3 + $0x40] sm:$0xff]
  %v213 = vld [vmem:[%s3 + $0x48] sm:$0xff]
  %v214 = vld [vmem:[%s3 + $0x50] sm:$0xff]
  %v215 = vld [vmem:[%s3 + $0x58] sm:$0xff]
  %v216 = vld [vmem:[%s3 + $0x60] sm:$0xff]
  %v217 = vld [vmem:[%s3 + $0x68] sm:$0xff]
  %v218 = vld [vmem:[%s3 + $0x70] sm:$0xff]
  %v219 = vld [vmem:[%s3 + $0x78] sm:$0xff]
  %220 = vmatpush.msra.mxu0 %v219
  %221 = vmatpush.msra.mxu0 %v218
  %222 = vmatpush.msra.mxu0 %v217
  %223 = vmatpush.msra.mxu0 %v216
  %224 = vmatpush.msra.mxu0 %v215
  %225 = vmatpush.msra.mxu0 %v214
  %226 = vmatpush.msra.mxu0 %v213
  %227 = vmatpush.msra.mxu0 %v212
  %228 = vmatpush.msra.mxu0 %v211
  %229 = vmatpush.msra.mxu0 %v210
  %230 = vmatpush.msra.mxu0 %v209
  %231 = vmatpush.msra.mxu0 %v208
  %232 = vmatpush.msra.mxu0 %v207
  %233 = vmatpush.msra.mxu0 %v206
  %234 = vmatpush.msra.mxu0 %v205
  %235 = vmatpush.msra.mxu0 %v204
  %236 = vmatmul.f32.gmra.mxu0 %v200
  %v237 = vpop.f32.mrf.mxu0
  %v238 = vadd.f32 0.0, %v237
  %239 = vmatmul.f32.gmra.mxu0 %v201
  %v240 = vpop.f32.mrf.mxu0
  %v241 = vadd.f32 0.0, %v240
  %242 = vmatmul.f32.gmra.mxu0 %v202
  %v243 = vpop.f32.mrf.mxu0
  %v244 = vadd.f32 0.0, %v243
  %245 = vmatmul.f32.gmra.mxu0 %v203
  %v246 = vpop.f32.mrf.mxu0
  %v247 = vadd.f32 0.0, %v246
  %248 = vdwg.mxu0
  %249 = vmatpush.msra.mxu0 %v199
  %250 = vmatpush.msra.mxu0 %v198
  %251 = vmatpush.msra.mxu0 %v197
  %252 = vmatpush.msra.mxu0 %v196
  %253 = vmatpush.msra.mxu0 %v195
  %254 = vmatpush.msra.mxu0 %v194
  %255 = vmatpush.msra.mxu0 %v193
  %256 = vmatpush.msra.mxu0 %v192
  %257 = vmatpush.msra.mxu0 %v191
  %258 = vmatpush.msra.mxu0 %v190
  %259 = vmatpush.msra.mxu0 %v189
  %260 = vmatpush.msra.mxu0 %v188
  %261 = vmatpush.msra.mxu0 %v187
  %262 = vmatpush.msra.mxu0 %v186
  %263 = vmatpush.msra.mxu0 %v185
  %264 = vmatpush.msra.mxu0 %v184
  %265 = vmatmul.f32.gmra.mxu0 %v180
  %v266 = vpop.f32.mrf.mxu0
  %v267 = vadd.f32 %v238, %v266
  %268 = vmatmul.f32.gmra.mxu0 %v181
  %v269 = vpop.f32.mrf.mxu0
  %v270 = vadd.f32 %v241, %v269
  %271 = vmatmul.f32.gmra.mxu0 %v182
  %v272 = vpop.f32.mrf.mxu0
  %v273 = vadd.f32 %v244, %v272
  %274 = vmatmul.f32.gmra.mxu0 %v183
  %v275 = vpop.f32.mrf.mxu0
  %v276 = vadd.f32 %v247, %v275
  %277 = vdwg.mxu0
  %v278 = vadd.f32 %v267, %v140
  %v279 = vadd.f32 %v270, %v143
  %v280 = vadd.f32 %v273, %v146
  %v281 = vadd.f32 %v276, %v149
  %v282 = vadd.f32 %v169, %v172
  %v283 = vadd.f32 %v282, %v175
  %v284 = vadd.f32 %v283, %v178
  %v285 = vrot.slane %v284, 4
  %v286 = vadd.f32 %v284, %v285
  %v287 = vrot.slane %v286, 2
  %v288 = vadd.f32 %v286, %v287
  %v289 = vrot.slane %v288, 1
  %v290 = vadd.f32 %v288, %v289
  %v291 = vrcp.pop 32.0
  %v292 = vmul.f32 32.0, %v291
  %v293 = vsub.f32 1.0, %v292
  %v294 = vmul.f32 %v291, %v293
  %v295 = vadd.f32 %v291, %v294
  %vm296 = vweird.f32 %v291
  %v297 = vsel %vm296, %v291, %v295
  %v298 = vmul.f32 %v290, %v297
  %300 = vrot.lane.b32.xlu0 %v298, 120
  %v301 = vpop.permute.xlu0 %300
  %v303 = vadd.f32 %v298, %v301
  %304 = vrot.lane.b32.xlu0 %v298, 112
  %v305 = vpop.permute.xlu0 %304
  %v307 = vadd.f32 %v303, %v305
  %308 = vrot.lane.b32.xlu0 %v298, 104
  %v309 = vpop.permute.xlu0 %308
  %v311 = vadd.f32 %v307, %v309
  %312 = vrot.lane.b32.xlu0 %v298, 96
  %v313 = vpop.permute.xlu0 %312
  %v315 = vadd.f32 %v311, %v313
  %316 = vrot.lane.b32.xlu0 %v298, 88
  %v317 = vpop.permute.xlu0 %316
  %v319 = vadd.f32 %v315, %v317
  %320 = vrot.lane.b32.xlu0 %v298, 80
  %v321 = vpop.permute.xlu0 %320
  %v323 = vadd.f32 %v319, %v321
  %324 = vrot.lane.b32.xlu0 %v298, 72
  %v325 = vpop.permute.xlu0 %324
  %v327 = vadd.f32 %v323, %v325
  %328 = vrot.lane.b32.xlu0 %v298, 64
  %v329 = vpop.permute.xlu0 %328
  %v331 = vadd.f32 %v327, %v329
  %332 = vrot.lane.b32.xlu0 %v298, 56
  %v333 = vpop.permute.xlu0 %332
  %v335 = vadd.f32 %v331, %v333
  %336 = vrot.lane.b32.xlu0 %v298, 48
  %v337 = vpop.permute.xlu0 %336
  %v339 = vadd.f32 %v335, %v337
  %340 = vrot.lane.b32.xlu0 %v298, 40
  %v341 = vpop.permute.xlu0 %340
  %v343 = vadd.f32 %v339, %v341
  %344 = vrot.lane.b32.xlu0 %v298, 32
  %v345 = vpop.permute.xlu0 %344
  %v347 = vadd.f32 %v343, %v345
  %348 = vrot.lane.b32.xlu0 %v298, 24
  %v349 = vpop.permute.xlu0 %348
  %v351 = vadd.f32 %v347, %v349
  %352 = vrot.lane.b32.xlu0 %v298, 16
  %v353 = vpop.permute.xlu0 %352
  %v355 = vadd.f32 %v351, %v353
  %356 = vrot.lane.b32.xlu0 %v298, 8
  %v357 = vpop.permute.xlu0 %356
  %v359 = vadd.f32 %v355, %v357
  %v360 = vmul.f32 %v359, 0.0625
  %362 = vrot.lane.b32.xlu0 %v360, 8
  %v363 = vpop.permute.xlu0 %362
  %365 = vrot.lane.b32.xlu0 %v360, 16
  %v366 = vpop.permute.xlu0 %365
  %368 = vrot.lane.b32.xlu0 %v360, 24
  %v369 = vpop.permute.xlu0 %368
  %371 = vrot.lane.b32.xlu0 %v360, 32
  %v372 = vpop.permute.xlu0 %371
  %374 = vrot.lane.b32.xlu0 %v360, 40
  %v375 = vpop.permute.xlu0 %374
  %377 = vrot.lane.b32.xlu0 %v360, 48
  %v378 = vpop.permute.xlu0 %377
  %380 = vrot.lane.b32.xlu0 %v360, 56
  %v381 = vpop.permute.xlu0 %380
  %383 = vrot.lane.b32.xlu0 %v360, 64
  %v384 = vpop.permute.xlu0 %383
  %386 = vrot.lane.b32.xlu0 %v360, 72
  %v387 = vpop.permute.xlu0 %386
  %389 = vrot.lane.b32.xlu0 %v360, 80
  %v390 = vpop.permute.xlu0 %389
  %392 = vrot.lane.b32.xlu0 %v360, 88
  %v393 = vpop.permute.xlu0 %392
  %395 = vrot.lane.b32.xlu0 %v360, 96
  %v396 = vpop.permute.xlu0 %395
  %398 = vrot.lane.b32.xlu0 %v360, 104
  %v399 = vpop.permute.xlu0 %398
  %401 = vrot.lane.b32.xlu0 %v360, 112
  %v402 = vpop.permute.xlu0 %401
  %404 = vrot.lane.b32.xlu0 %v360, 120
  %v405 = vpop.permute.xlu0 %404
  %vm407 = vcmask 64512
  %v408 = vsel %vm407, %v360, %v363
  %vm409 = vcmask 130048
  %v410 = vsel %vm409, %v408, %v366
  %vm411 = vcmask 195584
  %v412 = vsel %vm411, %v410, %v369
  %vm413 = vcmask 261120
  %v414 = vsel %vm413, %v412, %v372
  %vm415 = vcmask 326656
  %v416 = vsel %vm415, %v414, %v375
  %vm417 = vcmask 392192
  %v418 = vsel %vm417, %v416, %v378
  %vm419 = vcmask 457728
  %v420 = vsel %vm419, %v418, %v381
  %vm421 = vcmask 523264
  %v422 = vsel %vm421, %v420, %v384
  %vm423 = vcmask 588800
  %v424 = vsel %vm423, %v422, %v387
  %vm425 = vcmask 654336
  %v426 = vsel %vm425, %v424, %v390
  %vm427 = vcmask 719872
  %v428 = vsel %vm427, %v426, %v393
  %vm429 = vcmask 785408
  %v430 = vsel %vm429, %v428, %v396
  %vm431 = vcmask 850944
  %v432 = vsel %vm431, %v430, %v399
  %vm433 = vcmask 916480
  %v434 = vsel %vm433, %v432, %v402
  %vm435 = vcmask 982016
  %v436 = vsel %vm435, %v434, %v405
  %v437 = vperm.slane %v436, 0
  %v438 = vsub.f32 %v169, %v437
  %v439 = vsub.f32 %v172, %v437
  %v440 = vsub.f32 %v175, %v437
  %v441 = vsub.f32 %v178, %v437
  %v442 = vmul.f32 %v438, %v438
  %v443 = vmul.f32 %v439, %v439
  %v444 = vmul.f32 %v440, %v440
  %v445 = vmul.f32 %v441, %v441
  %v446 = vadd.f32 %v442, %v443
  %v447 = vadd.f32 %v446, %v444
  %v448 = vadd.f32 %v447, %v445
  %v449 = vrot.slane %v448, 4
  %v450 = vadd.f32 %v448, %v449
  %v451 = vrot.slane %v450, 2
  %v452 = vadd.f32 %v450, %v451
  %v453 = vrot.slane %v452, 1
  %v454 = vadd.f32 %v452, %v453
  %v455 = vmul.f32 %v454, %v297
  %457 = vrot.lane.b32.xlu0 %v455, 120
  %v458 = vpop.permute.xlu0 %457
  %v460 = vadd.f32 %v455, %v458
  %461 = vrot.lane.b32.xlu0 %v455, 112
  %v462 = vpop.permute.xlu0 %461
  %v464 = vadd.f32 %v460, %v462
  %465 = vrot.lane.b32.xlu0 %v455, 104
  %v466 = vpop.permute.xlu0 %465
  %v468 = vadd.f32 %v464, %v466
  %469 = vrot.lane.b32.xlu0 %v455, 96
  %v470 = vpop.permute.xlu0 %469
  %v472 = vadd.f32 %v468, %v470
  %473 = vrot.lane.b32.xlu0 %v455, 88
  %v474 = vpop.permute.xlu0 %473
  %v476 = vadd.f32 %v472, %v474
  %477 = vrot.lane.b32.xlu0 %v455, 80
  %v478 = vpop.permute.xlu0 %477
  %v480 = vadd.f32 %v476, %v478
  %481 = vrot.lane.b32.xlu0 %v455, 72
  %v482 = vpop.permute.xlu0 %481
  %v484 = vadd.f32 %v480, %v482
  %485 = vrot.lane.b32.xlu0 %v455, 64
  %v486 = vpop.permute.xlu0 %485
  %v488 = vadd.f32 %v484, %v486
  %489 = vrot.lane.b32.xlu0 %v455, 56
  %v490 = vpop.permute.xlu0 %489
  %v492 = vadd.f32 %v488, %v490
  %493 = vrot.lane.b32.xlu0 %v455, 48
  %v494 = vpop.permute.xlu0 %493
  %v496 = vadd.f32 %v492, %v494
  %497 = vrot.lane.b32.xlu0 %v455, 40
  %v498 = vpop.permute.xlu0 %497
  %v500 = vadd.f32 %v496, %v498
  %501 = vrot.lane.b32.xlu0 %v455, 32
  %v502 = vpop.permute.xlu0 %501
  %v504 = vadd.f32 %v500, %v502
  %505 = vrot.lane.b32.xlu0 %v455, 24
  %v506 = vpop.permute.xlu0 %505
  %v508 = vadd.f32 %v504, %v506
  %509 = vrot.lane.b32.xlu0 %v455, 16
  %v510 = vpop.permute.xlu0 %509
  %v512 = vadd.f32 %v508, %v510
  %513 = vrot.lane.b32.xlu0 %v455, 8
  %v514 = vpop.permute.xlu0 %513
  %v516 = vadd.f32 %v512, %v514
  %v517 = vmul.f32 %v516, 0.0625
  %519 = vrot.lane.b32.xlu0 %v517, 8
  %v520 = vpop.permute.xlu0 %519
  %522 = vrot.lane.b32.xlu0 %v517, 16
  %v523 = vpop.permute.xlu0 %522
  %525 = vrot.lane.b32.xlu0 %v517, 24
  %v526 = vpop.permute.xlu0 %525
  %528 = vrot.lane.b32.xlu0 %v517, 32
  %v529 = vpop.permute.xlu0 %528
  %531 = vrot.lane.b32.xlu0 %v517, 40
  %v532 = vpop.permute.xlu0 %531
  %534 = vrot.lane.b32.xlu0 %v517, 48
  %v535 = vpop.permute.xlu0 %534
  %537 = vrot.lane.b32.xlu0 %v517, 56
  %v538 = vpop.permute.xlu0 %537
  %540 = vrot.lane.b32.xlu0 %v517, 64
  %v541 = vpop.permute.xlu0 %540
  %543 = vrot.lane.b32.xlu0 %v517, 72
  %v544 = vpop.permute.xlu0 %543
  %546 = vrot.lane.b32.xlu0 %v517, 80
  %v547 = vpop.permute.xlu0 %546
  %549 = vrot.lane.b32.xlu0 %v517, 88
  %v550 = vpop.permute.xlu0 %549
  %552 = vrot.lane.b32.xlu0 %v517, 96
  %v553 = vpop.permute.xlu0 %552
  %555 = vrot.lane.b32.xlu0 %v517, 104
  %v556 = vpop.permute.xlu0 %555
  %558 = vrot.lane.b32.xlu0 %v517, 112
  %v559 = vpop.permute.xlu0 %558
  %561 = vrot.lane.b32.xlu0 %v517, 120
  %v562 = vpop.permute.xlu0 %561
  %v564 = vsel %vm407, %v517, %v520
  %v565 = vsel %vm409, %v564, %v523
  %v566 = vsel %vm411, %v565, %v526
  %v567 = vsel %vm413, %v566, %v529
  %v568 = vsel %vm415, %v567, %v532
  %v569 = vsel %vm417, %v568, %v535
  %v570 = vsel %vm419, %v569, %v538
  %v571 = vsel %vm421, %v570, %v541
  %v572 = vsel %vm423, %v571, %v544
  %v573 = vsel %vm425, %v572, %v547
  %v574 = vsel %vm427, %v573, %v550
  %v575 = vsel %vm429, %v574, %v553
  %v576 = vsel %vm431, %v575, %v556
  %v577 = vsel %vm433, %v576, %v559
  %v578 = vsel %vm435, %v577, %v562
  %v579 = vld [vmem:[%s21] sm:$0x1]
  %v580 = vadd.f32 %v578, 1e-05
  %v581 = vrsqrt.pop %v580
  %v582 = vmul.f32 %v581, %v580
  %v583 = vmul.f32 %v582, %v581
  %v584 = vmul.f32 0.5, %v583
  %v585 = vsub.f32 1.5, %v584
  %v586 = vmul.f32 %v581, %v585
  %vm587 = vweird.f32 %v580
  %vm588 = vweird.f32 %v581
  %vm589 = vmor %vm587, %vm588
  %v590 = vsel %vm589, %v581, %v586
  %v591 = vmul.f32 %v579, %v590
  %v593 = vperm.slane %v591, 0
  %v595 = vmul.f32 %v438, %v593
  %v596 = vmul.f32 %v439, %v593
  %v597 = vmul.f32 %v440, %v593
  %v598 = vmul.f32 %v441, %v593
  %v599 = vld [vmem:[%s22] sm:$0x1]
  %v601 = vperm.slane %v599, 0
  %v603 = vadd.f32 %v595, %v601
  %v604 = vadd.f32 %v596, %v601
  %v605 = vadd.f32 %v597, %v601
  %v606 = vadd.f32 %v598, %v601
  %v607 = vadd.f32 %v278, %v279
  %v608 = vadd.f32 %v607, %v280
  %v609 = vadd.f32 %v608, %v281
  %v610 = vrot.slane %v609, 4
  %v611 = vadd.f32 %v609, %v610
  %v612 = vrot.slane %v611, 2
  %v613 = vadd.f32 %v611, %v612
  %v614 = vrot.slane %v613, 1
  %v615 = vadd.f32 %v613, %v614
  %v616 = vmul.f32 %v615, %v297
  %618 = vrot.lane.b32.xlu0 %v616, 120
  %v619 = vpop.permute.xlu0 %618
  %v621 = vadd.f32 %v616, %v619
  %622 = vrot.lane.b32.xlu0 %v616, 112
  %v623 = vpop.permute.xlu0 %622
  %v625 = vadd.f32 %v621, %v623
  %626 = vrot.lane.b32.xlu0 %v616, 104
  %v627 = vpop.permute.xlu0 %626
  %v629 = vadd.f32 %v625, %v627
  %630 = vrot.lane.b32.xlu0 %v616, 96
  %v631 = vpop.permute.xlu0 %630
  %v633 = vadd.f32 %v629, %v631
  %634 = vrot.lane.b32.xlu0 %v616, 88
  %v635 = vpop.permute.xlu0 %634
  %v637 = vadd.f32 %v633, %v635
  %638 = vrot.lane.b32.xlu0 %v616, 80
  %v639 = vpop.permute.xlu0 %638
  %v641 = vadd.f32 %v637, %v639
  %642 = vrot.lane.b32.xlu0 %v616, 72
  %v643 = vpop.permute.xlu0 %642
  %v645 = vadd.f32 %v641, %v643
  %646 = vrot.lane.b32.xlu0 %v616, 64
  %v647 = vpop.permute.xlu0 %646
  %v649 = vadd.f32 %v645, %v647
  %650 = vrot.lane.b32.xlu0 %v616, 56
  %v651 = vpop.permute.xlu0 %650
  %v653 = vadd.f32 %v649, %v651
  %654 = vrot.lane.b32.xlu0 %v616, 48
  %v655 = vpop.permute.xlu0 %654
  %v657 = vadd.f32 %v653, %v655
  %658 = vrot.lane.b32.xlu0 %v616, 40
  %v659 = vpop.permute.xlu0 %658
  %v661 = vadd.f32 %v657, %v659
  %662 = vrot.lane.b32.xlu0 %v616, 32
  %v663 = vpop.permute.xlu0 %662
  %v665 = vadd.f32 %v661, %v663
  %666 = vrot.lane.b32.xlu0 %v616, 24
  %v667 = vpop.permute.xlu0 %666
  %v669 = vadd.f32 %v665, %v667
  %670 = vrot.lane.b32.xlu0 %v616, 16
  %v671 = vpop.permute.xlu0 %670
  %v673 = vadd.f32 %v669, %v671
  %674 = vrot.lane.b32.xlu0 %v616, 8
  %v675 = vpop.permute.xlu0 %674
  %v677 = vadd.f32 %v673, %v675
  %v678 = vmul.f32 %v677, 0.0625
  %680 = vrot.lane.b32.xlu0 %v678, 8
  %v681 = vpop.permute.xlu0 %680
  %683 = vrot.lane.b32.xlu0 %v678, 16
  %v684 = vpop.permute.xlu0 %683
  %686 = vrot.lane.b32.xlu0 %v678, 24
  %v687 = vpop.permute.xlu0 %686
  %689 = vrot.lane.b32.xlu0 %v678, 32
  %v690 = vpop.permute.xlu0 %689
  %692 = vrot.lane.b32.xlu0 %v678, 40
  %v693 = vpop.permute.xlu0 %692
  %695 = vrot.lane.b32.xlu0 %v678, 48
  %v696 = vpop.permute.xlu0 %695
  %698 = vrot.lane.b32.xlu0 %v678, 56
  %v699 = vpop.permute.xlu0 %698
  %701 = vrot.lane.b32.xlu0 %v678, 64
  %v702 = vpop.permute.xlu0 %701
  %704 = vrot.lane.b32.xlu0 %v678, 72
  %v705 = vpop.permute.xlu0 %704
  %707 = vrot.lane.b32.xlu0 %v678, 80
  %v708 = vpop.permute.xlu0 %707
  %710 = vrot.lane.b32.xlu0 %v678, 88
  %v711 = vpop.permute.xlu0 %710
  %713 = vrot.lane.b32.xlu0 %v678, 96
  %v714 = vpop.permute.xlu0 %713
  %716 = vrot.lane.b32.xlu0 %v678, 104
  %v717 = vpop.permute.xlu0 %716
  %719 = vrot.lane.b32.xlu0 %v678, 112
  %v720 = vpop.permute.xlu0 %719
  %722 = vrot.lane.b32.xlu0 %v678, 120
  %v723 = vpop.permute.xlu0 %722
  %v725 = vsel %vm407, %v678, %v681
  %v726 = vsel %vm409, %v725, %v684
  %v727 = vsel %vm411, %v726, %v687
  %v728 = vsel %vm413, %v727, %v690
  %v729 = vsel %vm415, %v728, %v693
  %v730 = vsel %vm417, %v729, %v696
  %v731 = vsel %vm419, %v730, %v699
  %v732 = vsel %vm421, %v731, %v702
  %v733 = vsel %vm423, %v732, %v705
  %v734 = vsel %vm425, %v733, %v708
  %v735 = vsel %vm427, %v734, %v711
  %v736 = vsel %vm429, %v735, %v714
  %v737 = vsel %vm431, %v736, %v717
  %v738 = vsel %vm433, %v737, %v720
  %v739 = vsel %vm435, %v738, %v723
  %v740 = vperm.slane %v739, 0
  %v741 = vsub.f32 %v278, %v740
  %v742 = vsub.f32 %v279, %v740
  %v743 = vsub.f32 %v280, %v740
  %v744 = vsub.f32 %v281, %v740
  %v745 = vmul.f32 %v741, %v741
  %v746 = vmul.f32 %v742, %v742
  %v747 = vmul.f32 %v743, %v743
  %v748 = vmul.f32 %v744, %v744
  %v749 = vadd.f32 %v745, %v746
  %v750 = vadd.f32 %v749, %v747
  %v751 = vadd.f32 %v750, %v748
  %v752 = vrot.slane %v751, 4
  %v753 = vadd.f32 %v751, %v752
  %v754 = vrot.slane %v753, 2
  %v755 = vadd.f32 %v753, %v754
  %v756 = vrot.slane %v755, 1
  %v757 = vadd.f32 %v755, %v756
  %v758 = vmul.f32 %v757, %v297
  %760 = vrot.lane.b32.xlu0 %v758, 120
  %v761 = vpop.permute.xlu0 %760
  %v763 = vadd.f32 %v758, %v761
  %764 = vrot.lane.b32.xlu0 %v758, 112
  %v765 = vpop.permute.xlu0 %764
  %v767 = vadd.f32 %v763, %v765
  %768 = vrot.lane.b32.xlu0 %v758, 104
  %v769 = vpop.permute.xlu0 %768
  %v771 = vadd.f32 %v767, %v769
  %772 = vrot.lane.b32.xlu0 %v758, 96
  %v773 = vpop.permute.xlu0 %772
  %v775 = vadd.f32 %v771, %v773
  %776 = vrot.lane.b32.xlu0 %v758, 88
  %v777 = vpop.permute.xlu0 %776
  %v779 = vadd.f32 %v775, %v777
  %780 = vrot.lane.b32.xlu0 %v758, 80
  %v781 = vpop.permute.xlu0 %780
  %v783 = vadd.f32 %v779, %v781
  %784 = vrot.lane.b32.xlu0 %v758, 72
  %v785 = vpop.permute.xlu0 %784
  %v787 = vadd.f32 %v783, %v785
  %788 = vrot.lane.b32.xlu0 %v758, 64
  %v789 = vpop.permute.xlu0 %788
  %v791 = vadd.f32 %v787, %v789
  %792 = vrot.lane.b32.xlu0 %v758, 56
  %v793 = vpop.permute.xlu0 %792
  %v795 = vadd.f32 %v791, %v793
  %796 = vrot.lane.b32.xlu0 %v758, 48
  %v797 = vpop.permute.xlu0 %796
  %v799 = vadd.f32 %v795, %v797
  %800 = vrot.lane.b32.xlu0 %v758, 40
  %v801 = vpop.permute.xlu0 %800
  %v803 = vadd.f32 %v799, %v801
  %804 = vrot.lane.b32.xlu0 %v758, 32
  %v805 = vpop.permute.xlu0 %804
  %v807 = vadd.f32 %v803, %v805
  %808 = vrot.lane.b32.xlu0 %v758, 24
  %v809 = vpop.permute.xlu0 %808
  %v811 = vadd.f32 %v807, %v809
  %812 = vrot.lane.b32.xlu0 %v758, 16
  %v813 = vpop.permute.xlu0 %812
  %v815 = vadd.f32 %v811, %v813
  %816 = vrot.lane.b32.xlu0 %v758, 8
  %v817 = vpop.permute.xlu0 %816
  %v819 = vadd.f32 %v815, %v817
  %v820 = vmul.f32 %v819, 0.0625
  %822 = vrot.lane.b32.xlu0 %v820, 8
  %v823 = vpop.permute.xlu0 %822
  %825 = vrot.lane.b32.xlu0 %v820, 16
  %v826 = vpop.permute.xlu0 %825
  %828 = vrot.lane.b32.xlu0 %v820, 24
  %v829 = vpop.permute.xlu0 %828
  %831 = vrot.lane.b32.xlu0 %v820, 32
  %v832 = vpop.permute.xlu0 %831
  %834 = vrot.lane.b32.xlu0 %v820, 40
  %v835 = vpop.permute.xlu0 %834
  %837 = vrot.lane.b32.xlu0 %v820, 48
  %v838 = vpop.permute.xlu0 %837
  %840 = vrot.lane.b32.xlu0 %v820, 56
  %v841 = vpop.permute.xlu0 %840
  %843 = vrot.lane.b32.xlu0 %v820, 64
  %v844 = vpop.permute.xlu0 %843
  %846 = vrot.lane.b32.xlu0 %v820, 72
  %v847 = vpop.permute.xlu0 %846
  %849 = vrot.lane.b32.xlu0 %v820, 80
  %v850 = vpop.permute.xlu0 %849
  %852 = vrot.lane.b32.xlu0 %v820, 88
  %v853 = vpop.permute.xlu0 %852
  %855 = vrot.lane.b32.xlu0 %v820, 96
  %v856 = vpop.permute.xlu0 %855
  %858 = vrot.lane.b32.xlu0 %v820, 104
  %v859 = vpop.permute.xlu0 %858
  %861 = vrot.lane.b32.xlu0 %v820, 112
  %v862 = vpop.permute.xlu0 %861
  %864 = vrot.lane.b32.xlu0 %v820, 120
  %v865 = vpop.permute.xlu0 %864
  %v867 = vsel %vm407, %v820, %v823
  %v868 = vsel %vm409, %v867, %v826
  %v869 = vsel %vm411, %v868, %v829
  %v870 = vsel %vm413, %v869, %v832
  %v871 = vsel %vm415, %v870, %v835
  %v872 = vsel %vm417, %v871, %v838
  %v873 = vsel %vm419, %v872, %v841
  %v874 = vsel %vm421, %v873, %v844
  %v875 = vsel %vm423, %v874, %v847
  %v876 = vsel %vm425, %v875, %v850
  %v877 = vsel %vm427, %v876, %v853
  %v878 = vsel %vm429, %v877, %v856
  %v879 = vsel %vm431, %v878, %v859
  %v880 = vsel %vm433, %v879, %v862
  %v881 = vsel %vm435, %v880, %v865
  %v882 = vld [vmem:[%s4] sm:$0x1]
  %v883 = vadd.f32 %v881, 1e-05
  %v884 = vrsqrt.pop %v883
  %v885 = vmul.f32 %v884, %v883
  %v886 = vmul.f32 %v885, %v884
  %v887 = vmul.f32 0.5, %v886
  %v888 = vsub.f32 1.5, %v887
  %v889 = vmul.f32 %v884, %v888
  %vm890 = vweird.f32 %v883
  %vm891 = vweird.f32 %v884
  %vm892 = vmor %vm890, %vm891
  %v893 = vsel %vm892, %v884, %v889
  %v894 = vmul.f32 %v882, %v893
  %v896 = vperm.slane %v894, 0
  %v898 = vmul.f32 %v741, %v896
  %v899 = vmul.f32 %v742, %v896
  %v900 = vmul.f32 %v743, %v896
  %v901 = vmul.f32 %v744, %v896
  %v902 = vld [vmem:[%s5] sm:$0x1]
  %v904 = vperm.slane %v902, 0
  %v906 = vadd.f32 %v898, %v904
  %v907 = vadd.f32 %v899, %v904
  %v908 = vadd.f32 %v900, %v904
  %v909 = vadd.f32 %v901, %v904
  %v910 = vmax.f32 %v906, 0.0
  %v911 = vmax.f32 %v907, 0.0
  %v912 = vmax.f32 %v908, 0.0
  %v913 = vmax.f32 %v909, 0.0
  %914 = vst [vmem:[#allocation2 + $0x1] sm:$0xff] %v910
  %915 = vst [vmem:[#allocation2 + $0x9] sm:$0xff] %v911
  %916 = vst [vmem:[#allocation2 + $0x19] sm:$0xff] %v912
  %917 = vst [vmem:[#allocation2 + $0x21] sm:$0xff] %v913
  %v918 = vld [vmem:[#allocation2] sm:$0xff]
  %v919 = vld [vmem:[#allocation2 + $0x8] sm:$0xff]
  %v920 = vld [vmem:[#allocation2 + $0x18] sm:$0xff]
  %v921 = vld [vmem:[#allocation2 + $0x20] sm:$0xff]
  %v922 = vld [vmem:[%s6] sm:$0xff]
  %v923 = vld [vmem:[%s6 + $0x8] sm:$0xff]
  %v924 = vld [vmem:[%s6 + $0x10] sm:$0xff]
  %v925 = vld [vmem:[%s6 + $0x18] sm:$0xff]
  %v926 = vld [vmem:[%s6 + $0x20] sm:$0xff]
  %v927 = vld [vmem:[%s6 + $0x28] sm:$0xff]
  %v928 = vld [vmem:[%s6 + $0x30] sm:$0xff]
  %v929 = vld [vmem:[%s6 + $0x38] sm:$0xff]
  %v930 = vld [vmem:[%s6 + $0x40] sm:$0xff]
  %v931 = vld [vmem:[%s6 + $0x48] sm:$0xff]
  %v932 = vld [vmem:[%s6 + $0x50] sm:$0xff]
  %v933 = vld [vmem:[%s6 + $0x58] sm:$0xff]
  %v934 = vld [vmem:[%s6 + $0x60] sm:$0xff]
  %v935 = vld [vmem:[%s6 + $0x68] sm:$0xff]
  %v936 = vld [vmem:[%s6 + $0x70] sm:$0xff]
  %v937 = vld [vmem:[%s6 + $0x78] sm:$0xff]
  %v938 = vld [vmem:[#allocation2 + $0x1] sm:$0xff]
  %v939 = vld [vmem:[#allocation2 + $0x9] sm:$0xff]
  %v940 = vld [vmem:[#allocation2 + $0x19] sm:$0xff]
  %v941 = vld [vmem:[#allocation2 + $0x21] sm:$0xff]
  %v942 = vld [vmem:[%s7] sm:$0xff]
  %v943 = vld [vmem:[%s7 + $0x8] sm:$0xff]
  %v944 = vld [vmem:[%s7 + $0x10] sm:$0xff]
  %v945 = vld [vmem:[%s7 + $0x18] sm:$0xff]
  %v946 = vld [vmem:[%s7 + $0x20] sm:$0xff]
  %v947 = vld [vmem:[%s7 + $0x28] sm:$0xff]
  %v948 = vld [vmem:[%s7 + $0x30] sm:$0xff]
  %v949 = vld [vmem:[%s7 + $0x38] sm:$0xff]
  %v950 = vld [vmem:[%s7 + $0x40] sm:$0xff]
  %v951 = vld [vmem:[%s7 + $0x48] sm:$0xff]
  %v952 = vld [vmem:[%s7 + $0x50] sm:$0xff]
  %v953 = vld [vmem:[%s7 + $0x58] sm:$0xff]
  %v954 = vld [vmem:[%s7 + $0x60] sm:$0xff]
  %v955 = vld [vmem:[%s7 + $0x68] sm:$0xff]
  %v956 = vld [vmem:[%s7 + $0x70] sm:$0xff]
  %v957 = vld [vmem:[%s7 + $0x78] sm:$0xff]
  %958 = vmatpush.msra.mxu0 %v957
  %959 = vmatpush.msra.mxu0 %v956
  %960 = vmatpush.msra.mxu0 %v955
  %961 = vmatpush.msra.mxu0 %v954
  %962 = vmatpush.msra.mxu0 %v953
  %963 = vmatpush.msra.mxu0 %v952
  %964 = vmatpush.msra.mxu0 %v951
  %965 = vmatpush.msra.mxu0 %v950
  %966 = vmatpush.msra.mxu0 %v949
  %967 = vmatpush.msra.mxu0 %v948
  %968 = vmatpush.msra.mxu0 %v947
  %969 = vmatpush.msra.mxu0 %v946
  %970 = vmatpush.msra.mxu0 %v945
  %971 = vmatpush.msra.mxu0 %v944
  %972 = vmatpush.msra.mxu0 %v943
  %973 = vmatpush.msra.mxu0 %v942
  %974 = vmatmul.f32.gmra.mxu0 %v938
  %v975 = vpop.f32.mrf.mxu0
  %v976 = vadd.f32 0.0, %v975
  %977 = vmatmul.f32.gmra.mxu0 %v939
  %v978 = vpop.f32.mrf.mxu0
  %v979 = vadd.f32 0.0, %v978
  %980 = vmatmul.f32.gmra.mxu0 %v940
  %v981 = vpop.f32.mrf.mxu0
  %v982 = vadd.f32 0.0, %v981
  %983 = vmatmul.f32.gmra.mxu0 %v941
  %v984 = vpop.f32.mrf.mxu0
  %v985 = vadd.f32 0.0, %v984
  %986 = vdwg.mxu0
  %987 = vmatpush.msra.mxu0 %v937
  %988 = vmatpush.msra.mxu0 %v936
  %989 = vmatpush.msra.mxu0 %v935
  %990 = vmatpush.msra.mxu0 %v934
  %991 = vmatpush.msra.mxu0 %v933
  %992 = vmatpush.msra.mxu0 %v932
  %993 = vmatpush.msra.mxu0 %v931
  %994 = vmatpush.msra.mxu0 %v930
  %995 = vmatpush.msra.mxu0 %v929
  %996 = vmatpush.msra.mxu0 %v928
  %997 = vmatpush.msra.mxu0 %v927
  %998 = vmatpush.msra.mxu0 %v926
  %999 = vmatpush.msra.mxu0 %v925
  %1000 = vmatpush.msra.mxu0 %v924
  %1001 = vmatpush.msra.mxu0 %v923
  %1002 = vmatpush.msra.mxu0 %v922
  %1003 = vmatmul.f32.gmra.mxu0 %v918
  %v1004 = vpop.f32.mrf.mxu0
  %v1005 = vadd.f32 %v976, %v1004
  %1006 = vmatmul.f32.gmra.mxu0 %v919
  %v1007 = vpop.f32.mrf.mxu0
  %v1008 = vadd.f32 %v979, %v1007
  %1009 = vmatmul.f32.gmra.mxu0 %v920
  %v1010 = vpop.f32.mrf.mxu0
  %v1011 = vadd.f32 %v982, %v1010
  %1012 = vmatmul.f32.gmra.mxu0 %v921
  %v1013 = vpop.f32.mrf.mxu0
  %v1014 = vadd.f32 %v985, %v1013
  %1015 = vdwg.mxu0
  %v1016 = vld [vmem:[#allocation2 + $0x2] sm:$0xff]
  %v1017 = vld [vmem:[#allocation2 + $0xa] sm:$0xff]
  %v1018 = vld [vmem:[#allocation2 + $0x1a] sm:$0xff]
  %v1019 = vld [vmem:[#allocation2 + $0x22] sm:$0xff]
  %v1020 = vld [vmem:[%s8] sm:$0xff]
  %v1021 = vld [vmem:[%s8 + $0x8] sm:$0xff]
  %v1022 = vld [vmem:[%s8 + $0x10] sm:$0xff]
  %v1023 = vld [vmem:[%s8 + $0x18] sm:$0xff]
  %v1024 = vld [vmem:[%s8 + $0x20] sm:$0xff]
  %v1025 = vld [vmem:[%s8 + $0x28] sm:$0xff]
  %v1026 = vld [vmem:[%s8 + $0x30] sm:$0xff]
  %v1027 = vld [vmem:[%s8 + $0x38] sm:$0xff]
  %v1028 = vld [vmem:[%s8 + $0x40] sm:$0xff]
  %v1029 = vld [vmem:[%s8 + $0x48] sm:$0xff]
  %v1030 = vld [vmem:[%s8 + $0x50] sm:$0xff]
  %v1031 = vld [vmem:[%s8 + $0x58] sm:$0xff]
  %v1032 = vld [vmem:[%s8 + $0x60] sm:$0xff]
  %v1033 = vld [vmem:[%s8 + $0x68] sm:$0xff]
  %v1034 = vld [vmem:[%s8 + $0x70] sm:$0xff]
  %v1035 = vld [vmem:[%s8 + $0x78] sm:$0xff]
  %1036 = vmatpush.msra.mxu0 %v1035
  %1037 = vmatpush.msra.mxu0 %v1034
  %1038 = vmatpush.msra.mxu0 %v1033
  %1039 = vmatpush.msra.mxu0 %v1032
  %1040 = vmatpush.msra.mxu0 %v1031
  %1041 = vmatpush.msra.mxu0 %v1030
  %1042 = vmatpush.msra.mxu0 %v1029
  %1043 = vmatpush.msra.mxu0 %v1028
  %1044 = vmatpush.msra.mxu0 %v1027
  %1045 = vmatpush.msra.mxu0 %v1026
  %1046 = vmatpush.msra.mxu0 %v1025
  %1047 = vmatpush.msra.mxu0 %v1024
  %1048 = vmatpush.msra.mxu0 %v1023
  %1049 = vmatpush.msra.mxu0 %v1022
  %1050 = vmatpush.msra.mxu0 %v1021
  %1051 = vmatpush.msra.mxu0 %v1020
  %1052 = vmatmul.f32.gmra.mxu0 %v1016
  %v1053 = vpop.f32.mrf.mxu0
  %v1054 = vadd.f32 0.0, %v1053
  %1055 = vmatmul.f32.gmra.mxu0 %v1017
  %v1056 = vpop.f32.mrf.mxu0
  %v1057 = vadd.f32 0.0, %v1056
  %1058 = vmatmul.f32.gmra.mxu0 %v1018
  %v1059 = vpop.f32.mrf.mxu0
  %v1060 = vadd.f32 0.0, %v1059
  %1061 = vmatmul.f32.gmra.mxu0 %v1019
  %v1062 = vpop.f32.mrf.mxu0
  %v1063 = vadd.f32 0.0, %v1062
  %1064 = vdwg.mxu0
  %v1065 = vadd.f32 %v1005, %v1054
  %v1066 = vadd.f32 %v1008, %v1057
  %v1067 = vadd.f32 %v1011, %v1060
  %v1068 = vadd.f32 %v1014, %v1063
  %v1069 = vadd.f32 %v1065, %v1066
  %v1070 = vadd.f32 %v1069, %v1067
  %v1071 = vadd.f32 %v1070, %v1068
  %v1072 = vrot.slane %v1071, 4
  %v1073 = vadd.f32 %v1071, %v1072
  %v1074 = vrot.slane %v1073, 2
  %v1075 = vadd.f32 %v1073, %v1074
  %v1076 = vrot.slane %v1075, 1
  %v1077 = vadd.f32 %v1075, %v1076
  %v1078 = vmul.f32 %v1077, %v297
  %1080 = vrot.lane.b32.xlu0 %v1078, 120
  %v1081 = vpop.permute.xlu0 %1080
  %v1083 = vadd.f32 %v1078, %v1081
  %1084 = vrot.lane.b32.xlu0 %v1078, 112
  %v1085 = vpop.permute.xlu0 %1084
  %v1087 = vadd.f32 %v1083, %v1085
  %1088 = vrot.lane.b32.xlu0 %v1078, 104
  %v1089 = vpop.permute.xlu0 %1088
  %v1091 = vadd.f32 %v1087, %v1089
  %1092 = vrot.lane.b32.xlu0 %v1078, 96
  %v1093 = vpop.permute.xlu0 %1092
  %v1095 = vadd.f32 %v1091, %v1093
  %1096 = vrot.lane.b32.xlu0 %v1078, 88
  %v1097 = vpop.permute.xlu0 %1096
  %v1099 = vadd.f32 %v1095, %v1097
  %1100 = vrot.lane.b32.xlu0 %v1078, 80
  %v1101 = vpop.permute.xlu0 %1100
  %v1103 = vadd.f32 %v1099, %v1101
  %1104 = vrot.lane.b32.xlu0 %v1078, 72
  %v1105 = vpop.permute.xlu0 %1104
  %v1107 = vadd.f32 %v1103, %v1105
  %1108 = vrot.lane.b32.xlu0 %v1078, 64
  %v1109 = vpop.permute.xlu0 %1108
  %v1111 = vadd.f32 %v1107, %v1109
  %1112 = vrot.lane.b32.xlu0 %v1078, 56
  %v1113 = vpop.permute.xlu0 %1112
  %v1115 = vadd.f32 %v1111, %v1113
  %1116 = vrot.lane.b32.xlu0 %v1078, 48
  %v1117 = vpop.permute.xlu0 %1116
  %v1119 = vadd.f32 %v1115, %v1117
  %1120 = vrot.lane.b32.xlu0 %v1078, 40
  %v1121 = vpop.permute.xlu0 %1120
  %v1123 = vadd.f32 %v1119, %v1121
  %1124 = vrot.lane.b32.xlu0 %v1078, 32
  %v1125 = vpop.permute.xlu0 %1124
  %v1127 = vadd.f32 %v1123, %v1125
  %1128 = vrot.lane.b32.xlu0 %v1078, 24
  %v1129 = vpop.permute.xlu0 %1128
  %v1131 = vadd.f32 %v1127, %v1129
  %1132 = vrot.lane.b32.xlu0 %v1078, 16
  %v1133 = vpop.permute.xlu0 %1132
  %v1135 = vadd.f32 %v1131, %v1133
  %1136 = vrot.lane.b32.xlu0 %v1078, 8
  %v1137 = vpop.permute.xlu0 %1136
  %v1139 = vadd.f32 %v1135, %v1137
  %v1140 = vmul.f32 %v1139, 0.0625
  %1142 = vrot.lane.b32.xlu0 %v1140, 8
  %v1143 = vpop.permute.xlu0 %1142
  %1145 = vrot.lane.b32.xlu0 %v1140, 16
  %v1146 = vpop.permute.xlu0 %1145
  %1148 = vrot.lane.b32.xlu0 %v1140, 24
  %v1149 = vpop.permute.xlu0 %1148
  %1151 = vrot.lane.b32.xlu0 %v1140, 32
  %v1152 = vpop.permute.xlu0 %1151
  %1154 = vrot.lane.b32.xlu0 %v1140, 40
  %v1155 = vpop.permute.xlu0 %1154
  %1157 = vrot.lane.b32.xlu0 %v1140, 48
  %v1158 = vpop.permute.xlu0 %1157
  %1160 = vrot.lane.b32.xlu0 %v1140, 56
  %v1161 = vpop.permute.xlu0 %1160
  %1163 = vrot.lane.b32.xlu0 %v1140, 64
  %v1164 = vpop.permute.xlu0 %1163
  %1166 = vrot.lane.b32.xlu0 %v1140, 72
  %v1167 = vpop.permute.xlu0 %1166
  %1169 = vrot.lane.b32.xlu0 %v1140, 80
  %v1170 = vpop.permute.xlu0 %1169
  %1172 = vrot.lane.b32.xlu0 %v1140, 88
  %v1173 = vpop.permute.xlu0 %1172
  %1175 = vrot.lane.b32.xlu0 %v1140, 96
  %v1176 = vpop.permute.xlu0 %1175
  %1178 = vrot.lane.b32.xlu0 %v1140, 104
  %v1179 = vpop.permute.xlu0 %1178
  %1181 = vrot.lane.b32.xlu0 %v1140, 112
  %v1182 = vpop.permute.xlu0 %1181
  %1184 = vrot.lane.b32.xlu0 %v1140, 120
  %v1185 = vpop.permute.xlu0 %1184
  %v1187 = vsel %vm407, %v1140, %v1143
  %v1188 = vsel %vm409, %v1187, %v1146
  %v1189 = vsel %vm411, %v1188, %v1149
  %v1190 = vsel %vm413, %v1189, %v1152
  %v1191 = vsel %vm415, %v1190, %v1155
  %v1192 = vsel %vm417, %v1191, %v1158
  %v1193 = vsel %vm419, %v1192, %v1161
  %v1194 = vsel %vm421, %v1193, %v1164
  %v1195 = vsel %vm423, %v1194, %v1167
  %v1196 = vsel %vm425, %v1195, %v1170
  %v1197 = vsel %vm427, %v1196, %v1173
  %v1198 = vsel %vm429, %v1197, %v1176
  %v1199 = vsel %vm431, %v1198, %v1179
  %v1200 = vsel %vm433, %v1199, %v1182
  %v1201 = vsel %vm435, %v1200, %v1185
  %v1202 = vperm.slane %v1201, 0
  %v1203 = vsub.f32 %v1065, %v1202
  %v1204 = vsub.f32 %v1066, %v1202
  %v1205 = vsub.f32 %v1067, %v1202
  %v1206 = vsub.f32 %v1068, %v1202
  %v1207 = vmul.f32 %v1203, %v1203
  %v1208 = vmul.f32 %v1204, %v1204
  %v1209 = vmul.f32 %v1205, %v1205
  %v1210 = vmul.f32 %v1206, %v1206
  %v1211 = vadd.f32 %v1207, %v1208
  %v1212 = vadd.f32 %v1211, %v1209
  %v1213 = vadd.f32 %v1212, %v1210
  %v1214 = vrot.slane %v1213, 4
  %v1215 = vadd.f32 %v1213, %v1214
  %v1216 = vrot.slane %v1215, 2
  %v1217 = vadd.f32 %v1215, %v1216
  %v1218 = vrot.slane %v1217, 1
  %v1219 = vadd.f32 %v1217, %v1218
  %v1220 = vmul.f32 %v1219, %v297
  %1222 = vrot.lane.b32.xlu0 %v1220, 120
  %v1223 = vpop.permute.xlu0 %1222
  %v1225 = vadd.f32 %v1220, %v1223
  %1226 = vrot.lane.b32.xlu0 %v1220, 112
  %v1227 = vpop.permute.xlu0 %1226
  %v1229 = vadd.f32 %v1225, %v1227
  %1230 = vrot.lane.b32.xlu0 %v1220, 104
  %v1231 = vpop.permute.xlu0 %1230
  %v1233 = vadd.f32 %v1229, %v1231
  %1234 = vrot.lane.b32.xlu0 %v1220, 96
  %v1235 = vpop.permute.xlu0 %1234
  %v1237 = vadd.f32 %v1233, %v1235
  %1238 = vrot.lane.b32.xlu0 %v1220, 88
  %v1239 = vpop.permute.xlu0 %1238
  %v1241 = vadd.f32 %v1237, %v1239
  %1242 = vrot.lane.b32.xlu0 %v1220, 80
  %v1243 = vpop.permute.xlu0 %1242
  %v1245 = vadd.f32 %v1241, %v1243
  %1246 = vrot.lane.b32.xlu0 %v1220, 72
  %v1247 = vpop.permute.xlu0 %1246
  %v1249 = vadd.f32 %v1245, %v1247
  %1250 = vrot.lane.b32.xlu0 %v1220, 64
  %v1251 = vpop.permute.xlu0 %1250
  %v1253 = vadd.f32 %v1249, %v1251
  %1254 = vrot.lane.b32.xlu0 %v1220, 56
  %v1255 = vpop.permute.xlu0 %1254
  %v1257 = vadd.f32 %v1253, %v1255
  %1258 = vrot.lane.b32.xlu0 %v1220, 48
  %v1259 = vpop.permute.xlu0 %1258
  %v1261 = vadd.f32 %v1257, %v1259
  %1262 = vrot.lane.b32.xlu0 %v1220, 40
  %v1263 = vpop.permute.xlu0 %1262
  %v1265 = vadd.f32 %v1261, %v1263
  %1266 = vrot.lane.b32.xlu0 %v1220, 32
  %v1267 = vpop.permute.xlu0 %1266
  %v1269 = vadd.f32 %v1265, %v1267
  %1270 = vrot.lane.b32.xlu0 %v1220, 24
  %v1271 = vpop.permute.xlu0 %1270
  %v1273 = vadd.f32 %v1269, %v1271
  %1274 = vrot.lane.b32.xlu0 %v1220, 16
  %v1275 = vpop.permute.xlu0 %1274
  %v1277 = vadd.f32 %v1273, %v1275
  %1278 = vrot.lane.b32.xlu0 %v1220, 8
  %v1279 = vpop.permute.xlu0 %1278
  %v1281 = vadd.f32 %v1277, %v1279
  %v1282 = vmul.f32 %v1281, 0.0625
  %1284 = vrot.lane.b32.xlu0 %v1282, 8
  %v1285 = vpop.permute.xlu0 %1284
  %1287 = vrot.lane.b32.xlu0 %v1282, 16
  %v1288 = vpop.permute.xlu0 %1287
  %1290 = vrot.lane.b32.xlu0 %v1282, 24
  %v1291 = vpop.permute.xlu0 %1290
  %1293 = vrot.lane.b32.xlu0 %v1282, 32
  %v1294 = vpop.permute.xlu0 %1293
  %1296 = vrot.lane.b32.xlu0 %v1282, 40
  %v1297 = vpop.permute.xlu0 %1296
  %1299 = vrot.lane.b32.xlu0 %v1282, 48
  %v1300 = vpop.permute.xlu0 %1299
  %1302 = vrot.lane.b32.xlu0 %v1282, 56
  %v1303 = vpop.permute.xlu0 %1302
  %1305 = vrot.lane.b32.xlu0 %v1282, 64
  %v1306 = vpop.permute.xlu0 %1305
  %1308 = vrot.lane.b32.xlu0 %v1282, 72
  %v1309 = vpop.permute.xlu0 %1308
  %1311 = vrot.lane.b32.xlu0 %v1282, 80
  %v1312 = vpop.permute.xlu0 %1311
  %1314 = vrot.lane.b32.xlu0 %v1282, 88
  %v1315 = vpop.permute.xlu0 %1314
  %1317 = vrot.lane.b32.xlu0 %v1282, 96
  %v1318 = vpop.permute.xlu0 %1317
  %1320 = vrot.lane.b32.xlu0 %v1282, 104
  %v1321 = vpop.permute.xlu0 %1320
  %1323 = vrot.lane.b32.xlu0 %v1282, 112
  %v1324 = vpop.permute.xlu0 %1323
  %1326 = vrot.lane.b32.xlu0 %v1282, 120
  %v1327 = vpop.permute.xlu0 %1326
  %v1329 = vsel %vm407, %v1282, %v1285
  %v1330 = vsel %vm409, %v1329, %v1288
  %v1331 = vsel %vm411, %v1330, %v1291
  %v1332 = vsel %vm413, %v1331, %v1294
  %v1333 = vsel %vm415, %v1332, %v1297
  %v1334 = vsel %vm417, %v1333, %v1300
  %v1335 = vsel %vm419, %v1334, %v1303
  %v1336 = vsel %vm421, %v1335, %v1306
  %v1337 = vsel %vm423, %v1336, %v1309
  %v1338 = vsel %vm425, %v1337, %v1312
  %v1339 = vsel %vm427, %v1338, %v1315
  %v1340 = vsel %vm429, %v1339, %v1318
  %v1341 = vsel %vm431, %v1340, %v1321
  %v1342 = vsel %vm433, %v1341, %v1324
  %v1343 = vsel %vm435, %v1342, %v1327
  %v1344 = vld [vmem:[%s9] sm:$0x1]
  %v1345 = vadd.f32 %v1343, 1e-05
  %v1346 = vrsqrt.pop %v1345
  %v1347 = vmul.f32 %v1346, %v1345
  %v1348 = vmul.f32 %v1347, %v1346
  %v1349 = vmul.f32 0.5, %v1348
  %v1350 = vsub.f32 1.5, %v1349
  %v1351 = vmul.f32 %v1346, %v1350
  %vm1352 = vweird.f32 %v1345
  %vm1353 = vweird.f32 %v1346
  %vm1354 = vmor %vm1352, %vm1353
  %v1355 = vsel %vm1354, %v1346, %v1351
  %v1356 = vmul.f32 %v1344, %v1355
  %v1358 = vperm.slane %v1356, 0
  %v1360 = vmul.f32 %v1203, %v1358
  %v1361 = vmul.f32 %v1204, %v1358
  %v1362 = vmul.f32 %v1205, %v1358
  %v1363 = vmul.f32 %v1206, %v1358
  %v1364 = vld [vmem:[%s10] sm:$0x1]
  %v1366 = vperm.slane %v1364, 0
  %v1368 = vadd.f32 %v1360, %v1366
  %v1369 = vadd.f32 %v1361, %v1366
  %v1370 = vadd.f32 %v1362, %v1366
  %v1371 = vadd.f32 %v1363, %v1366
  %v1372 = vadd.f32 %v1368, %v603
  %v1373 = vadd.f32 %v1369, %v604
  %v1374 = vadd.f32 %v1370, %v605
  %v1375 = vadd.f32 %v1371, %v606
  %v1376 = vmax.f32 %v1372, 0.0
  %v1377 = vmax.f32 %v1373, 0.0
  %v1378 = vmax.f32 %v1374, 0.0
  %v1379 = vmax.f32 %v1375, 0.0
  %1380 = vst [vmem:[#allocation2 + $0x1] sm:$0xff] %v1376
  %1381 = vst [vmem:[#allocation2 + $0x9] sm:$0xff] %v1377
  %1382 = vst [vmem:[#allocation2 + $0x19] sm:$0xff] %v1378
  %1383 = vst [vmem:[#allocation2 + $0x21] sm:$0xff] %v1379
  %v1384 = vld [vmem:[#allocation2 + $0x1] sm:$0xff]
  %v1385 = vld [vmem:[#allocation2 + $0x9] sm:$0xff]
  %v1386 = vld [vmem:[#allocation2 + $0x19] sm:$0xff]
  %v1387 = vld [vmem:[#allocation2 + $0x21] sm:$0xff]
  %v1388 = vld [vmem:[%s12] sm:$0xff]
  %v1389 = vld [vmem:[%s12 + $0x8] sm:$0xff]
  %v1390 = vld [vmem:[%s12 + $0x10] sm:$0xff]
  %v1391 = vld [vmem:[%s12 + $0x18] sm:$0xff]
  %v1392 = vld [vmem:[%s12 + $0x20] sm:$0xff]
  %v1393 = vld [vmem:[%s12 + $0x28] sm:$0xff]
  %v1394 = vld [vmem:[%s12 + $0x30] sm:$0xff]
  %v1395 = vld [vmem:[%s12 + $0x38] sm:$0xff]
  %v1396 = vld [vmem:[%s12 + $0x40] sm:$0xff]
  %v1397 = vld [vmem:[%s12 + $0x48] sm:$0xff]
  %v1398 = vld [vmem:[%s12 + $0x50] sm:$0xff]
  %v1399 = vld [vmem:[%s12 + $0x58] sm:$0xff]
  %v1400 = vld [vmem:[%s12 + $0x60] sm:$0xff]
  %v1401 = vld [vmem:[%s12 + $0x68] sm:$0xff]
  %v1402 = vld [vmem:[%s12 + $0x70] sm:$0xff]
  %v1403 = vld [vmem:[%s12 + $0x78] sm:$0xff]
  %1404 = vmatpush.msra.mxu0 %v1403
  %1405 = vmatpush.msra.mxu0 %v1402
  %1406 = vmatpush.msra.mxu0 %v1401
  %1407 = vmatpush.msra.mxu0 %v1400
  %1408 = vmatpush.msra.mxu0 %v1399
  %1409 = vmatpush.msra.mxu0 %v1398
  %1410 = vmatpush.msra.mxu0 %v1397
  %1411 = vmatpush.msra.mxu0 %v1396
  %1412 = vmatpush.msra.mxu0 %v1395
  %1413 = vmatpush.msra.mxu0 %v1394
  %1414 = vmatpush.msra.mxu0 %v1393
  %1415 = vmatpush.msra.mxu0 %v1392
  %1416 = vmatpush.msra.mxu0 %v1391
  %1417 = vmatpush.msra.mxu0 %v1390
  %1418 = vmatpush.msra.mxu0 %v1389
  %1419 = vmatpush.msra.mxu0 %v1388
  %1420 = vmatmul.f32.gmra.mxu0 %v1384
  %v1421 = vpop.f32.mrf.mxu0
  %v1422 = vadd.f32 0.0, %v1421
  %1423 = vmatmul.f32.gmra.mxu0 %v1385
  %v1424 = vpop.f32.mrf.mxu0
  %v1425 = vadd.f32 0.0, %v1424
  %1426 = vmatmul.f32.gmra.mxu0 %v1386
  %v1427 = vpop.f32.mrf.mxu0
  %v1428 = vadd.f32 0.0, %v1427
  %1429 = vmatmul.f32.gmra.mxu0 %v1387
  %v1430 = vpop.f32.mrf.mxu0
  %v1431 = vadd.f32 0.0, %v1430
  %1432 = vdwg.mxu0
  %v1433 = vld [vmem:[#allocation2] sm:$0xff]
  %v1434 = vld [vmem:[#allocation2 + $0x8] sm:$0xff]
  %v1435 = vld [vmem:[#allocation2 + $0x18] sm:$0xff]
  %v1436 = vld [vmem:[#allocation2 + $0x20] sm:$0xff]
  %v1437 = vld [vmem:[%s11] sm:$0xff]
  %v1438 = vld [vmem:[%s11 + $0x8] sm:$0xff]
  %v1439 = vld [vmem:[%s11 + $0x10] sm:$0xff]
  %v1440 = vld [vmem:[%s11 + $0x18] sm:$0xff]
  %v1441 = vld [vmem:[%s11 + $0x20] sm:$0xff]
  %v1442 = vld [vmem:[%s11 + $0x28] sm:$0xff]
  %v1443 = vld [vmem:[%s11 + $0x30] sm:$0xff]
  %v1444 = vld [vmem:[%s11 + $0x38] sm:$0xff]
  %v1445 = vld [vmem:[%s11 + $0x40] sm:$0xff]
  %v1446 = vld [vmem:[%s11 + $0x48] sm:$0xff]
  %v1447 = vld [vmem:[%s11 + $0x50] sm:$0xff]
  %v1448 = vld [vmem:[%s11 + $0x58] sm:$0xff]
  %v1449 = vld [vmem:[%s11 + $0x60] sm:$0xff]
  %v1450 = vld [vmem:[%s11 + $0x68] sm:$0xff]
  %v1451 = vld [vmem:[%s11 + $0x70] sm:$0xff]
  %v1452 = vld [vmem:[%s11 + $0x78] sm:$0xff]
  %v1453 = vld [vmem:[#allocation2 + $0x2] sm:$0xff]
  %v1454 = vld [vmem:[#allocation2 + $0xa] sm:$0xff]
  %v1455 = vld [vmem:[#allocation2 + $0x1a] sm:$0xff]
  %v1456 = vld [vmem:[#allocation2 + $0x22] sm:$0xff]
  %v1457 = vld [vmem:[%s13] sm:$0xff]
  %v1458 = vld [vmem:[%s13 + $0x8] sm:$0xff]
  %v1459 = vld [vmem:[%s13 + $0x10] sm:$0xff]
  %v1460 = vld [vmem:[%s13 + $0x18] sm:$0xff]
  %v1461 = vld [vmem:[%s13 + $0x20] sm:$0xff]
  %v1462 = vld [vmem:[%s13 + $0x28] sm:$0xff]
  %v1463 = vld [vmem:[%s13 + $0x30] sm:$0xff]
  %v1464 = vld [vmem:[%s13 + $0x38] sm:$0xff]
  %v1465 = vld [vmem:[%s13 + $0x40] sm:$0xff]
  %v1466 = vld [vmem:[%s13 + $0x48] sm:$0xff]
  %v1467 = vld [vmem:[%s13 + $0x50] sm:$0xff]
  %v1468 = vld [vmem:[%s13 + $0x58] sm:$0xff]
  %v1469 = vld [vmem:[%s13 + $0x60] sm:$0xff]
  %v1470 = vld [vmem:[%s13 + $0x68] sm:$0xff]
  %v1471 = vld [vmem:[%s13 + $0x70] sm:$0xff]
  %v1472 = vld [vmem:[%s13 + $0x78] sm:$0xff]
  %1473 = vmatpush.msra.mxu0 %v1472
  %1474 = vmatpush.msra.mxu0 %v1471
  %1475 = vmatpush.msra.mxu0 %v1470
  %1476 = vmatpush.msra.mxu0 %v1469
  %1477 = vmatpush.msra.mxu0 %v1468
  %1478 = vmatpush.msra.mxu0 %v1467
  %1479 = vmatpush.msra.mxu0 %v1466
  %1480 = vmatpush.msra.mxu0 %v1465
  %1481 = vmatpush.msra.mxu0 %v1464
  %1482 = vmatpush.msra.mxu0 %v1463
  %1483 = vmatpush.msra.mxu0 %v1462
  %1484 = vmatpush.msra.mxu0 %v1461
  %1485 = vmatpush.msra.mxu0 %v1460
  %1486 = vmatpush.msra.mxu0 %v1459
  %1487 = vmatpush.msra.mxu0 %v1458
  %1488 = vmatpush.msra.mxu0 %v1457
  %1489 = vmatmul.f32.gmra.mxu0 %v1453
  %v1490 = vpop.f32.mrf.mxu0
  %v1491 = vadd.f32 0.0, %v1490
  %1492 = vmatmul.f32.gmra.mxu0 %v1454
  %v1493 = vpop.f32.mrf.mxu0
  %v1494 = vadd.f32 0.0, %v1493
  %1495 = vmatmul.f32.gmra.mxu0 %v1455
  %v1496 = vpop.f32.mrf.mxu0
  %v1497 = vadd.f32 0.0, %v1496
  %1498 = vmatmul.f32.gmra.mxu0 %v1456
  %v1499 = vpop.f32.mrf.mxu0
  %v1500 = vadd.f32 0.0, %v1499
  %1501 = vdwg.mxu0
  %1502 = vmatpush.msra.mxu0 %v1452
  %1503 = vmatpush.msra.mxu0 %v1451
  %1504 = vmatpush.msra.mxu0 %v1450
  %1505 = vmatpush.msra.mxu0 %v1449
  %1506 = vmatpush.msra.mxu0 %v1448
  %1507 = vmatpush.msra.mxu0 %v1447
  %1508 = vmatpush.msra.mxu0 %v1446
  %1509 = vmatpush.msra.mxu0 %v1445
  %1510 = vmatpush.msra.mxu0 %v1444
  %1511 = vmatpush.msra.mxu0 %v1443
  %1512 = vmatpush.msra.mxu0 %v1442
  %1513 = vmatpush.msra.mxu0 %v1441
  %1514 = vmatpush.msra.mxu0 %v1440
  %1515 = vmatpush.msra.mxu0 %v1439
  %1516 = vmatpush.msra.mxu0 %v1438
  %1517 = vmatpush.msra.mxu0 %v1437
  %1518 = vmatmul.f32.gmra.mxu0 %v1433
  %v1519 = vpop.f32.mrf.mxu0
  %v1520 = vadd.f32 %v1491, %v1519
  %1521 = vmatmul.f32.gmra.mxu0 %v1434
  %v1522 = vpop.f32.mrf.mxu0
  %v1523 = vadd.f32 %v1494, %v1522
  %1524 = vmatmul.f32.gmra.mxu0 %v1435
  %v1525 = vpop.f32.mrf.mxu0
  %v1526 = vadd.f32 %v1497, %v1525
  %1527 = vmatmul.f32.gmra.mxu0 %v1436
  %v1528 = vpop.f32.mrf.mxu0
  %v1529 = vadd.f32 %v1500, %v1528
  %1530 = vdwg.mxu0
  %v1531 = vadd.f32 %v1520, %v1422
  %v1532 = vadd.f32 %v1523, %v1425
  %v1533 = vadd.f32 %v1526, %v1428
  %v1534 = vadd.f32 %v1529, %v1431
  %v1535 = vadd.f32 %v1531, %v1532
  %v1536 = vadd.f32 %v1535, %v1533
  %v1537 = vadd.f32 %v1536, %v1534
  %v1538 = vrot.slane %v1537, 4
  %v1539 = vadd.f32 %v1537, %v1538
  %v1540 = vrot.slane %v1539, 2
  %v1541 = vadd.f32 %v1539, %v1540
  %v1542 = vrot.slane %v1541, 1
  %v1543 = vadd.f32 %v1541, %v1542
  %v1544 = vmul.f32 %v1543, %v297
  %1546 = vrot.lane.b32.xlu0 %v1544, 120
  %v1547 = vpop.permute.xlu0 %1546
  %v1549 = vadd.f32 %v1544, %v1547
  %1550 = vrot.lane.b32.xlu0 %v1544, 112
  %v1551 = vpop.permute.xlu0 %1550
  %v1553 = vadd.f32 %v1549, %v1551
  %1554 = vrot.lane.b32.xlu0 %v1544, 104
  %v1555 = vpop.permute.xlu0 %1554
  %v1557 = vadd.f32 %v1553, %v1555
  %1558 = vrot.lane.b32.xlu0 %v1544, 96
  %v1559 = vpop.permute.xlu0 %1558
  %v1561 = vadd.f32 %v1557, %v1559
  %1562 = vrot.lane.b32.xlu0 %v1544, 88
  %v1563 = vpop.permute.xlu0 %1562
  %v1565 = vadd.f32 %v1561, %v1563
  %1566 = vrot.lane.b32.xlu0 %v1544, 80
  %v1567 = vpop.permute.xlu0 %1566
  %v1569 = vadd.f32 %v1565, %v1567
  %1570 = vrot.lane.b32.xlu0 %v1544, 72
  %v1571 = vpop.permute.xlu0 %1570
  %v1573 = vadd.f32 %v1569, %v1571
  %1574 = vrot.lane.b32.xlu0 %v1544, 64
  %v1575 = vpop.permute.xlu0 %1574
  %v1577 = vadd.f32 %v1573, %v1575
  %1578 = vrot.lane.b32.xlu0 %v1544, 56
  %v1579 = vpop.permute.xlu0 %1578
  %v1581 = vadd.f32 %v1577, %v1579
  %1582 = vrot.lane.b32.xlu0 %v1544, 48
  %v1583 = vpop.permute.xlu0 %1582
  %v1585 = vadd.f32 %v1581, %v1583
  %1586 = vrot.lane.b32.xlu0 %v1544, 40
  %v1587 = vpop.permute.xlu0 %1586
  %v1589 = vadd.f32 %v1585, %v1587
  %1590 = vrot.lane.b32.xlu0 %v1544, 32
  %v1591 = vpop.permute.xlu0 %1590
  %v1593 = vadd.f32 %v1589, %v1591
  %1594 = vrot.lane.b32.xlu0 %v1544, 24
  %v1595 = vpop.permute.xlu0 %1594
  %v1597 = vadd.f32 %v1593, %v1595
  %1598 = vrot.lane.b32.xlu0 %v1544, 16
  %v1599 = vpop.permute.xlu0 %1598
  %v1601 = vadd.f32 %v1597, %v1599
  %1602 = vrot.lane.b32.xlu0 %v1544, 8
  %v1603 = vpop.permute.xlu0 %1602
  %v1605 = vadd.f32 %v1601, %v1603
  %v1606 = vmul.f32 %v1605, 0.0625
  %1608 = vrot.lane.b32.xlu0 %v1606, 8
  %v1609 = vpop.permute.xlu0 %1608
  %1611 = vrot.lane.b32.xlu0 %v1606, 16
  %v1612 = vpop.permute.xlu0 %1611
  %1614 = vrot.lane.b32.xlu0 %v1606, 24
  %v1615 = vpop.permute.xlu0 %1614
  %1617 = vrot.lane.b32.xlu0 %v1606, 32
  %v1618 = vpop.permute.xlu0 %1617
  %1620 = vrot.lane.b32.xlu0 %v1606, 40
  %v1621 = vpop.permute.xlu0 %1620
  %1623 = vrot.lane.b32.xlu0 %v1606, 48
  %v1624 = vpop.permute.xlu0 %1623
  %1626 = vrot.lane.b32.xlu0 %v1606, 56
  %v1627 = vpop.permute.xlu0 %1626
  %1629 = vrot.lane.b32.xlu0 %v1606, 64
  %v1630 = vpop.permute.xlu0 %1629
  %1632 = vrot.lane.b32.xlu0 %v1606, 72
  %v1633 = vpop.permute.xlu0 %1632
  %1635 = vrot.lane.b32.xlu0 %v1606, 80
  %v1636 = vpop.permute.xlu0 %1635
  %1638 = vrot.lane.b32.xlu0 %v1606, 88
  %v1639 = vpop.permute.xlu0 %1638
  %1641 = vrot.lane.b32.xlu0 %v1606, 96
  %v1642 = vpop.permute.xlu0 %1641
  %1644 = vrot.lane.b32.xlu0 %v1606, 104
  %v1645 = vpop.permute.xlu0 %1644
  %1647 = vrot.lane.b32.xlu0 %v1606, 112
  %v1648 = vpop.permute.xlu0 %1647
  %1650 = vrot.lane.b32.xlu0 %v1606, 120
  %v1651 = vpop.permute.xlu0 %1650
  %v1653 = vsel %vm407, %v1606, %v1609
  %v1654 = vsel %vm409, %v1653, %v1612
  %v1655 = vsel %vm411, %v1654, %v1615
  %v1656 = vsel %vm413, %v1655, %v1618
  %v1657 = vsel %vm415, %v1656, %v1621
  %v1658 = vsel %vm417, %v1657, %v1624
  %v1659 = vsel %vm419, %v1658, %v1627
  %v1660 = vsel %vm421, %v1659, %v1630
  %v1661 = vsel %vm423, %v1660, %v1633
  %v1662 = vsel %vm425, %v1661, %v1636
  %v1663 = vsel %vm427, %v1662, %v1639
  %v1664 = vsel %vm429, %v1663, %v1642
  %v1665 = vsel %vm431, %v1664, %v1645
  %v1666 = vsel %vm433, %v1665, %v1648
  %v1667 = vsel %vm435, %v1666, %v1651
  %v1668 = vperm.slane %v1667, 0
  %v1669 = vsub.f32 %v1531, %v1668
  %v1670 = vsub.f32 %v1532, %v1668
  %v1671 = vsub.f32 %v1533, %v1668
  %v1672 = vsub.f32 %v1534, %v1668
  %v1673 = vmul.f32 %v1669, %v1669
  %v1674 = vmul.f32 %v1670, %v1670
  %v1675 = vmul.f32 %v1671, %v1671
  %v1676 = vmul.f32 %v1672, %v1672
  %v1677 = vadd.f32 %v1673, %v1674
  %v1678 = vadd.f32 %v1677, %v1675
  %v1679 = vadd.f32 %v1678, %v1676
  %v1680 = vrot.slane %v1679, 4
  %v1681 = vadd.f32 %v1679, %v1680
  %v1682 = vrot.slane %v1681, 2
  %v1683 = vadd.f32 %v1681, %v1682
  %v1684 = vrot.slane %v1683, 1
  %v1685 = vadd.f32 %v1683, %v1684
  %v1686 = vmul.f32 %v1685, %v297
  %1688 = vrot.lane.b32.xlu0 %v1686, 120
  %v1689 = vpop.permute.xlu0 %1688
  %v1691 = vadd.f32 %v1686, %v1689
  %1692 = vrot.lane.b32.xlu0 %v1686, 112
  %v1693 = vpop.permute.xlu0 %1692
  %v1695 = vadd.f32 %v1691, %v1693
  %1696 = vrot.lane.b32.xlu0 %v1686, 104
  %v1697 = vpop.permute.xlu0 %1696
  %v1699 = vadd.f32 %v1695, %v1697
  %1700 = vrot.lane.b32.xlu0 %v1686, 96
  %v1701 = vpop.permute.xlu0 %1700
  %v1703 = vadd.f32 %v1699, %v1701
  %1704 = vrot.lane.b32.xlu0 %v1686, 88
  %v1705 = vpop.permute.xlu0 %1704
  %v1707 = vadd.f32 %v1703, %v1705
  %1708 = vrot.lane.b32.xlu0 %v1686, 80
  %v1709 = vpop.permute.xlu0 %1708
  %v1711 = vadd.f32 %v1707, %v1709
  %1712 = vrot.lane.b32.xlu0 %v1686, 72
  %v1713 = vpop.permute.xlu0 %1712
  %v1715 = vadd.f32 %v1711, %v1713
  %1716 = vrot.lane.b32.xlu0 %v1686, 64
  %v1717 = vpop.permute.xlu0 %1716
  %v1719 = vadd.f32 %v1715, %v1717
  %1720 = vrot.lane.b32.xlu0 %v1686, 56
  %v1721 = vpop.permute.xlu0 %1720
  %v1723 = vadd.f32 %v1719, %v1721
  %1724 = vrot.lane.b32.xlu0 %v1686, 48
  %v1725 = vpop.permute.xlu0 %1724
  %v1727 = vadd.f32 %v1723, %v1725
  %1728 = vrot.lane.b32.xlu0 %v1686, 40
  %v1729 = vpop.permute.xlu0 %1728
  %v1731 = vadd.f32 %v1727, %v1729
  %1732 = vrot.lane.b32.xlu0 %v1686, 32
  %v1733 = vpop.permute.xlu0 %1732
  %v1735 = vadd.f32 %v1731, %v1733
  %1736 = vrot.lane.b32.xlu0 %v1686, 24
  %v1737 = vpop.permute.xlu0 %1736
  %v1739 = vadd.f32 %v1735, %v1737
  %1740 = vrot.lane.b32.xlu0 %v1686, 16
  %v1741 = vpop.permute.xlu0 %1740
  %v1743 = vadd.f32 %v1739, %v1741
  %1744 = vrot.lane.b32.xlu0 %v1686, 8
  %v1745 = vpop.permute.xlu0 %1744
  %v1747 = vadd.f32 %v1743, %v1745
  %v1748 = vmul.f32 %v1747, 0.0625
  %1750 = vrot.lane.b32.xlu0 %v1748, 8
  %v1751 = vpop.permute.xlu0 %1750
  %1753 = vrot.lane.b32.xlu0 %v1748, 16
  %v1754 = vpop.permute.xlu0 %1753
  %1756 = vrot.lane.b32.xlu0 %v1748, 24
  %v1757 = vpop.permute.xlu0 %1756
  %1759 = vrot.lane.b32.xlu0 %v1748, 32
  %v1760 = vpop.permute.xlu0 %1759
  %1762 = vrot.lane.b32.xlu0 %v1748, 40
  %v1763 = vpop.permute.xlu0 %1762
  %1765 = vrot.lane.b32.xlu0 %v1748, 48
  %v1766 = vpop.permute.xlu0 %1765
  %1768 = vrot.lane.b32.xlu0 %v1748, 56
  %v1769 = vpop.permute.xlu0 %1768
  %1771 = vrot.lane.b32.xlu0 %v1748, 64
  %v1772 = vpop.permute.xlu0 %1771
  %1774 = vrot.lane.b32.xlu0 %v1748, 72
  %v1775 = vpop.permute.xlu0 %1774
  %1777 = vrot.lane.b32.xlu0 %v1748, 80
  %v1778 = vpop.permute.xlu0 %1777
  %1780 = vrot.lane.b32.xlu0 %v1748, 88
  %v1781 = vpop.permute.xlu0 %1780
  %1783 = vrot.lane.b32.xlu0 %v1748, 96
  %v1784 = vpop.permute.xlu0 %1783
  %1786 = vrot.lane.b32.xlu0 %v1748, 104
  %v1787 = vpop.permute.xlu0 %1786
  %1789 = vrot.lane.b32.xlu0 %v1748, 112
  %v1790 = vpop.permute.xlu0 %1789
  %1792 = vrot.lane.b32.xlu0 %v1748, 120
  %v1793 = vpop.permute.xlu0 %1792
  %v1795 = vsel %vm407, %v1748, %v1751
  %v1796 = vsel %vm409, %v1795, %v1754
  %v1797 = vsel %vm411, %v1796, %v1757
  %v1798 = vsel %vm413, %v1797, %v1760
  %v1799 = vsel %vm415, %v1798, %v1763
  %v1800 = vsel %vm417, %v1799, %v1766
  %v1801 = vsel %vm419, %v1800, %v1769
  %v1802 = vsel %vm421, %v1801, %v1772
  %v1803 = vsel %vm423, %v1802, %v1775
  %v1804 = vsel %vm425, %v1803, %v1778
  %v1805 = vsel %vm427, %v1804, %v1781
  %v1806 = vsel %vm429, %v1805, %v1784
  %v1807 = vsel %vm431, %v1806, %v1787
  %v1808 = vsel %vm433, %v1807, %v1790
  %v1809 = vsel %vm435, %v1808, %v1793
  %v1810 = vld [vmem:[%s14] sm:$0x1]
  %v1811 = vadd.f32 %v1809, 1e-05
  %v1812 = vrsqrt.pop %v1811
  %v1813 = vmul.f32 %v1812, %v1811
  %v1814 = vmul.f32 %v1813, %v1812
  %v1815 = vmul.f32 0.5, %v1814
  %v1816 = vsub.f32 1.5, %v1815
  %v1817 = vmul.f32 %v1812, %v1816
  %vm1818 = vweird.f32 %v1811
  %vm1819 = vweird.f32 %v1812
  %vm1820 = vmor %vm1818, %vm1819
  %v1821 = vsel %vm1820, %v1812, %v1817
  %v1822 = vmul.f32 %v1810, %v1821
  %v1824 = vperm.slane %v1822, 0
  %v1826 = vmul.f32 %v1669, %v1824
  %v1827 = vmul.f32 %v1670, %v1824
  %v1828 = vmul.f32 %v1671, %v1824
  %v1829 = vmul.f32 %v1672, %v1824
  %v1830 = vld [vmem:[%s15] sm:$0x1]
  %v1832 = vperm.slane %v1830, 0
  %v1834 = vadd.f32 %v1826, %v1832
  %v1835 = vadd.f32 %v1827, %v1832
  %v1836 = vadd.f32 %v1828, %v1832
  %v1837 = vadd.f32 %v1829, %v1832
  %v1838 = vmax.f32 %v1834, 0.0
  %v1839 = vmax.f32 %v1835, 0.0
  %v1840 = vmax.f32 %v1836, 0.0
  %v1841 = vmax.f32 %v1837, 0.0
  %1842 = vst [vmem:[#allocation2 + $0x1] sm:$0xff] %v1838
  %1843 = vst [vmem:[#allocation2 + $0x9] sm:$0xff] %v1839
  %1844 = vst [vmem:[#allocation2 + $0x19] sm:$0xff] %v1840
  %1845 = vst [vmem:[#allocation2 + $0x21] sm:$0xff] %v1841
  %v1846 = vld [vmem:[#allocation2] sm:$0xff]
  %v1847 = vld [vmem:[#allocation2 + $0x8] sm:$0xff]
  %v1848 = vld [vmem:[#allocation2 + $0x18] sm:$0xff]
  %v1849 = vld [vmem:[#allocation2 + $0x20] sm:$0xff]
  %v1850 = vld [vmem:[%s16] sm:$0xff]
  %v1851 = vld [vmem:[%s16 + $0x8] sm:$0xff]
  %v1852 = vld [vmem:[%s16 + $0x10] sm:$0xff]
  %v1853 = vld [vmem:[%s16 + $0x18] sm:$0xff]
  %v1854 = vld [vmem:[%s16 + $0x20] sm:$0xff]
  %v1855 = vld [vmem:[%s16 + $0x28] sm:$0xff]
  %v1856 = vld [vmem:[%s16 + $0x30] sm:$0xff]
  %v1857 = vld [vmem:[%s16 + $0x38] sm:$0xff]
  %v1858 = vld [vmem:[%s16 + $0x40] sm:$0xff]
  %v1859 = vld [vmem:[%s16 + $0x48] sm:$0xff]
  %v1860 = vld [vmem:[%s16 + $0x50] sm:$0xff]
  %v1861 = vld [vmem:[%s16 + $0x58] sm:$0xff]
  %v1862 = vld [vmem:[%s16 + $0x60] sm:$0xff]
  %v1863 = vld [vmem:[%s16 + $0x68] sm:$0xff]
  %v1864 = vld [vmem:[%s16 + $0x70] sm:$0xff]
  %v1865 = vld [vmem:[%s16 + $0x78] sm:$0xff]
  %v1866 = vld [vmem:[#allocation2 + $0x1] sm:$0xff]
  %v1867 = vld [vmem:[#allocation2 + $0x9] sm:$0xff]
  %v1868 = vld [vmem:[#allocation2 + $0x19] sm:$0xff]
  %v1869 = vld [vmem:[#allocation2 + $0x21] sm:$0xff]
  %v1870 = vld [vmem:[%s17] sm:$0xff]
  %v1871 = vld [vmem:[%s17 + $0x8] sm:$0xff]
  %v1872 = vld [vmem:[%s17 + $0x10] sm:$0xff]
  %v1873 = vld [vmem:[%s17 + $0x18] sm:$0xff]
  %v1874 = vld [vmem:[%s17 + $0x20] sm:$0xff]
  %v1875 = vld [vmem:[%s17 + $0x28] sm:$0xff]
  %v1876 = vld [vmem:[%s17 + $0x30] sm:$0xff]
  %v1877 = vld [vmem:[%s17 + $0x38] sm:$0xff]
  %v1878 = vld [vmem:[%s17 + $0x40] sm:$0xff]
  %v1879 = vld [vmem:[%s17 + $0x48] sm:$0xff]
  %v1880 = vld [vmem:[%s17 + $0x50] sm:$0xff]
  %v1881 = vld [vmem:[%s17 + $0x58] sm:$0xff]
  %v1882 = vld [vmem:[%s17 + $0x60] sm:$0xff]
  %v1883 = vld [vmem:[%s17 + $0x68] sm:$0xff]
  %v1884 = vld [vmem:[%s17 + $0x70] sm:$0xff]
  %v1885 = vld [vmem:[%s17 + $0x78] sm:$0xff]
  %1886 = vmatpush.msra.mxu0 %v1885
  %1887 = vmatpush.msra.mxu0 %v1884
  %1888 = vmatpush.msra.mxu0 %v1883
  %1889 = vmatpush.msra.mxu0 %v1882
  %1890 = vmatpush.msra.mxu0 %v1881
  %1891 = vmatpush.msra.mxu0 %v1880
  %1892 = vmatpush.msra.mxu0 %v1879
  %1893 = vmatpush.msra.mxu0 %v1878
  %1894 = vmatpush.msra.mxu0 %v1877
  %1895 = vmatpush.msra.mxu0 %v1876
  %1896 = vmatpush.msra.mxu0 %v1875
  %1897 = vmatpush.msra.mxu0 %v1874
  %1898 = vmatpush.msra.mxu0 %v1873
  %1899 = vmatpush.msra.mxu0 %v1872
  %1900 = vmatpush.msra.mxu0 %v1871
  %1901 = vmatpush.msra.mxu0 %v1870
  %1902 = vmatmul.f32.gmra.mxu0 %v1866
  %v1903 = vpop.f32.mrf.mxu0
  %v1904 = vadd.f32 0.0, %v1903
  %1905 = vmatmul.f32.gmra.mxu0 %v1867
  %v1906 = vpop.f32.mrf.mxu0
  %v1907 = vadd.f32 0.0, %v1906
  %1908 = vmatmul.f32.gmra.mxu0 %v1868
  %v1909 = vpop.f32.mrf.mxu0
  %v1910 = vadd.f32 0.0, %v1909
  %1911 = vmatmul.f32.gmra.mxu0 %v1869
  %v1912 = vpop.f32.mrf.mxu0
  %v1913 = vadd.f32 0.0, %v1912
  %1914 = vdwg.mxu0
  %1915 = vmatpush.msra.mxu0 %v1865
  %1916 = vmatpush.msra.mxu0 %v1864
  %1917 = vmatpush.msra.mxu0 %v1863
  %1918 = vmatpush.msra.mxu0 %v1862
  %1919 = vmatpush.msra.mxu0 %v1861
  %1920 = vmatpush.msra.mxu0 %v1860
  %1921 = vmatpush.msra.mxu0 %v1859
  %1922 = vmatpush.msra.mxu0 %v1858
  %1923 = vmatpush.msra.mxu0 %v1857
  %1924 = vmatpush.msra.mxu0 %v1856
  %1925 = vmatpush.msra.mxu0 %v1855
  %1926 = vmatpush.msra.mxu0 %v1854
  %1927 = vmatpush.msra.mxu0 %v1853
  %1928 = vmatpush.msra.mxu0 %v1852
  %1929 = vmatpush.msra.mxu0 %v1851
  %1930 = vmatpush.msra.mxu0 %v1850
  %1931 = vmatmul.f32.gmra.mxu0 %v1846
  %v1932 = vpop.f32.mrf.mxu0
  %v1933 = vadd.f32 %v1904, %v1932
  %1934 = vmatmul.f32.gmra.mxu0 %v1847
  %v1935 = vpop.f32.mrf.mxu0
  %v1936 = vadd.f32 %v1907, %v1935
  %1937 = vmatmul.f32.gmra.mxu0 %v1848
  %v1938 = vpop.f32.mrf.mxu0
  %v1939 = vadd.f32 %v1910, %v1938
  %1940 = vmatmul.f32.gmra.mxu0 %v1849
  %v1941 = vpop.f32.mrf.mxu0
  %v1942 = vadd.f32 %v1913, %v1941
  %1943 = vdwg.mxu0
  %v1944 = vld [vmem:[#allocation2 + $0x2] sm:$0xff]
  %v1945 = vld [vmem:[#allocation2 + $0xa] sm:$0xff]
  %v1946 = vld [vmem:[#allocation2 + $0x1a] sm:$0xff]
  %v1947 = vld [vmem:[#allocation2 + $0x22] sm:$0xff]
  %v1948 = vld [vmem:[%s18] sm:$0xff]
  %v1949 = vld [vmem:[%s18 + $0x8] sm:$0xff]
  %v1950 = vld [vmem:[%s18 + $0x10] sm:$0xff]
  %v1951 = vld [vmem:[%s18 + $0x18] sm:$0xff]
  %v1952 = vld [vmem:[%s18 + $0x20] sm:$0xff]
  %v1953 = vld [vmem:[%s18 + $0x28] sm:$0xff]
  %v1954 = vld [vmem:[%s18 + $0x30] sm:$0xff]
  %v1955 = vld [vmem:[%s18 + $0x38] sm:$0xff]
  %v1956 = vld [vmem:[%s18 + $0x40] sm:$0xff]
  %v1957 = vld [vmem:[%s18 + $0x48] sm:$0xff]
  %v1958 = vld [vmem:[%s18 + $0x50] sm:$0xff]
  %v1959 = vld [vmem:[%s18 + $0x58] sm:$0xff]
  %v1960 = vld [vmem:[%s18 + $0x60] sm:$0xff]
  %v1961 = vld [vmem:[%s18 + $0x68] sm:$0xff]
  %v1962 = vld [vmem:[%s18 + $0x70] sm:$0xff]
  %v1963 = vld [vmem:[%s18 + $0x78] sm:$0xff]
  %1964 = vmatpush.msra.mxu0 %v1963
  %1965 = vmatpush.msra.mxu0 %v1962
  %1966 = vmatpush.msra.mxu0 %v1961
  %1967 = vmatpush.msra.mxu0 %v1960
  %1968 = vmatpush.msra.mxu0 %v1959
  %1969 = vmatpush.msra.mxu0 %v1958
  %1970 = vmatpush.msra.mxu0 %v1957
  %1971 = vmatpush.msra.mxu0 %v1956
  %1972 = vmatpush.msra.mxu0 %v1955
  %1973 = vmatpush.msra.mxu0 %v1954
  %1974 = vmatpush.msra.mxu0 %v1953
  %1975 = vmatpush.msra.mxu0 %v1952
  %1976 = vmatpush.msra.mxu0 %v1951
  %1977 = vmatpush.msra.mxu0 %v1950
  %1978 = vmatpush.msra.mxu0 %v1949
  %1979 = vmatpush.msra.mxu0 %v1948
  %1980 = vmatmul.f32.gmra.mxu0 %v1944
  %v1981 = vpop.f32.mrf.mxu0
  %v1982 = vadd.f32 0.0, %v1981
  %1983 = vmatmul.f32.gmra.mxu0 %v1945
  %v1984 = vpop.f32.mrf.mxu0
  %v1985 = vadd.f32 0.0, %v1984
  %1986 = vmatmul.f32.gmra.mxu0 %v1946
  %v1987 = vpop.f32.mrf.mxu0
  %v1988 = vadd.f32 0.0, %v1987
  %1989 = vmatmul.f32.gmra.mxu0 %v1947
  %v1990 = vpop.f32.mrf.mxu0
  %v1991 = vadd.f32 0.0, %v1990
  %1992 = vdwg.mxu0
  %v1993 = vadd.f32 %v1933, %v1982
  %v1994 = vadd.f32 %v1936, %v1985
  %v1995 = vadd.f32 %v1939, %v1988
  %v1996 = vadd.f32 %v1942, %v1991
  %v1997 = vadd.f32 %v1993, %v1994
  %v1998 = vadd.f32 %v1997, %v1995
  %v1999 = vadd.f32 %v1998, %v1996
  %v2000 = vrot.slane %v1999, 4
  %v2001 = vadd.f32 %v1999, %v2000
  %v2002 = vrot.slane %v2001, 2
  %v2003 = vadd.f32 %v2001, %v2002
  %v2004 = vrot.slane %v2003, 1
  %v2005 = vadd.f32 %v2003, %v2004
  %v2006 = vmul.f32 %v2005, %v297
  %2008 = vrot.lane.b32.xlu0 %v2006, 120
  %v2009 = vpop.permute.xlu0 %2008
  %v2011 = vadd.f32 %v2006, %v2009
  %2012 = vrot.lane.b32.xlu0 %v2006, 112
  %v2013 = vpop.permute.xlu0 %2012
  %v2015 = vadd.f32 %v2011, %v2013
  %2016 = vrot.lane.b32.xlu0 %v2006, 104
  %v2017 = vpop.permute.xlu0 %2016
  %v2019 = vadd.f32 %v2015, %v2017
  %2020 = vrot.lane.b32.xlu0 %v2006, 96
  %v2021 = vpop.permute.xlu0 %2020
  %v2023 = vadd.f32 %v2019, %v2021
  %2024 = vrot.lane.b32.xlu0 %v2006, 88
  %v2025 = vpop.permute.xlu0 %2024
  %v2027 = vadd.f32 %v2023, %v2025
  %2028 = vrot.lane.b32.xlu0 %v2006, 80
  %v2029 = vpop.permute.xlu0 %2028
  %v2031 = vadd.f32 %v2027, %v2029
  %2032 = vrot.lane.b32.xlu0 %v2006, 72
  %v2033 = vpop.permute.xlu0 %2032
  %v2035 = vadd.f32 %v2031, %v2033
  %2036 = vrot.lane.b32.xlu0 %v2006, 64
  %v2037 = vpop.permute.xlu0 %2036
  %v2039 = vadd.f32 %v2035, %v2037
  %2040 = vrot.lane.b32.xlu0 %v2006, 56
  %v2041 = vpop.permute.xlu0 %2040
  %v2043 = vadd.f32 %v2039, %v2041
  %2044 = vrot.lane.b32.xlu0 %v2006, 48
  %v2045 = vpop.permute.xlu0 %2044
  %v2047 = vadd.f32 %v2043, %v2045
  %2048 = vrot.lane.b32.xlu0 %v2006, 40
  %v2049 = vpop.permute.xlu0 %2048
  %v2051 = vadd.f32 %v2047, %v2049
  %2052 = vrot.lane.b32.xlu0 %v2006, 32
  %v2053 = vpop.permute.xlu0 %2052
  %v2055 = vadd.f32 %v2051, %v2053
  %2056 = vrot.lane.b32.xlu0 %v2006, 24
  %v2057 = vpop.permute.xlu0 %2056
  %v2059 = vadd.f32 %v2055, %v2057
  %2060 = vrot.lane.b32.xlu0 %v2006, 16
  %v2061 = vpop.permute.xlu0 %2060
  %v2063 = vadd.f32 %v2059, %v2061
  %2064 = vrot.lane.b32.xlu0 %v2006, 8
  %v2065 = vpop.permute.xlu0 %2064
  %v2067 = vadd.f32 %v2063, %v2065
  %v2068 = vmul.f32 %v2067, 0.0625
  %2070 = vrot.lane.b32.xlu0 %v2068, 8
  %v2071 = vpop.permute.xlu0 %2070
  %2073 = vrot.lane.b32.xlu0 %v2068, 16
  %v2074 = vpop.permute.xlu0 %2073
  %2076 = vrot.lane.b32.xlu0 %v2068, 24
  %v2077 = vpop.permute.xlu0 %2076
  %2079 = vrot.lane.b32.xlu0 %v2068, 32
  %v2080 = vpop.permute.xlu0 %2079
  %2082 = vrot.lane.b32.xlu0 %v2068, 40
  %v2083 = vpop.permute.xlu0 %2082
  %2085 = vrot.lane.b32.xlu0 %v2068, 48
  %v2086 = vpop.permute.xlu0 %2085
  %2088 = vrot.lane.b32.xlu0 %v2068, 56
  %v2089 = vpop.permute.xlu0 %2088
  %2091 = vrot.lane.b32.xlu0 %v2068, 64
  %v2092 = vpop.permute.xlu0 %2091
  %2094 = vrot.lane.b32.xlu0 %v2068, 72
  %v2095 = vpop.permute.xlu0 %2094
  %2097 = vrot.lane.b32.xlu0 %v2068, 80
  %v2098 = vpop.permute.xlu0 %2097
  %2100 = vrot.lane.b32.xlu0 %v2068, 88
  %v2101 = vpop.permute.xlu0 %2100
  %2103 = vrot.lane.b32.xlu0 %v2068, 96
  %v2104 = vpop.permute.xlu0 %2103
  %2106 = vrot.lane.b32.xlu0 %v2068, 104
  %v2107 = vpop.permute.xlu0 %2106
  %2109 = vrot.lane.b32.xlu0 %v2068, 112
  %v2110 = vpop.permute.xlu0 %2109
  %2112 = vrot.lane.b32.xlu0 %v2068, 120
  %v2113 = vpop.permute.xlu0 %2112
  %v2115 = vsel %vm407, %v2068, %v2071
  %v2116 = vsel %vm409, %v2115, %v2074
  %v2117 = vsel %vm411, %v2116, %v2077
  %v2118 = vsel %vm413, %v2117, %v2080
  %v2119 = vsel %vm415, %v2118, %v2083
  %v2120 = vsel %vm417, %v2119, %v2086
  %v2121 = vsel %vm419, %v2120, %v2089
  %v2122 = vsel %vm421, %v2121, %v2092
  %v2123 = vsel %vm423, %v2122, %v2095
  %v2124 = vsel %vm425, %v2123, %v2098
  %v2125 = vsel %vm427, %v2124, %v2101
  %v2126 = vsel %vm429, %v2125, %v2104
  %v2127 = vsel %vm431, %v2126, %v2107
  %v2128 = vsel %vm433, %v2127, %v2110
  %v2129 = vsel %vm435, %v2128, %v2113
  %v2130 = vperm.slane %v2129, 0
  %v2131 = vsub.f32 %v1993, %v2130
  %v2132 = vsub.f32 %v1994, %v2130
  %v2133 = vsub.f32 %v1995, %v2130
  %v2134 = vsub.f32 %v1996, %v2130
  %v2135 = vmul.f32 %v2131, %v2131
  %v2136 = vmul.f32 %v2132, %v2132
  %v2137 = vmul.f32 %v2133, %v2133
  %v2138 = vmul.f32 %v2134, %v2134
  %v2139 = vadd.f32 %v2135, %v2136
  %v2140 = vadd.f32 %v2139, %v2137
  %v2141 = vadd.f32 %v2140, %v2138
  %v2142 = vrot.slane %v2141, 4
  %v2143 = vadd.f32 %v2141, %v2142
  %v2144 = vrot.slane %v2143, 2
  %v2145 = vadd.f32 %v2143, %v2144
  %v2146 = vrot.slane %v2145, 1
  %v2147 = vadd.f32 %v2145, %v2146
  %v2148 = vmul.f32 %v2147, %v297
  %2150 = vrot.lane.b32.xlu0 %v2148, 120
  %v2151 = vpop.permute.xlu0 %2150
  %v2153 = vadd.f32 %v2148, %v2151
  %2154 = vrot.lane.b32.xlu0 %v2148, 112
  %v2155 = vpop.permute.xlu0 %2154
  %v2157 = vadd.f32 %v2153, %v2155
  %2158 = vrot.lane.b32.xlu0 %v2148, 104
  %v2159 = vpop.permute.xlu0 %2158
  %v2161 = vadd.f32 %v2157, %v2159
  %2162 = vrot.lane.b32.xlu0 %v2148, 96
  %v2163 = vpop.permute.xlu0 %2162
  %v2165 = vadd.f32 %v2161, %v2163
  %2166 = vrot.lane.b32.xlu0 %v2148, 88
  %v2167 = vpop.permute.xlu0 %2166
  %v2169 = vadd.f32 %v2165, %v2167
  %2170 = vrot.lane.b32.xlu0 %v2148, 80
  %v2171 = vpop.permute.xlu0 %2170
  %v2173 = vadd.f32 %v2169, %v2171
  %2174 = vrot.lane.b32.xlu0 %v2148, 72
  %v2175 = vpop.permute.xlu0 %2174
  %v2177 = vadd.f32 %v2173, %v2175
  %2178 = vrot.lane.b32.xlu0 %v2148, 64
  %v2179 = vpop.permute.xlu0 %2178
  %v2181 = vadd.f32 %v2177, %v2179
  %2182 = vrot.lane.b32.xlu0 %v2148, 56
  %v2183 = vpop.permute.xlu0 %2182
  %v2185 = vadd.f32 %v2181, %v2183
  %2186 = vrot.lane.b32.xlu0 %v2148, 48
  %v2187 = vpop.permute.xlu0 %2186
  %v2189 = vadd.f32 %v2185, %v2187
  %2190 = vrot.lane.b32.xlu0 %v2148, 40
  %v2191 = vpop.permute.xlu0 %2190
  %v2193 = vadd.f32 %v2189, %v2191
  %2194 = vrot.lane.b32.xlu0 %v2148, 32
  %v2195 = vpop.permute.xlu0 %2194
  %v2197 = vadd.f32 %v2193, %v2195
  %2198 = vrot.lane.b32.xlu0 %v2148, 24
  %v2199 = vpop.permute.xlu0 %2198
  %v2201 = vadd.f32 %v2197, %v2199
  %2202 = vrot.lane.b32.xlu0 %v2148, 16
  %v2203 = vpop.permute.xlu0 %2202
  %v2205 = vadd.f32 %v2201, %v2203
  %2206 = vrot.lane.b32.xlu0 %v2148, 8
  %v2207 = vpop.permute.xlu0 %2206
  %v2209 = vadd.f32 %v2205, %v2207
  %v2210 = vmul.f32 %v2209, 0.0625
  %2212 = vrot.lane.b32.xlu0 %v2210, 8
  %v2213 = vpop.permute.xlu0 %2212
  %2215 = vrot.lane.b32.xlu0 %v2210, 16
  %v2216 = vpop.permute.xlu0 %2215
  %2218 = vrot.lane.b32.xlu0 %v2210, 24
  %v2219 = vpop.permute.xlu0 %2218
  %2221 = vrot.lane.b32.xlu0 %v2210, 32
  %v2222 = vpop.permute.xlu0 %2221
  %2224 = vrot.lane.b32.xlu0 %v2210, 40
  %v2225 = vpop.permute.xlu0 %2224
  %2227 = vrot.lane.b32.xlu0 %v2210, 48
  %v2228 = vpop.permute.xlu0 %2227
  %2230 = vrot.lane.b32.xlu0 %v2210, 56
  %v2231 = vpop.permute.xlu0 %2230
  %2233 = vrot.lane.b32.xlu0 %v2210, 64
  %v2234 = vpop.permute.xlu0 %2233
  %2236 = vrot.lane.b32.xlu0 %v2210, 72
  %v2237 = vpop.permute.xlu0 %2236
  %2239 = vrot.lane.b32.xlu0 %v2210, 80
  %v2240 = vpop.permute.xlu0 %2239
  %2242 = vrot.lane.b32.xlu0 %v2210, 88
  %v2243 = vpop.permute.xlu0 %2242
  %2245 = vrot.lane.b32.xlu0 %v2210, 96
  %v2246 = vpop.permute.xlu0 %2245
  %2248 = vrot.lane.b32.xlu0 %v2210, 104
  %v2249 = vpop.permute.xlu0 %2248
  %2251 = vrot.lane.b32.xlu0 %v2210, 112
  %v2252 = vpop.permute.xlu0 %2251
  %2254 = vrot.lane.b32.xlu0 %v2210, 120
  %v2255 = vpop.permute.xlu0 %2254
  %v2257 = vsel %vm407, %v2210, %v2213
  %v2258 = vsel %vm409, %v2257, %v2216
  %v2259 = vsel %vm411, %v2258, %v2219
  %v2260 = vsel %vm413, %v2259, %v2222
  %v2261 = vsel %vm415, %v2260, %v2225
  %v2262 = vsel %vm417, %v2261, %v2228
  %v2263 = vsel %vm419, %v2262, %v2231
  %v2264 = vsel %vm421, %v2263, %v2234
  %v2265 = vsel %vm423, %v2264, %v2237
  %v2266 = vsel %vm425, %v2265, %v2240
  %v2267 = vsel %vm427, %v2266, %v2243
  %v2268 = vsel %vm429, %v2267, %v2246
  %v2269 = vsel %vm431, %v2268, %v2249
  %v2270 = vsel %vm433, %v2269, %v2252
  %v2271 = vsel %vm435, %v2270, %v2255
  %v2272 = vld [vmem:[%s19] sm:$0x1]
  %v2273 = vadd.f32 %v2271, 1e-05
  %v2274 = vrsqrt.pop %v2273
  %v2275 = vmul.f32 %v2274, %v2273
  %v2276 = vmul.f32 %v2275, %v2274
  %v2277 = vmul.f32 0.5, %v2276
  %v2278 = vsub.f32 1.5, %v2277
  %v2279 = vmul.f32 %v2274, %v2278
  %vm2280 = vweird.f32 %v2273
  %vm2281 = vweird.f32 %v2274
  %vm2282 = vmor %vm2280, %vm2281
  %v2283 = vsel %vm2282, %v2274, %v2279
  %v2284 = vmul.f32 %v2272, %v2283
  %v2286 = vperm.slane %v2284, 0
  %v2288 = vmul.f32 %v2131, %v2286
  %v2289 = vmul.f32 %v2132, %v2286
  %v2290 = vmul.f32 %v2133, %v2286
  %v2291 = vmul.f32 %v2134, %v2286
  %v2292 = vld [vmem:[%s20] sm:$0x1]
  %v2294 = vperm.slane %v2292, 0
  %v2296 = vadd.f32 %v2288, %v2294
  %v2297 = vadd.f32 %v2289, %v2294
  %v2298 = vadd.f32 %v2290, %v2294
  %v2299 = vadd.f32 %v2291, %v2294
  %v2300 = vadd.f32 %v2296, %v1376
  %v2301 = vadd.f32 %v2297, %v1377
  %v2302 = vadd.f32 %v2298, %v1378
  %v2303 = vadd.f32 %v2299, %v1379
  %v2304 = vmax.f32 %v2300, 0.0
  %v2305 = vmax.f32 %v2301, 0.0
  %v2306 = vmax.f32 %v2302, 0.0
  %v2307 = vmax.f32 %v2303, 0.0
  %2308 = vst [vmem:[%s23] sm:$0xff] %v2304
  %2309 = vst [vmem:[%s23 + $0x8] sm:$0xff] %v2305
  %2310 = vst [vmem:[%s23 + $0x10] sm:$0xff] %v2306
  %2311 = vst [vmem:[%s23 + $0x18] sm:$0xff] %v2307
  // Predicated region
  $region94: #{chain_forward.1} parent=0 // pred_check
    _
  $region95: #{chain_forward.1} parent=0 // pred_check_branch
    %2313 = sbr.rel (0) target = $region97
  $region96: #{chain_forward.1} parent=0 // pred_region
    _
  $region97: #{chain_forward.1} parent=0 // pred_fallthru
    _
  // Predicated region
  $region98: #{chain_forward.1} parent=0 // pred_check
    _
  $region99: #{chain_forward.1} parent=0 // pred_check_branch
    %2315 = sbr.rel (0) target = $region101
  $region100: #{chain_forward.1} parent=0 // pred_region
    _
  $region101: #{chain_forward.1} parent=0 // pred_fallthru
    _

</llo_original>
